<compile_context>
chip_gen: v6e
topology: v6e:2x2x1
jax: 0.10.0
libtpu: 0.0.40
codegen_flags: <defaults>
</compile_context>

<pallas_src>
import jax
import jax.numpy as jnp
import numpy as np
from jax.experimental import pallas as pl
from jax.experimental.pallas import tpu as pltpu

EPS = 1e-5


# --------------------------------------------------------------------------
# Fused kernel (built per static configuration)
# --------------------------------------------------------------------------
def _make_kernel(*, H, W, stride, gw, conv_shortcut, need_r, cdt):
    s = stride
    ho = (H - 1) // s + 1
    wo = (W - 1) // s + 1
    Wc = W // s
    Hh = (H + 2 + s - 1) // s
    Wh = (W + 2 + s - 1) // s

    # Static phase bookkeeping for the stride-phase-decomposed padded scratch:
    #   p_ref[a, b, i, j, c] == h1_padded[s*i + a, s*j + b, c]   (zero pad = 1)
    row_range = []
    for a in range(s):
        rows = [(h + 1) // s for h in range(H) if (h + 1) % s == a]
        row_range.append((min(rows), max(rows)) if rows else None)
    col_start = [0] * s
    for p in range(s):
        col_start[(p + 1) % s] = (p + 1) // s

    def kernel(*refs):
        it = iter(refs)
        x_ref = next(it)
        r_ref = next(it) if need_r else None
        w1_ref = next(it)
        w2_ref = next(it)
        w3_ref = next(it)
        ws_ref = next(it) if conv_shortcut else None
        b1_ref = next(it)
        b2_ref = next(it)
        b3_ref = next(it)
        o_ref = next(it)
        p_ref = next(it)

        # ---- stage 1: 1x1 conv (BN scale folded) + bias + ReLU (f32 math) ----
        x = x_ref[0]                                        # (H*W, cin) cdt
        h1 = jnp.dot(x, w1_ref[...], preferred_element_type=jnp.float32)
        h1 = jnp.maximum(h1 + b1_ref[...], 0.0)
        h1c = h1.astype(cdt)                                # one down-cast only

        # ---- zero ONLY the 1-px halo of the padded scratch (the interior is
        # fully rewritten below every grid step; no program_id gating so this
        # stays correct when the batch axis is split across megacore TCs) ----
        for a in range(s):
            for b in range(s):
                if row_range[a] is None:
                    p_ref[a, b, :, :, :] = jnp.zeros((Hh, Wh, gw), cdt)
                    continue
                lo, hi = row_range[a]
                j0 = col_start[b]
                if lo > 0:
                    p_ref[a, b, pl.ds(0, lo), :, :] = jnp.zeros((lo, Wh, gw), cdt)
                if hi < Hh - 1:
                    n = Hh - 1 - hi
                    p_ref[a, b, pl.ds(hi + 1, n), :, :] = jnp.zeros((n, Wh, gw), cdt)
                nr = hi - lo + 1
                if j0 > 0:
                    p_ref[a, b, pl.ds(lo, nr), pl.ds(0, j0), :] = (
                        jnp.zeros((nr, j0, gw), cdt))
                tail = Wh - (j0 + Wc)
                if tail > 0:
                    p_ref[a, b, pl.ds(lo, nr), pl.ds(j0 + Wc, tail), :] = (
                        jnp.zeros((nr, tail, gw), cdt))

        # ---- scatter h1 into the padded, phase-decomposed scratch ----
        if s == 1:
            # single big store (common case)
            p_ref[0, 0, pl.ds(1, H), pl.ds(1, W), :] = h1c.reshape(H, W, gw)
        else:
            for h in range(H):                       # fully static unroll
                rp = h + 1                           # padded row index
                a, i = rp % s, rp // s
                for p in range(s):                   # wrapper gave [ph0|ph1..]
                    b, j0 = (p + 1) % s, (p + 1) // s
                    seg = h1c[h * W + p * Wc:h * W + (p + 1) * Wc, :]
                    p_ref[a, b, i, pl.ds(j0, Wc), :] = seg

        # ---- stage 2: grouped 3x3 conv as 9 per-tap MXU accumulations ------
        # (no im2col slab: windows are read directly from p_ref, results
        #  accumulated in f32; same FLOPs, half the data movement, less VMEM)
        acc = None
        for kh in range(3):
            for kw in range(3):
                t = kh * 3 + kw
                win = p_ref[kh % s, kw % s,
                            pl.ds(kh // s, ho), pl.ds(kw // s, wo), :]
                c = jnp.dot(win.reshape(ho * wo, gw), w2_ref[t],
                            preferred_element_type=jnp.float32)
                acc = c if acc is None else acc + c
        # NOTE: h2 is rounded to the compute dtype before stage 3 (two rounding
        # steps in the bf16 path); fine for inference, exact in the f32 path.
        h2 = jnp.maximum(acc + b2_ref[...], 0.0).astype(cdt)

        # ---- stage 3: 1x1 conv + fused (b3 [+ bs]) bias + shortcut + ReLU ----
        y = jnp.dot(h2, w3_ref[...], preferred_element_type=jnp.float32)
        y = y + b3_ref[...]
        if conv_shortcut:
            # stride==1 reuses the already-loaded x tile (no extra HBM read)
            sc_in = r_ref[0] if need_r else x
            y = y + jnp.dot(sc_in, ws_ref[...], preferred_element_type=jnp.float32)
        else:
            y = y + x.astype(jnp.float32)            # identity residual
        o_ref[0] = jnp.maximum(y, 0.0)

    return kernel


# --------------------------------------------------------------------------
# pallas_call wrapper
# --------------------------------------------------------------------------
def _fused_resnext_call(x2d, r2d, w1, w2, w3, ws, b1, b2, b3,
                        *, H, W, stride, conv_shortcut, cdt):
    N, HW, cin = x2d.shape
    gw = w1.shape[1]
    cout = w3.shape[1]
    s = stride
    ho = (H - 1) // s + 1
    wo = (W - 1) // s + 1
    Hh = (H + 2 + s - 1) // s
    Wh = (W + 2 + s - 1) // s
    need_r = r2d is not None

    kernel = _make_kernel(H=H, W=W, stride=s, gw=gw,
                          conv_shortcut=conv_shortcut, need_r=need_r, cdt=cdt)

    in_specs = [pl.BlockSpec((1, HW, cin), lambda n: (n, 0, 0))]
    args = [x2d]
    if need_r:
        in_specs.append(pl.BlockSpec((1, ho * wo, cin), lambda n: (n, 0, 0)))
        args.append(r2d)
    in_specs += [pl.BlockSpec((cin, gw), lambda n: (0, 0)),
                 pl.BlockSpec((9, gw, gw), lambda n: (0, 0, 0)),
                 pl.BlockSpec((gw, cout), lambda n: (0, 0))]
    args += [w1, w2, w3]
    if conv_shortcut:
        in_specs.append(pl.BlockSpec((cin, cout), lambda n: (0, 0)))
        args.append(ws)
    in_specs += [pl.BlockSpec((1, gw), lambda n: (0, 0)),
                 pl.BlockSpec((1, gw), lambda n: (0, 0)),
                 pl.BlockSpec((1, cout), lambda n: (0, 0))]
    args += [b1, b2, b3]

    # Rough per-step VMEM budget (scratch + double-buffered tiles + weights),
    # clamped to stay inside v7x's 64 MiB/TC.
    isz = np.dtype(cdt).itemsize
    est = (s * s * Hh * Wh * gw * isz                      # p_ref scratch
           + 2 * HW * cin * isz                            # x tile, dbl-buffered
           + (2 * ho * wo * cin * isz if need_r else 0)    # residual tile
           + 2 * ho * wo * cout * 4                        # f32 output tile
           + (cin * gw + 9 * gw * gw + gw * cout
              + (cin * cout if conv_shortcut else 0)) * isz
           + (2 * gw + cout) * 4)
    vmem_limit = int(min(64 * 2 ** 20, max(16 * 2 ** 20, 2 * est)))

    return pl.pallas_call(
        kernel,
        out_shape=jax.ShapeDtypeStruct((N, ho * wo, cout), jnp.float32),
        grid=(N,),
        in_specs=in_specs,
        out_specs=pl.BlockSpec((1, ho * wo, cout), lambda n: (n, 0, 0)),
        scratch_shapes=[pltpu.VMEM((s, s, Hh, Wh, gw), cdt)],
        compiler_params=pltpu.CompilerParams(
            dimension_semantics=("parallel",),
            vmem_limit_bytes=vmem_limit),
    )(*args)


# --------------------------------------------------------------------------
# Parameter setup (deterministic, synthetic) and host-side weight prep
# --------------------------------------------------------------------------
def init_params(key, in_channels, out_channels, stride, cardinality=4, width=4):
    gw = cardinality * width
    ks = jax.random.split(key, 8)

    def conv_w(k, shape):  # OIHW, matches torch nn.Conv2d weight layout
        return (jax.random.normal(k, shape, jnp.float32) * 0.1).astype(jnp.float32)

    def bn_p(k, c):
        k1, k2, k3, k4 = jax.random.split(k, 4)
        gamma = jax.random.uniform(k1, (c,), jnp.float32, 0.5, 1.5)
        beta = jax.random.normal(k2, (c,), jnp.float32) * 0.1
        mean = jax.random.normal(k3, (c,), jnp.float32) * 0.1
        var = jax.random.uniform(k4, (c,), jnp.float32, 0.5, 1.5)
        return (gamma, beta, mean, var)

    p = {
        "w1": conv_w(ks[0], (gw, in_channels, 1, 1)),
        "bn1": bn_p(ks[1], gw),
        "w2": conv_w(ks[2], (gw, gw // cardinality, 3, 3)),
        "bn2": bn_p(ks[3], gw),
        "w3": conv_w(ks[4], (out_channels, gw, 1, 1)),
        "bn3": bn_p(ks[5], out_channels),
    }
    if stride != 1 or in_channels != out_channels:
        p["ws"] = conv_w(ks[6], (out_channels, in_channels, 1, 1))
        p["bns"] = bn_p(ks[7], out_channels)
    return p


def _fold_bn(bn):
    gamma, beta, mean, var = bn
    scale = gamma / jnp.sqrt(var + EPS)
    bias = beta - mean * scale
    return scale, bias


def _blockdiag_conv2_weight(w2, cardinality):
    """torch grouped-conv weight (Cg, Cg//card, 3, 3) -> block-diagonal
    (3, 3, Cin=Cg, Cout=Cg) weight (one (Cg,Cg) block-diag matrix per tap)."""
    cg, ipg = w2.shape[0], w2.shape[1]
    opg = cg // cardinality
    wbd = jnp.zeros((3, 3, cg, cg), jnp.float32)
    for g in range(cardinality):
        blk = w2[g * opg:(g + 1) * opg]            # (opg, ipg, 3, 3)
        blk = jnp.transpose(blk, (2, 3, 1, 0))     # (3, 3, ipg, opg)
        wbd = wbd.at[:, :, g * ipg:(g + 1) * ipg, g * opg:(g + 1) * opg].set(blk)
    return wbd


def resnext_block_forward(x_nchw, params, stride, cardinality,
                          compute_dtype=jnp.bfloat16):
    x = jnp.transpose(x_nchw, (0, 2, 3, 1)).astype(jnp.float32)   # NCHW -> NHWC
    N, H, W, cin = x.shape
    gw = params["w1"].shape[0]
    cout = params["w3"].shape[0]
    s = stride
    assert W % s == 0, "width must be divisible by stride"
    conv_shortcut = "ws" in params
    if not conv_shortcut:
        assert s == 1 and cin == cout, "identity shortcut needs stride=1, cin=cout"
    ho = (H - 1) // s + 1
    wo = (W - 1) // s + 1

    s1, b1 = _fold_bn(params["bn1"])
    s2, b2 = _fold_bn(params["bn2"])
    s3, b3 = _fold_bn(params["bn3"])

    # BN scale folded into the conv weights (cast to the MXU compute dtype);
    # biases stay f32.
    w1 = (params["w1"][:, :, 0, 0].T * s1[None, :]).astype(compute_dtype)
    wbd = _blockdiag_conv2_weight(params["w2"], cardinality)          # (3,3,gw,gw)
    w2 = (wbd * s2[None, None, None, :]).reshape(9, gw, gw).astype(compute_dtype)
    w3 = (params["w3"][:, :, 0, 0].T * s3[None, :]).astype(compute_dtype)  # (gw,cout)
    b1p = b1.reshape(1, gw)
    b2p = b2.reshape(1, gw)

    need_r = conv_shortcut and s != 1
    if conv_shortcut:
        ss_, bs_ = _fold_bn(params["bns"])
        ws = (params["ws"][:, :, 0, 0].T * ss_[None, :]).astype(compute_dtype)
        b3p = (b3 + bs_).reshape(1, cout)        # fold conv3 and shortcut biases
    else:
        ws = None
        b3p = b3.reshape(1, cout)

    # De-interleave columns into [phase0 | phase1 | ...] so the kernel only
    # ever needs contiguous (unstrided) loads/stores for the strided 3x3 conv.
    # Shipped in the compute dtype (bf16 by default) -> half the HBM read bytes.
    if s == 1:
        x2d = x.reshape(N, H * W, cin).astype(compute_dtype)
    else:
        xk = jnp.concatenate([x[:, :, p::s, :] for p in range(s)], axis=2)
        x2d = xk.reshape(N, H * W, cin).astype(compute_dtype)

    r2d = None
    if need_r:   # strided conv-shortcut input (stride==1 paths reuse x in-kernel)
        r2d = x[:, ::s, ::s, :].reshape(N, ho * wo, cin).astype(compute_dtype)

    out = _fused_resnext_call(x2d, r2d, w1, w2, w3, ws, b1p, b2p, b3p,
                              H=H, W=W, stride=s,
                              conv_shortcut=conv_shortcut, cdt=compute_dtype)
    out = out.reshape(N, ho, wo, cout)
    return jnp.transpose(out, (0, 3, 1, 2))                        # NHWC -> NCHW


# --------------------------------------------------------------------------
# Pure-JAX reference (mirrors the PyTorch module, eval-mode BN)
# --------------------------------------------------------------------------
def reference_forward(x_nchw, params, stride, cardinality):
    def conv(x, w, s=1, pad=((0, 0), (0, 0)), groups=1):
        return jax.lax.conv_general_dilated(
            x, w, (s, s), pad,
            dimension_numbers=("NCHW", "OIHW", "NCHW"),
            feature_group_count=groups)

    def bn(x, bnp):
        gamma, beta, mean, var = bnp
        inv = (gamma / jnp.sqrt(var + EPS))[None, :, None, None]
        return (x - mean[None, :, None, None]) * inv + beta[None, :, None, None]

    relu = lambda v: jnp.maximum(v, 0.0)
    out = relu(bn(conv(x_nchw, params["w1"]), params["bn1"]))
    out = relu(bn(conv(out, params["w2"], s=stride, pad=((1, 1), (1, 1)),
                       groups=cardinality), params["bn2"]))
    out = bn(conv(out, params["w3"]), params["bn3"])
    if "ws" in params:
        sc = bn(conv(x_nchw, params["ws"], s=stride), params["bns"])
    else:
        sc = x_nchw
    return relu(out + sc)


# --------------------------------------------------------------------------
if __name__ == "__main__":
    key = jax.random.PRNGKey(0)
    N, H, W = 2, 16, 16
    cardinality, width = 4, 4
    # (in_channels, out_channels, stride): conv-shortcut, identity, stride=2
    configs = [(4, 8, 1), (8, 8, 1), (4, 8, 2)]

    for cin, cout, stride in configs:
        key, kx, kp = jax.random.split(key, 3)
        x = jax.random.normal(kx, (N, cin, H, W), jnp.float32)
        params = init_params(kp, cin, cout, stride, cardinality, width)
        ref = reference_forward(x, params, stride, cardinality)

        # f32 compute path: tight correctness check of the fused kernel.
        out32 = resnext_block_forward(x, params, stride, cardinality,
                                      compute_dtype=jnp.float32)
        out32 = jax.block_until_ready(out32)
        np.testing.assert_allclose(np.asarray(out32), np.asarray(ref),
                                   rtol=5e-3, atol=5e-3)

        # default bf16 MXU path: looser tolerance (bf16 input/weight rounding).
        out16 = resnext_block_forward(x, params, stride, cardinality)
        out16 = jax.block_until_ready(out16)
        np.testing.assert_allclose(np.asarray(out16), np.asarray(ref),
                                   rtol=5e-2, atol=5e-2)

    print("KERNEL_OK")
</pallas_src>

<mosaic_0001>
module attributes {stable_mosaic.version = 11 : i64} {
  func.func @kernel(%arg0: i32, %arg1: memref<1x256x4xf32, #tpu.memory_space<vmem>>, %arg2: memref<4x16xf32, #tpu.memory_space<vmem>>, %arg3: memref<9x16x16xf32, #tpu.memory_space<vmem>>, %arg4: memref<16x8xf32, #tpu.memory_space<vmem>>, %arg5: memref<4x8xf32, #tpu.memory_space<vmem>>, %arg6: memref<1x16xf32, #tpu.memory_space<vmem>>, %arg7: memref<1x16xf32, #tpu.memory_space<vmem>>, %arg8: memref<1x8xf32, #tpu.memory_space<vmem>>, %arg9: memref<1x256x8xf32, #tpu.memory_space<vmem>>, %arg10: memref<1x1x18x18x16xf32, #tpu.memory_space<vmem>>) attributes {dimension_semantics = [#tpu.dimension_semantics<parallel>], iteration_bounds = array<i64: 2>, scalar_prefetch = 0 : i64, scratch_operands = 1 : i64, tpu.core_type = #tpu.core_type<tc>, window_params = [{transform_indices = @transform_0, window_bounds = array<i64: 1, 256, 4>}, {pipeline_mode = #tpu.pipeline_mode<synchronous>, transform_indices = @transform_1, window_bounds = array<i64: 4, 16>}, {pipeline_mode = #tpu.pipeline_mode<synchronous>, transform_indices = @transform_2, window_bounds = array<i64: 9, 16, 16>}, {pipeline_mode = #tpu.pipeline_mode<synchronous>, transform_indices = @transform_3, window_bounds = array<i64: 16, 8>}, {pipeline_mode = #tpu.pipeline_mode<synchronous>, transform_indices = @transform_4, window_bounds = array<i64: 4, 8>}, {pipeline_mode = #tpu.pipeline_mode<synchronous>, transform_indices = @transform_5, window_bounds = array<i64: 1, 16>}, {pipeline_mode = #tpu.pipeline_mode<synchronous>, transform_indices = @transform_6, window_bounds = array<i64: 1, 16>}, {pipeline_mode = #tpu.pipeline_mode<synchronous>, transform_indices = @transform_7, window_bounds = array<i64: 1, 8>}, {transform_indices = @transform_8, window_bounds = array<i64: 1, 256, 8>}]} {
    %c0 = arith.constant 0 : index
    %c0_0 = arith.constant 0 : index
    %c0_1 = arith.constant 0 : index
    %0 = vector.load %arg1[%c0, %c0_0, %c0_1] : memref<1x256x4xf32, #tpu.memory_space<vmem>>, vector<1x256x4xf32>
    %1 = vector.shape_cast %0 : vector<1x256x4xf32> to vector<256x4xf32>
    %c0_2 = arith.constant 0 : index
    %c0_3 = arith.constant 0 : index
    %2 = vector.load %arg2[%c0_2, %c0_3] : memref<4x16xf32, #tpu.memory_space<vmem>>, vector<4x16xf32>
    %cst = arith.constant dense<0.000000e+00> : vector<256x16xf32>
    %3 = tpu.matmul %1, %2, %cst {dimension_numbers = #tpu.dot_dimension_numbers<[1], [0], [0], [1], [0, 0, 1, 1], [], []>} : vector<256x4xf32>, vector<4x16xf32>, vector<256x16xf32> -> vector<256x16xf32>
    %c0_4 = arith.constant 0 : index
    %c0_5 = arith.constant 0 : index
    %4 = vector.load %arg6[%c0_4, %c0_5] : memref<1x16xf32, #tpu.memory_space<vmem>>, vector<1x16xf32>
    %5 = vector.broadcast %4 : vector<1x16xf32> to vector<256x16xf32>
    %6 = arith.addf %3, %5 : vector<256x16xf32>
    %cst_6 = arith.constant 0.000000e+00 : f32
    %7 = vector.broadcast %cst_6 : f32 to vector<256x16xf32>
    %8 = arith.maximumf %6, %7 : vector<256x16xf32>
    %cst_7 = arith.constant 0.000000e+00 : f32
    %9 = vector.broadcast %cst_7 : f32 to vector<1x18x16xf32>
    %c0_8 = arith.constant 0 : index
    %c0_9 = arith.constant 0 : index
    %c0_10 = arith.constant 0 : index
    %c0_11 = arith.constant 0 : index
    %c0_12 = arith.constant 0 : index
    %10 = vector.load %arg10[%c0_8, %c0_9, %c0_10, %c0_11, %c0_12] : memref<1x1x18x18x16xf32, #tpu.memory_space<vmem>>, vector<1x1x1x18x16xf32>
    %11 = vector.shape_cast %10 : vector<1x1x1x18x16xf32> to vector<1x18x16xf32>
    %12 = vector.shape_cast %9 : vector<1x18x16xf32> to vector<1x1x1x18x16xf32>
    tpu.vector_store %arg10[%c0_8, %c0_9, %c0_10, %c0_11, %c0_12], %12 {strides = array<i32>} : memref<1x1x18x18x16xf32, #tpu.memory_space<vmem>>, vector<1x1x1x18x16xf32>,
    %cst_13 = arith.constant 0.000000e+00 : f32
    %13 = vector.broadcast %cst_13 : f32 to vector<1x18x16xf32>
    %c0_14 = arith.constant 0 : index
    %c0_15 = arith.constant 0 : index
    %c17 = arith.constant 17 : index
    %c0_16 = arith.constant 0 : index
    %c0_17 = arith.constant 0 : index
    %14 = vector.load %arg10[%c0_14, %c0_15, %c17, %c0_16, %c0_17] : memref<1x1x18x18x16xf32, #tpu.memory_space<vmem>>, vector<1x1x1x18x16xf32>
    %15 = vector.shape_cast %14 : vector<1x1x1x18x16xf32> to vector<1x18x16xf32>
    %16 = vector.shape_cast %13 : vector<1x18x16xf32> to vector<1x1x1x18x16xf32>
    tpu.vector_store %arg10[%c0_14, %c0_15, %c17, %c0_16, %c0_17], %16 {strides = array<i32>} : memref<1x1x18x18x16xf32, #tpu.memory_space<vmem>>, vector<1x1x1x18x16xf32>,
    %cst_18 = arith.constant 0.000000e+00 : f32
    %17 = vector.broadcast %cst_18 : f32 to vector<16x1x16xf32>
    %c0_19 = arith.constant 0 : index
    %c0_20 = arith.constant 0 : index
    %c1 = arith.constant 1 : index
    %c0_21 = arith.constant 0 : index
    %c0_22 = arith.constant 0 : index
    %18 = vector.load %arg10[%c0_19, %c0_20, %c1, %c0_21, %c0_22] : memref<1x1x18x18x16xf32, #tpu.memory_space<vmem>>, vector<1x1x16x1x16xf32>
    %19 = vector.shape_cast %18 : vector<1x1x16x1x16xf32> to vector<16x1x16xf32>
    %20 = vector.shape_cast %17 : vector<16x1x16xf32> to vector<1x1x16x1x16xf32>
    tpu.vector_store %arg10[%c0_19, %c0_20, %c1, %c0_21, %c0_22], %20 {strides = array<i32>} : memref<1x1x18x18x16xf32, #tpu.memory_space<vmem>>, vector<1x1x16x1x16xf32>,
    %cst_23 = arith.constant 0.000000e+00 : f32
    %21 = vector.broadcast %cst_23 : f32 to vector<16x1x16xf32>
    %c0_24 = arith.constant 0 : index
    %c0_25 = arith.constant 0 : index
    %c1_26 = arith.constant 1 : index
    %c17_27 = arith.constant 17 : index
    %c0_28 = arith.constant 0 : index
    %22 = vector.load %arg10[%c0_24, %c0_25, %c1_26, %c17_27, %c0_28] : memref<1x1x18x18x16xf32, #tpu.memory_space<vmem>>, vector<1x1x16x1x16xf32>
    %23 = vector.shape_cast %22 : vector<1x1x16x1x16xf32> to vector<16x1x16xf32>
    %24 = vector.shape_cast %21 : vector<16x1x16xf32> to vector<1x1x16x1x16xf32>
    tpu.vector_store %arg10[%c0_24, %c0_25, %c1_26, %c17_27, %c0_28], %24 {strides = array<i32>} : memref<1x1x18x18x16xf32, #tpu.memory_space<vmem>>, vector<1x1x16x1x16xf32>,
    %25 = vector.shape_cast %8 : vector<256x16xf32> to vector<16x16x16xf32>
    %c0_29 = arith.constant 0 : index
    %c0_30 = arith.constant 0 : index
    %c1_31 = arith.constant 1 : index
    %c1_32 = arith.constant 1 : index
    %c0_33 = arith.constant 0 : index
    %26 = vector.load %arg10[%c0_29, %c0_30, %c1_31, %c1_32, %c0_33] : memref<1x1x18x18x16xf32, #tpu.memory_space<vmem>>, vector<1x1x16x16x16xf32>
    %27 = vector.shape_cast %26 : vector<1x1x16x16x16xf32> to vector<16x16x16xf32>
    %28 = vector.shape_cast %25 : vector<16x16x16xf32> to vector<1x1x16x16x16xf32>
    tpu.vector_store %arg10[%c0_29, %c0_30, %c1_31, %c1_32, %c0_33], %28 {strides = array<i32>} : memref<1x1x18x18x16xf32, #tpu.memory_space<vmem>>, vector<1x1x16x16x16xf32>,
    %c0_34 = arith.constant 0 : index
    %c0_35 = arith.constant 0 : index
    %c0_36 = arith.constant 0 : index
    %c0_37 = arith.constant 0 : index
    %c0_38 = arith.constant 0 : index
    %29 = vector.load %arg10[%c0_34, %c0_35, %c0_36, %c0_37, %c0_38] : memref<1x1x18x18x16xf32, #tpu.memory_space<vmem>>, vector<1x1x16x16x16xf32>
    %30 = vector.shape_cast %29 : vector<1x1x16x16x16xf32> to vector<16x16x16xf32>
    %31 = vector.shape_cast %30 : vector<16x16x16xf32> to vector<256x16xf32>
    %c0_39 = arith.constant 0 : index
    %c0_40 = arith.constant 0 : index
    %c0_41 = arith.constant 0 : index
    %32 = vector.load %arg3[%c0_39, %c0_40, %c0_41] : memref<9x16x16xf32, #tpu.memory_space<vmem>>, vector<1x16x16xf32>
    %33 = vector.shape_cast %32 : vector<1x16x16xf32> to vector<16x16xf32>
    %cst_42 = arith.constant dense<0.000000e+00> : vector<256x16xf32>
    %34 = tpu.matmul %31, %33, %cst_42 {dimension_numbers = #tpu.dot_dimension_numbers<[1], [0], [0], [1], [0, 0, 1, 1], [], []>} : vector<256x16xf32>, vector<16x16xf32>, vector<256x16xf32> -> vector<256x16xf32>
    %c0_43 = arith.constant 0 : index
    %c0_44 = arith.constant 0 : index
    %c0_45 = arith.constant 0 : index
    %c1_46 = arith.constant 1 : index
    %c0_47 = arith.constant 0 : index
    %35 = vector.load %arg10[%c0_43, %c0_44, %c0_45, %c1_46, %c0_47] : memref<1x1x18x18x16xf32, #tpu.memory_space<vmem>>, vector<1x1x16x16x16xf32>
    %36 = vector.shape_cast %35 : vector<1x1x16x16x16xf32> to vector<16x16x16xf32>
    %37 = vector.shape_cast %36 : vector<16x16x16xf32> to vector<256x16xf32>
    %c1_48 = arith.constant 1 : index
    %c0_49 = arith.constant 0 : index
    %c0_50 = arith.constant 0 : index
    %38 = vector.load %arg3[%c1_48, %c0_49, %c0_50] : memref<9x16x16xf32, #tpu.memory_space<vmem>>, vector<1x16x16xf32>
    %39 = vector.shape_cast %38 : vector<1x16x16xf32> to vector<16x16xf32>
    %cst_51 = arith.constant dense<0.000000e+00> : vector<256x16xf32>
    %40 = tpu.matmul %37, %39, %cst_51 {dimension_numbers = #tpu.dot_dimension_numbers<[1], [0], [0], [1], [0, 0, 1, 1], [], []>} : vector<256x16xf32>, vector<16x16xf32>, vector<256x16xf32> -> vector<256x16xf32>
    %41 = arith.addf %34, %40 : vector<256x16xf32>
    %c0_52 = arith.constant 0 : index
    %c0_53 = arith.constant 0 : index
    %c0_54 = arith.constant 0 : index
    %c2 = arith.constant 2 : index
    %c0_55 = arith.constant 0 : index
    %42 = vector.load %arg10[%c0_52, %c0_53, %c0_54, %c2, %c0_55] : memref<1x1x18x18x16xf32, #tpu.memory_space<vmem>>, vector<1x1x16x16x16xf32>
    %43 = vector.shape_cast %42 : vector<1x1x16x16x16xf32> to vector<16x16x16xf32>
    %44 = vector.shape_cast %43 : vector<16x16x16xf32> to vector<256x16xf32>
    %c2_56 = arith.constant 2 : index
    %c0_57 = arith.constant 0 : index
    %c0_58 = arith.constant 0 : index
    %45 = vector.load %arg3[%c2_56, %c0_57, %c0_58] : memref<9x16x16xf32, #tpu.memory_space<vmem>>, vector<1x16x16xf32>
    %46 = vector.shape_cast %45 : vector<1x16x16xf32> to vector<16x16xf32>
    %cst_59 = arith.constant dense<0.000000e+00> : vector<256x16xf32>
    %47 = tpu.matmul %44, %46, %cst_59 {dimension_numbers = #tpu.dot_dimension_numbers<[1], [0], [0], [1], [0, 0, 1, 1], [], []>} : vector<256x16xf32>, vector<16x16xf32>, vector<256x16xf32> -> vector<256x16xf32>
    %48 = arith.addf %41, %47 : vector<256x16xf32>
    %c0_60 = arith.constant 0 : index
    %c0_61 = arith.constant 0 : index
    %c1_62 = arith.constant 1 : index
    %c0_63 = arith.constant 0 : index
    %c0_64 = arith.constant 0 : index
    %49 = vector.load %arg10[%c0_60, %c0_61, %c1_62, %c0_63, %c0_64] : memref<1x1x18x18x16xf32, #tpu.memory_space<vmem>>, vector<1x1x16x16x16xf32>
    %50 = vector.shape_cast %49 : vector<1x1x16x16x16xf32> to vector<16x16x16xf32>
    %51 = vector.shape_cast %50 : vector<16x16x16xf32> to vector<256x16xf32>
    %c3 = arith.constant 3 : index
    %c0_65 = arith.constant 0 : index
    %c0_66 = arith.constant 0 : index
    %52 = vector.load %arg3[%c3, %c0_65, %c0_66] : memref<9x16x16xf32, #tpu.memory_space<vmem>>, vector<1x16x16xf32>
    %53 = vector.shape_cast %52 : vector<1x16x16xf32> to vector<16x16xf32>
    %cst_67 = arith.constant dense<0.000000e+00> : vector<256x16xf32>
    %54 = tpu.matmul %51, %53, %cst_67 {dimension_numbers = #tpu.dot_dimension_numbers<[1], [0], [0], [1], [0, 0, 1, 1], [], []>} : vector<256x16xf32>, vector<16x16xf32>, vector<256x16xf32> -> vector<256x16xf32>
    %55 = arith.addf %48, %54 : vector<256x16xf32>
    %c0_68 = arith.constant 0 : index
    %c0_69 = arith.constant 0 : index
    %c1_70 = arith.constant 1 : index
    %c1_71 = arith.constant 1 : index
    %c0_72 = arith.constant 0 : index
    %56 = vector.load %arg10[%c0_68, %c0_69, %c1_70, %c1_71, %c0_72] : memref<1x1x18x18x16xf32, #tpu.memory_space<vmem>>, vector<1x1x16x16x16xf32>
    %57 = vector.shape_cast %56 : vector<1x1x16x16x16xf32> to vector<16x16x16xf32>
    %58 = vector.shape_cast %57 : vector<16x16x16xf32> to vector<256x16xf32>
    %c4 = arith.constant 4 : index
    %c0_73 = arith.constant 0 : index
    %c0_74 = arith.constant 0 : index
    %59 = vector.load %arg3[%c4, %c0_73, %c0_74] : memref<9x16x16xf32, #tpu.memory_space<vmem>>, vector<1x16x16xf32>
    %60 = vector.shape_cast %59 : vector<1x16x16xf32> to vector<16x16xf32>
    %cst_75 = arith.constant dense<0.000000e+00> : vector<256x16xf32>
    %61 = tpu.matmul %58, %60, %cst_75 {dimension_numbers = #tpu.dot_dimension_numbers<[1], [0], [0], [1], [0, 0, 1, 1], [], []>} : vector<256x16xf32>, vector<16x16xf32>, vector<256x16xf32> -> vector<256x16xf32>
    %62 = arith.addf %55, %61 : vector<256x16xf32>
    %c0_76 = arith.constant 0 : index
    %c0_77 = arith.constant 0 : index
    %c1_78 = arith.constant 1 : index
    %c2_79 = arith.constant 2 : index
    %c0_80 = arith.constant 0 : index
    %63 = vector.load %arg10[%c0_76, %c0_77, %c1_78, %c2_79, %c0_80] : memref<1x1x18x18x16xf32, #tpu.memory_space<vmem>>, vector<1x1x16x16x16xf32>
    %64 = vector.shape_cast %63 : vector<1x1x16x16x16xf32> to vector<16x16x16xf32>
    %65 = vector.shape_cast %64 : vector<16x16x16xf32> to vector<256x16xf32>
    %c5 = arith.constant 5 : index
    %c0_81 = arith.constant 0 : index
    %c0_82 = arith.constant 0 : index
    %66 = vector.load %arg3[%c5, %c0_81, %c0_82] : memref<9x16x16xf32, #tpu.memory_space<vmem>>, vector<1x16x16xf32>
    %67 = vector.shape_cast %66 : vector<1x16x16xf32> to vector<16x16xf32>
    %cst_83 = arith.constant dense<0.000000e+00> : vector<256x16xf32>
    %68 = tpu.matmul %65, %67, %cst_83 {dimension_numbers = #tpu.dot_dimension_numbers<[1], [0], [0], [1], [0, 0, 1, 1], [], []>} : vector<256x16xf32>, vector<16x16xf32>, vector<256x16xf32> -> vector<256x16xf32>
    %69 = arith.addf %62, %68 : vector<256x16xf32>
    %c0_84 = arith.constant 0 : index
    %c0_85 = arith.constant 0 : index
    %c2_86 = arith.constant 2 : index
    %c0_87 = arith.constant 0 : index
    %c0_88 = arith.constant 0 : index
    %70 = vector.load %arg10[%c0_84, %c0_85, %c2_86, %c0_87, %c0_88] : memref<1x1x18x18x16xf32, #tpu.memory_space<vmem>>, vector<1x1x16x16x16xf32>
    %71 = vector.shape_cast %70 : vector<1x1x16x16x16xf32> to vector<16x16x16xf32>
    %72 = vector.shape_cast %71 : vector<16x16x16xf32> to vector<256x16xf32>
    %c6 = arith.constant 6 : index
    %c0_89 = arith.constant 0 : index
    %c0_90 = arith.constant 0 : index
    %73 = vector.load %arg3[%c6, %c0_89, %c0_90] : memref<9x16x16xf32, #tpu.memory_space<vmem>>, vector<1x16x16xf32>
    %74 = vector.shape_cast %73 : vector<1x16x16xf32> to vector<16x16xf32>
    %cst_91 = arith.constant dense<0.000000e+00> : vector<256x16xf32>
    %75 = tpu.matmul %72, %74, %cst_91 {dimension_numbers = #tpu.dot_dimension_numbers<[1], [0], [0], [1], [0, 0, 1, 1], [], []>} : vector<256x16xf32>, vector<16x16xf32>, vector<256x16xf32> -> vector<256x16xf32>
    %76 = arith.addf %69, %75 : vector<256x16xf32>
    %c0_92 = arith.constant 0 : index
    %c0_93 = arith.constant 0 : index
    %c2_94 = arith.constant 2 : index
    %c1_95 = arith.constant 1 : index
    %c0_96 = arith.constant 0 : index
    %77 = vector.load %arg10[%c0_92, %c0_93, %c2_94, %c1_95, %c0_96] : memref<1x1x18x18x16xf32, #tpu.memory_space<vmem>>, vector<1x1x16x16x16xf32>
    %78 = vector.shape_cast %77 : vector<1x1x16x16x16xf32> to vector<16x16x16xf32>
    %79 = vector.shape_cast %78 : vector<16x16x16xf32> to vector<256x16xf32>
    %c7 = arith.constant 7 : index
    %c0_97 = arith.constant 0 : index
    %c0_98 = arith.constant 0 : index
    %80 = vector.load %arg3[%c7, %c0_97, %c0_98] : memref<9x16x16xf32, #tpu.memory_space<vmem>>, vector<1x16x16xf32>
    %81 = vector.shape_cast %80 : vector<1x16x16xf32> to vector<16x16xf32>
    %cst_99 = arith.constant dense<0.000000e+00> : vector<256x16xf32>
    %82 = tpu.matmul %79, %81, %cst_99 {dimension_numbers = #tpu.dot_dimension_numbers<[1], [0], [0], [1], [0, 0, 1, 1], [], []>} : vector<256x16xf32>, vector<16x16xf32>, vector<256x16xf32> -> vector<256x16xf32>
    %83 = arith.addf %76, %82 : vector<256x16xf32>
    %c0_100 = arith.constant 0 : index
    %c0_101 = arith.constant 0 : index
    %c2_102 = arith.constant 2 : index
    %c2_103 = arith.constant 2 : index
    %c0_104 = arith.constant 0 : index
    %84 = vector.load %arg10[%c0_100, %c0_101, %c2_102, %c2_103, %c0_104] : memref<1x1x18x18x16xf32, #tpu.memory_space<vmem>>, vector<1x1x16x16x16xf32>
    %85 = vector.shape_cast %84 : vector<1x1x16x16x16xf32> to vector<16x16x16xf32>
    %86 = vector.shape_cast %85 : vector<16x16x16xf32> to vector<256x16xf32>
    %c8 = arith.constant 8 : index
    %c0_105 = arith.constant 0 : index
    %c0_106 = arith.constant 0 : index
    %87 = vector.load %arg3[%c8, %c0_105, %c0_106] : memref<9x16x16xf32, #tpu.memory_space<vmem>>, vector<1x16x16xf32>
    %88 = vector.shape_cast %87 : vector<1x16x16xf32> to vector<16x16xf32>
    %cst_107 = arith.constant dense<0.000000e+00> : vector<256x16xf32>
    %89 = tpu.matmul %86, %88, %cst_107 {dimension_numbers = #tpu.dot_dimension_numbers<[1], [0], [0], [1], [0, 0, 1, 1], [], []>} : vector<256x16xf32>, vector<16x16xf32>, vector<256x16xf32> -> vector<256x16xf32>
    %90 = arith.addf %83, %89 : vector<256x16xf32>
    %c0_108 = arith.constant 0 : index
    %c0_109 = arith.constant 0 : index
    %91 = vector.load %arg7[%c0_108, %c0_109] : memref<1x16xf32, #tpu.memory_space<vmem>>, vector<1x16xf32>
    %92 = vector.broadcast %91 : vector<1x16xf32> to vector<256x16xf32>
    %93 = arith.addf %90, %92 : vector<256x16xf32>
    %cst_110 = arith.constant 0.000000e+00 : f32
    %94 = vector.broadcast %cst_110 : f32 to vector<256x16xf32>
    %95 = arith.maximumf %93, %94 : vector<256x16xf32>
    %c0_111 = arith.constant 0 : index
    %c0_112 = arith.constant 0 : index
    %96 = vector.load %arg4[%c0_111, %c0_112] : memref<16x8xf32, #tpu.memory_space<vmem>>, vector<16x8xf32>
    %cst_113 = arith.constant dense<0.000000e+00> : vector<256x8xf32>
    %97 = tpu.matmul %95, %96, %cst_113 {dimension_numbers = #tpu.dot_dimension_numbers<[1], [0], [0], [1], [0, 0, 1, 1], [], []>} : vector<256x16xf32>, vector<16x8xf32>, vector<256x8xf32> -> vector<256x8xf32>
    %c0_114 = arith.constant 0 : index
    %c0_115 = arith.constant 0 : index
    %98 = vector.load %arg8[%c0_114, %c0_115] : memref<1x8xf32, #tpu.memory_space<vmem>>, vector<1x8xf32>
    %99 = vector.broadcast %98 : vector<1x8xf32> to vector<256x8xf32>
    %100 = arith.addf %97, %99 : vector<256x8xf32>
    %c0_116 = arith.constant 0 : index
    %c0_117 = arith.constant 0 : index
    %101 = vector.load %arg5[%c0_116, %c0_117] : memref<4x8xf32, #tpu.memory_space<vmem>>, vector<4x8xf32>
    %cst_118 = arith.constant dense<0.000000e+00> : vector<256x8xf32>
    %102 = tpu.matmul %1, %101, %cst_118 {dimension_numbers = #tpu.dot_dimension_numbers<[1], [0], [0], [1], [0, 0, 1, 1], [], []>} : vector<256x4xf32>, vector<4x8xf32>, vector<256x8xf32> -> vector<256x8xf32>
    %103 = arith.addf %100, %102 : vector<256x8xf32>
    %cst_119 = arith.constant 0.000000e+00 : f32
    %104 = vector.broadcast %cst_119 : f32 to vector<256x8xf32>
    %105 = arith.maximumf %103, %104 : vector<256x8xf32>
    %c0_120 = arith.constant 0 : index
    %c0_121 = arith.constant 0 : index
    %c0_122 = arith.constant 0 : index
    %106 = vector.load %arg9[%c0_120, %c0_121, %c0_122] : memref<1x256x8xf32, #tpu.memory_space<vmem>>, vector<1x256x8xf32>
    %107 = vector.shape_cast %106 : vector<1x256x8xf32> to vector<256x8xf32>
    %108 = vector.shape_cast %105 : vector<256x8xf32> to vector<1x256x8xf32>
    tpu.vector_store %arg9[%c0_120, %c0_121, %c0_122], %108 {strides = array<i32>} : memref<1x256x8xf32, #tpu.memory_space<vmem>>, vector<1x256x8xf32>,
    return
  }
  func.func @transform_0(%arg0: i32) -> (i32, i32, i32) {
    %c0_i32 = arith.constant 0 : i32
    %c0_i32_0 = arith.constant 0 : i32
    %c0_i32_1 = arith.constant 0 : i32
    return %arg0, %c0_i32, %c0_i32_0 : i32, i32, i32
  }
  func.func @transform_1(%arg0: i32) -> (i32, i32) {
    %c0_i32 = arith.constant 0 : i32
    %c0_i32_0 = arith.constant 0 : i32
    %c0_i32_1 = arith.constant 0 : i32
    return %c0_i32, %c0_i32_0 : i32, i32
  }
  func.func @transform_2(%arg0: i32) -> (i32, i32, i32) {
    %c0_i32 = arith.constant 0 : i32
    %c0_i32_0 = arith.constant 0 : i32
    %c0_i32_1 = arith.constant 0 : i32
    %c0_i32_2 = arith.constant 0 : i32
    return %c0_i32, %c0_i32_0, %c0_i32_1 : i32, i32, i32
  }
  func.func @transform_3(%arg0: i32) -> (i32, i32) {
    %c0_i32 = arith.constant 0 : i32
    %c0_i32_0 = arith.constant 0 : i32
    %c0_i32_1 = arith.constant 0 : i32
    return %c0_i32, %c0_i32_0 : i32, i32
  }
  func.func @transform_4(%arg0: i32) -> (i32, i32) {
    %c0_i32 = arith.constant 0 : i32
    %c0_i32_0 = arith.constant 0 : i32
    %c0_i32_1 = arith.constant 0 : i32
    return %c0_i32, %c0_i32_0 : i32, i32
  }
  func.func @transform_5(%arg0: i32) -> (i32, i32) {
    %c0_i32 = arith.constant 0 : i32
    %c0_i32_0 = arith.constant 0 : i32
    %c0_i32_1 = arith.constant 0 : i32
    return %c0_i32, %c0_i32_0 : i32, i32
  }
  func.func @transform_6(%arg0: i32) -> (i32, i32) {
    %c0_i32 = arith.constant 0 : i32
    %c0_i32_0 = arith.constant 0 : i32
    %c0_i32_1 = arith.constant 0 : i32
    return %c0_i32, %c0_i32_0 : i32, i32
  }
  func.func @transform_7(%arg0: i32) -> (i32, i32) {
    %c0_i32 = arith.constant 0 : i32
    %c0_i32_0 = arith.constant 0 : i32
    %c0_i32_1 = arith.constant 0 : i32
    return %c0_i32, %c0_i32_0 : i32, i32
  }
  func.func @transform_8(%arg0: i32) -> (i32, i32, i32) {
    %c0_i32 = arith.constant 0 : i32
    %c0_i32_0 = arith.constant 0 : i32
    %c0_i32_1 = arith.constant 0 : i32
    return %arg0, %c0_i32, %c0_i32_0 : i32, i32, i32
  }
}

</mosaic_0001>

<llo_original>
// kernel: tpu_custom_call.1
$region0: #{tpu_custom_call.1}
  #allocation0 [shape = 'u32[]', space=smem, size = 0x4, offset = 0x4, fixed_abs, tag = 'smem constant byte address 0x4 - core index']
  #allocation1 [shape = 'u32[144,128]{1,0:T(1,128)}', space=vmem, size = 0x12000, scoped, tag = 'internal scratch']
  #allocation2 [shape = 'f32[1,1,18,18,16]{4,3,2,1,0:T(8,128)}', space=vmem, size = 0x36000, scoped, tag = 'scratch operand']
  %s0 = inlined_call_operand.vmem [shape: f32[2,256,4], index: 0, kind: input, shape index: {}]
  %s1 = inlined_call_operand.vmem [shape: f32[4,16], index: 1, kind: input, shape index: {}]
  %s2 = inlined_call_operand.vmem [shape: f32[9,16,16], index: 2, kind: input, shape index: {}]
  %s3 = inlined_call_operand.vmem [shape: f32[16,8], index: 3, kind: input, shape index: {}]
  %s4 = inlined_call_operand.vmem [shape: f32[4,8], index: 4, kind: input, shape index: {}]
  %s5 = inlined_call_operand.vmem [shape: f32[1,16], index: 5, kind: input, shape index: {}]
  %s6 = inlined_call_operand.vmem [shape: f32[1,16], index: 6, kind: input, shape index: {}]
  %s7 = inlined_call_operand.vmem [shape: f32[1,8], index: 7, kind: input, shape index: {}]
  %s8 = inlined_call_operand.vmem [shape: f32[2,256,8], index: 8, kind: output, shape index: {}]
  %s9 = sld [smem:[#allocation0]]
  $region65: #{tpu_custom_call.1} parent=0
    _
  %s11 = ssub.s32 1, %s9
  %s12 = scalar_select 0, %s11, %s9
  loop: start=0, step=1, limit=4
  $region2: #{tpu_custom_call.1} parent=0 // loop_pre_header
    _
  $region3: #{tpu_custom_call.1} parent=0 // loop_header
    %s14 = sphi 0, %s18
    %p15 = scmp.ge.s32.totalorder %s14, 4
    %s24 = sphi 0, %s26
    %s27 = sphi 0, %s24
    %s28 = sphi 0, %s27
    %s44 = sphi 0, %s28
    %s48 = sphi 0, %s48
    %s50 = sphi 0, %s48
    %s51 = sphi 0, %s50
    %s65 = sphi 0, %s51
    %s69 = sphi 0, %s69
    %s71 = sphi 0, %s69
    %s72 = sphi 0, %s71
    %s86 = sphi 0, %s72
    %s90 = sphi 0, %s90
    %s92 = sphi 0, %s90
    %s93 = sphi 0, %s92
    %s107 = sphi 0, %s93
    %s111 = sphi 0, %s111
    %s113 = sphi 0, %s111
    %s114 = sphi 0, %s113
    %s128 = sphi 0, %s114
    %s132 = sphi 0, %s132
    %s134 = sphi 0, %s132
    %s135 = sphi 0, %s134
    %s149 = sphi 0, %s135
    %s153 = sphi 0, %s153
    %s155 = sphi 0, %s153
    %s156 = sphi 0, %s155
    %s170 = sphi 0, %s156
    %s174 = sphi 0, %s174
    %s176 = sphi 0, %s174
    %s177 = sphi 0, %s176
    %s191 = sphi 0, %s177
    %s197 = sphi 0, %s199
    %s200 = sphi 0, %s197
    %s201 = sphi 0, %s200
    %s217 = sphi 0, %s201
  $region4: #{tpu_custom_call.1} parent=0 // loop_header_branch
    %17 = sbr.rel (%p15) target = $region8
  $region5: #{tpu_custom_call.1} parent=0 // loop_body
    %s19 = ssub.s32 %s14, 1
    %s20 = ssub.s32 %s14, 2
    %s21 = sadd.s32 %s14, 1
    %s22 = ssub.s32 %s14, %s21
    %p23 = scmp.eq.s32.totalorder %s22, 0
    %s25 = sadd.s32 %s24, 1
    %s26 = scalar_select %p23, %s24, %s25
    %p29 = pneg %p23
    %p30 = scmp.eq.s32.totalorder %s14, 1
    %p31 = por %p29, %p30
    %p32 = scmp.ne.s32.totalorder %s24, %s27
    %p33 = scmp.eq.s32.totalorder %s14, 0
    %p34 = por %p32, %p33
    %p35 = scmp.ne.s32.totalorder %s24, %s27
    %p36 = scmp.eq.s32.totalorder %s19, 1
    %p37 = por %p35, %p36
    %p38 = scmp.ne.s32.totalorder %s27, %s28
    %p39 = scmp.eq.s32.totalorder %s19, 0
    %p40 = por %p38, %p39
    %p41 = scmp.ne.s32.totalorder %s27, %s28
    %p42 = scmp.eq.s32.totalorder %s20, 1
    %p43 = por %p41, %p42
    %p45 = scmp.ne.s32.totalorder %s28, %s44
    %p46 = scmp.eq.s32.totalorder %s20, 0
    %p47 = por %p45, %p46
    %s49 = sadd.s32 %s48, 1
    %p52 = scmp.eq.s32.totalorder %s14, 1
    %p53 = scmp.ne.s32.totalorder %s48, %s50
    %p54 = scmp.eq.s32.totalorder %s14, 0
    %p55 = por %p53, %p54
    %p56 = scmp.ne.s32.totalorder %s48, %s50
    %p57 = scmp.eq.s32.totalorder %s19, 1
    %p58 = por %p56, %p57
    %p59 = scmp.ne.s32.totalorder %s50, %s51
    %p60 = scmp.eq.s32.totalorder %s19, 0
    %p61 = por %p59, %p60
    %p62 = scmp.ne.s32.totalorder %s50, %s51
    %p63 = scmp.eq.s32.totalorder %s20, 1
    %p64 = por %p62, %p63
    %p66 = scmp.ne.s32.totalorder %s51, %s65
    %p67 = scmp.eq.s32.totalorder %s20, 0
    %p68 = por %p66, %p67
    %s70 = sadd.s32 %s69, 1
    %p73 = scmp.eq.s32.totalorder %s14, 1
    %p74 = scmp.ne.s32.totalorder %s69, %s71
    %p75 = scmp.eq.s32.totalorder %s14, 0
    %p76 = por %p74, %p75
    %p77 = scmp.ne.s32.totalorder %s69, %s71
    %p78 = scmp.eq.s32.totalorder %s19, 1
    %p79 = por %p77, %p78
    %p80 = scmp.ne.s32.totalorder %s71, %s72
    %p81 = scmp.eq.s32.totalorder %s19, 0
    %p82 = por %p80, %p81
    %p83 = scmp.ne.s32.totalorder %s71, %s72
    %p84 = scmp.eq.s32.totalorder %s20, 1
    %p85 = por %p83, %p84
    %p87 = scmp.ne.s32.totalorder %s72, %s86
    %p88 = scmp.eq.s32.totalorder %s20, 0
    %p89 = por %p87, %p88
    %s91 = sadd.s32 %s90, 1
    %p94 = scmp.eq.s32.totalorder %s14, 1
    %p95 = scmp.ne.s32.totalorder %s90, %s92
    %p96 = scmp.eq.s32.totalorder %s14, 0
    %p97 = por %p95, %p96
    %p98 = scmp.ne.s32.totalorder %s90, %s92
    %p99 = scmp.eq.s32.totalorder %s19, 1
    %p100 = por %p98, %p99
    %p101 = scmp.ne.s32.totalorder %s92, %s93
    %p102 = scmp.eq.s32.totalorder %s19, 0
    %p103 = por %p101, %p102
    %p104 = scmp.ne.s32.totalorder %s92, %s93
    %p105 = scmp.eq.s32.totalorder %s20, 1
    %p106 = por %p104, %p105
    %p108 = scmp.ne.s32.totalorder %s93, %s107
    %p109 = scmp.eq.s32.totalorder %s20, 0
    %p110 = por %p108, %p109
    %s112 = sadd.s32 %s111, 1
    %p115 = scmp.eq.s32.totalorder %s14, 1
    %p116 = scmp.ne.s32.totalorder %s111, %s113
    %p117 = scmp.eq.s32.totalorder %s14, 0
    %p118 = por %p116, %p117
    %p119 = scmp.ne.s32.totalorder %s111, %s113
    %p120 = scmp.eq.s32.totalorder %s19, 1
    %p121 = por %p119, %p120
    %p122 = scmp.ne.s32.totalorder %s113, %s114
    %p123 = scmp.eq.s32.totalorder %s19, 0
    %p124 = por %p122, %p123
    %p125 = scmp.ne.s32.totalorder %s113, %s114
    %p126 = scmp.eq.s32.totalorder %s20, 1
    %p127 = por %p125, %p126
    %p129 = scmp.ne.s32.totalorder %s114, %s128
    %p130 = scmp.eq.s32.totalorder %s20, 0
    %p131 = por %p129, %p130
    %s133 = sadd.s32 %s132, 1
    %p136 = scmp.eq.s32.totalorder %s14, 1
    %p137 = scmp.ne.s32.totalorder %s132, %s134
    %p138 = scmp.eq.s32.totalorder %s14, 0
    %p139 = por %p137, %p138
    %p140 = scmp.ne.s32.totalorder %s132, %s134
    %p141 = scmp.eq.s32.totalorder %s19, 1
    %p142 = por %p140, %p141
    %p143 = scmp.ne.s32.totalorder %s134, %s135
    %p144 = scmp.eq.s32.totalorder %s19, 0
    %p145 = por %p143, %p144
    %p146 = scmp.ne.s32.totalorder %s134, %s135
    %p147 = scmp.eq.s32.totalorder %s20, 1
    %p148 = por %p146, %p147
    %p150 = scmp.ne.s32.totalorder %s135, %s149
    %p151 = scmp.eq.s32.totalorder %s20, 0
    %p152 = por %p150, %p151
    %s154 = sadd.s32 %s153, 1
    %p157 = scmp.eq.s32.totalorder %s14, 1
    %p158 = scmp.ne.s32.totalorder %s153, %s155
    %p159 = scmp.eq.s32.totalorder %s14, 0
    %p160 = por %p158, %p159
    %p161 = scmp.ne.s32.totalorder %s153, %s155
    %p162 = scmp.eq.s32.totalorder %s19, 1
    %p163 = por %p161, %p162
    %p164 = scmp.ne.s32.totalorder %s155, %s156
    %p165 = scmp.eq.s32.totalorder %s19, 0
    %p166 = por %p164, %p165
    %p167 = scmp.ne.s32.totalorder %s155, %s156
    %p168 = scmp.eq.s32.totalorder %s20, 1
    %p169 = por %p167, %p168
    %p171 = scmp.ne.s32.totalorder %s156, %s170
    %p172 = scmp.eq.s32.totalorder %s20, 0
    %p173 = por %p171, %p172
    %s175 = sadd.s32 %s174, 1
    %p178 = scmp.eq.s32.totalorder %s14, 1
    %p179 = scmp.ne.s32.totalorder %s174, %s176
    %p180 = scmp.eq.s32.totalorder %s14, 0
    %p181 = por %p179, %p180
    %p182 = scmp.ne.s32.totalorder %s174, %s176
    %p183 = scmp.eq.s32.totalorder %s19, 1
    %p184 = por %p182, %p183
    %p185 = scmp.ne.s32.totalorder %s176, %s177
    %p186 = scmp.eq.s32.totalorder %s19, 0
    %p187 = por %p185, %p186
    %p188 = scmp.ne.s32.totalorder %s176, %s177
    %p189 = scmp.eq.s32.totalorder %s20, 1
    %p190 = por %p188, %p189
    %p192 = scmp.ne.s32.totalorder %s177, %s191
    %p193 = scmp.eq.s32.totalorder %s20, 0
    %p194 = por %p192, %p193
    %s195 = ssub.s32 %s14, %s21
    %p196 = scmp.eq.s32.totalorder %s195, 0
    %s198 = sadd.s32 %s197, 1
    %s199 = scalar_select %p196, %s197, %s198
    %p202 = pneg %p196
    %p203 = scmp.eq.s32.totalorder %s14, 1
    %p204 = por %p202, %p203
    %p205 = scmp.ne.s32.totalorder %s197, %s200
    %p206 = scmp.eq.s32.totalorder %s14, 0
    %p207 = por %p205, %p206
    %p208 = scmp.ne.s32.totalorder %s197, %s200
    %p209 = scmp.eq.s32.totalorder %s19, 1
    %p210 = por %p208, %p209
    %p211 = scmp.ne.s32.totalorder %s200, %s201
    %p212 = scmp.eq.s32.totalorder %s19, 0
    %p213 = por %p211, %p212
    %p214 = scmp.ne.s32.totalorder %s200, %s201
    %p215 = scmp.eq.s32.totalorder %s20, 1
    %p216 = por %p214, %p215
    %p218 = scmp.ne.s32.totalorder %s201, %s217
    %p219 = scmp.eq.s32.totalorder %s20, 0
    %p220 = por %p218, %p219
    %p221 = scmp.le.s32.totalorder 1, %s14
    %p222 = scmp.lt.s32.totalorder %s14, 3
    %p223 = pnand %p221, %p222
    %p224 = pneg %p223
    // Predicated region
    $region9: #{tpu_custom_call.1} parent=5 // pred_check
      _
    $region10: #{tpu_custom_call.1} parent=5 // pred_check_branch
      %226 = sbr.rel (%p223) target = $region12
    $region11: #{tpu_custom_call.1} parent=5 // pred_region
      %s227 = ssub.s32 %s14, 1
      // Predicated region
      $region13: #{tpu_custom_call.1} parent=11 // pred_check
        %p228 = pneg %p61
      $region14: #{tpu_custom_call.1} parent=11 // pred_check_branch
        %230 = sbr.rel (%p228) target = $region16
      $region15: #{tpu_custom_call.1} parent=11 // pred_region
        _
      $region16: #{tpu_custom_call.1} parent=11 // pred_fallthru
        _
      // Predicated region
      $region17: #{tpu_custom_call.1} parent=11 // pred_check
        %p231 = pneg %p82
      $region18: #{tpu_custom_call.1} parent=11 // pred_check_branch
        %233 = sbr.rel (%p231) target = $region20
      $region19: #{tpu_custom_call.1} parent=11 // pred_region
        _
      $region20: #{tpu_custom_call.1} parent=11 // pred_fallthru
        _
      // Predicated region
      $region21: #{tpu_custom_call.1} parent=11 // pred_check
        %p234 = pneg %p103
      $region22: #{tpu_custom_call.1} parent=11 // pred_check_branch
        %236 = sbr.rel (%p234) target = $region24
      $region23: #{tpu_custom_call.1} parent=11 // pred_region
        _
      $region24: #{tpu_custom_call.1} parent=11 // pred_fallthru
        _
      // Predicated region
      $region25: #{tpu_custom_call.1} parent=11 // pred_check
        %p237 = pneg %p124
      $region26: #{tpu_custom_call.1} parent=11 // pred_check_branch
        %239 = sbr.rel (%p237) target = $region28
      $region27: #{tpu_custom_call.1} parent=11 // pred_region
        _
      $region28: #{tpu_custom_call.1} parent=11 // pred_fallthru
        _
      // Predicated region
      $region29: #{tpu_custom_call.1} parent=11 // pred_check
        %p240 = pneg %p145
      $region30: #{tpu_custom_call.1} parent=11 // pred_check_branch
        %242 = sbr.rel (%p240) target = $region32
      $region31: #{tpu_custom_call.1} parent=11 // pred_region
        _
      $region32: #{tpu_custom_call.1} parent=11 // pred_fallthru
        _
      // Predicated region
      $region33: #{tpu_custom_call.1} parent=11 // pred_check
        %p243 = pneg %p166
      $region34: #{tpu_custom_call.1} parent=11 // pred_check_branch
        %245 = sbr.rel (%p243) target = $region36
      $region35: #{tpu_custom_call.1} parent=11 // pred_region
        _
      $region36: #{tpu_custom_call.1} parent=11 // pred_fallthru
        _
      // Predicated region
      $region37: #{tpu_custom_call.1} parent=11 // pred_check
        %p246 = pneg %p187
      $region38: #{tpu_custom_call.1} parent=11 // pred_check_branch
        %248 = sbr.rel (%p246) target = $region40
      $region39: #{tpu_custom_call.1} parent=11 // pred_region
        _
      $region40: #{tpu_custom_call.1} parent=11 // pred_fallthru
        _
    $region12: #{tpu_custom_call.1} parent=5 // pred_fallthru
      _
    %p249 = scmp.lt.s32.totalorder %s14, 2
    // Predicated region
    $region41: #{tpu_custom_call.1} parent=5 // pred_check
      %p250 = pneg %p249
    $region42: #{tpu_custom_call.1} parent=5 // pred_check_branch
      %252 = sbr.rel (%p250) target = $region44
    $region43: #{tpu_custom_call.1} parent=5 // pred_region
      // Predicated region
      $region45: #{tpu_custom_call.1} parent=43 // pred_check
        %p253 = pneg %p34
      $region46: #{tpu_custom_call.1} parent=43 // pred_check_branch
        %255 = sbr.rel (%p253) target = $region48
      $region47: #{tpu_custom_call.1} parent=43 // pred_region
        %p256 = scmp.lt.s32.totalorder %s14, 1
        %s257 = scalar_select %p256, %s14, 1
        %s258 = smul.addr %s257, 32
        %s259 = smul.addr %s258, 8
        %s260 = scalar_lea.vmem %s0, %s259
      $region48: #{tpu_custom_call.1} parent=43 // pred_fallthru
        _
    $region44: #{tpu_custom_call.1} parent=5 // pred_fallthru
      _
    %p261 = scmp.le.s32.totalorder 1, %s14
    %p262 = scmp.lt.s32.totalorder %s14, 3
    %p263 = pnand %p261, %p262
    %p264 = pneg %p263
    // Predicated region
    $region49: #{tpu_custom_call.1} parent=5 // pred_check
      _
    $region50: #{tpu_custom_call.1} parent=5 // pred_check_branch
      %266 = sbr.rel (%p263) target = $region52
    $region51: #{tpu_custom_call.1} parent=5 // pred_region
      %s267 = ssub.s32 %s14, 1
      %p268 = scmp.lt.s32.totalorder %s19, 1
      %s269 = scalar_select %p268, %s19, 1
      %s270 = smul.addr %s269, 32
      %s271 = smul.addr %s270, 8
      %s272 = scalar_lea.vmem %s0, %s271
      %p273 = pneg %p40
      %p274 = pneg %p37
      %p275 = pneg %p61
      %p276 = pneg %p58
      %p277 = pneg %p82
      %p278 = pneg %p79
      %p279 = pneg %p103
      %p280 = pneg %p100
      %p281 = pneg %p124
      %p282 = pneg %p121
      %p283 = pneg %p145
      %p284 = pneg %p142
      %p285 = pneg %p166
      %p286 = pneg %p163
      %p287 = pneg %p187
      %p288 = pneg %p184
      %p289 = pneg %p213
      %p290 = pneg %p210
      %p291 = scmp.lt.s32.totalorder %s19, 1
      %s292 = scalar_select %p291, %s19, 1
      %s293 = smul.addr %s292, 32
      %s294 = smul.addr %s293, 8
      %s295 = scalar_lea.vmem %s8, %s294
      %p296 = scmp.lt.s32.totalorder %s19, 1
      %s297 = scalar_select %p296, %s19, 1
      %s298 = smul.addr %s297, 32
      %s299 = smul.addr %s298, 8
      %s300 = scalar_lea.vmem %s0, %s299
      %p301 = scmp.lt.s32.totalorder %s19, 1
      %s302 = scalar_select %p301, %s19, 1
      %s303 = smul.addr %s302, 32
      %s304 = smul.addr %s303, 8
      %s305 = scalar_lea.vmem %s8, %s304
      %v306 = vld [vmem:[%s300] sm:$0xff]
      %v307 = vld [vmem:[%s300 + $0x8] sm:$0xff]
      %v308 = vld [vmem:[%s300 + $0x10] sm:$0xff]
      %v309 = vld [vmem:[%s300 + $0x18] sm:$0xff]
      %v310 = vld [vmem:[%s300 + $0x20] sm:$0xff]
      %v311 = vld [vmem:[%s300 + $0x28] sm:$0xff]
      %v312 = vld [vmem:[%s300 + $0x30] sm:$0xff]
      %v313 = vld [vmem:[%s300 + $0x38] sm:$0xff]
      %v314 = vld [vmem:[%s300 + $0x40] sm:$0xff]
      %v315 = vld [vmem:[%s300 + $0x48] sm:$0xff]
      %v316 = vld [vmem:[%s300 + $0x50] sm:$0xff]
      %v317 = vld [vmem:[%s300 + $0x58] sm:$0xff]
      %v318 = vld [vmem:[%s300 + $0x60] sm:$0xff]
      %v319 = vld [vmem:[%s300 + $0x68] sm:$0xff]
      %v320 = vld [vmem:[%s300 + $0x70] sm:$0xff]
      %v321 = vld [vmem:[%s300 + $0x78] sm:$0xff]
      %v322 = vld [vmem:[%s300 + $0x80] sm:$0xff]
      %v323 = vld [vmem:[%s300 + $0x88] sm:$0xff]
      %v324 = vld [vmem:[%s300 + $0x90] sm:$0xff]
      %v325 = vld [vmem:[%s300 + $0x98] sm:$0xff]
      %v326 = vld [vmem:[%s300 + $0xa0] sm:$0xff]
      %v327 = vld [vmem:[%s300 + $0xa8] sm:$0xff]
      %v328 = vld [vmem:[%s300 + $0xb0] sm:$0xff]
      %v329 = vld [vmem:[%s300 + $0xb8] sm:$0xff]
      %v330 = vld [vmem:[%s300 + $0xc0] sm:$0xff]
      %v331 = vld [vmem:[%s300 + $0xc8] sm:$0xff]
      %v332 = vld [vmem:[%s300 + $0xd0] sm:$0xff]
      %v333 = vld [vmem:[%s300 + $0xd8] sm:$0xff]
      %v334 = vld [vmem:[%s300 + $0xe0] sm:$0xff]
      %v335 = vld [vmem:[%s300 + $0xe8] sm:$0xff]
      %v336 = vld [vmem:[%s300 + $0xf0] sm:$0xff]
      %v337 = vld [vmem:[%s300 + $0xf8] sm:$0xff]
      %v338 = vld [vmem:[%s1] sm:$0xf]
      %v339 = vld [vmem:[%s5] sm:$0x1]
      %v341 = vlaneseq
      %v342 = vshrl.u32 %v341, 7
      %v343 = vsub.s32 0, %v342
      %v344 = vrot.slane %v339, %v343
      %vm346 = vcmask 31744
      %v348 = vsel %vm346, %v306, 0
      %v351 = vsel %vm346, %v307, 0
      %v354 = vsel %vm346, %v308, 0
      %v357 = vsel %vm346, %v309, 0
      %v360 = vsel %vm346, %v310, 0
      %v363 = vsel %vm346, %v311, 0
      %v366 = vsel %vm346, %v312, 0
      %v369 = vsel %vm346, %v313, 0
      %v372 = vsel %vm346, %v314, 0
      %v375 = vsel %vm346, %v315, 0
      %v378 = vsel %vm346, %v316, 0
      %v381 = vsel %vm346, %v317, 0
      %v384 = vsel %vm346, %v318, 0
      %v387 = vsel %vm346, %v319, 0
      %v390 = vsel %vm346, %v320, 0
      %v393 = vsel %vm346, %v321, 0
      %v396 = vsel %vm346, %v322, 0
      %v399 = vsel %vm346, %v323, 0
      %v402 = vsel %vm346, %v324, 0
      %v405 = vsel %vm346, %v325, 0
      %v408 = vsel %vm346, %v326, 0
      %v411 = vsel %vm346, %v327, 0
      %v414 = vsel %vm346, %v328, 0
      %v417 = vsel %vm346, %v329, 0
      %v420 = vsel %vm346, %v330, 0
      %v423 = vsel %vm346, %v331, 0
      %v426 = vsel %vm346, %v332, 0
      %v429 = vsel %vm346, %v333, 0
      %v432 = vsel %vm346, %v334, 0
      %v435 = vsel %vm346, %v335, 0
      %v438 = vsel %vm346, %v336, 0
      %v441 = vsel %vm346, %v337, 0
      %vm443 = vcmask 1043456
      %v445 = vsel %vm443, %v338, 0
      %447 = vmatprep.subr.mxu0 0.0
      %448 = vmatpush1.msra.mxu0 0.0
      %449 = vmatprep.subr.mxu0 0.0
      %450 = vmatpush1.msra.mxu0 0.0
      %451 = vmatprep.subr.mxu0 0.0
      %452 = vmatpush1.msra.mxu0 0.0
      %453 = vmatprep.subr.mxu0 0.0
      %454 = vmatpush1.msra.mxu0 0.0
      %455 = vmatprep.subr.mxu0 0.0
      %456 = vmatpush1.msra.mxu0 0.0
      %457 = vmatprep.subr.mxu0 0.0
      %458 = vmatpush1.msra.mxu0 0.0
      %459 = vmatprep.subr.mxu0 0.0
      %460 = vmatpush1.msra.mxu0 0.0
      %461 = vmatprep.subr.mxu0 0.0
      %462 = vmatpush1.msra.mxu0 0.0
      %463 = vmatprep.subr.mxu0 0.0
      %464 = vmatpush1.msra.mxu0 0.0
      %465 = vmatprep.subr.mxu0 0.0
      %466 = vmatpush1.msra.mxu0 0.0
      %467 = vmatprep.subr.mxu0 0.0
      %468 = vmatpush1.msra.mxu0 0.0
      %469 = vmatprep.subr.mxu0 0.0
      %470 = vmatpush1.msra.mxu0 0.0
      %471 = vmatprep.subr.mxu0 0.0
      %472 = vmatpush1.msra.mxu0 0.0
      %473 = vmatprep.subr.mxu0 0.0
      %474 = vmatpush1.msra.mxu0 0.0
      %475 = vmatprep.subr.mxu0 0.0
      %476 = vmatpush1.msra.mxu0 0.0
      %477 = vmatprep.subr.mxu0 0.0
      %478 = vmatpush1.msra.mxu0 %v445
      %479 = vmatprep.subr.mxu0 0.0
      %480 = vmatpush2.msra.mxu0 0.0
      %481 = vmatprep.subr.mxu0 0.0
      %482 = vmatpush2.msra.mxu0 0.0
      %483 = vmatprep.subr.mxu0 0.0
      %484 = vmatpush2.msra.mxu0 0.0
      %485 = vmatprep.subr.mxu0 0.0
      %486 = vmatpush2.msra.mxu0 0.0
      %487 = vmatprep.subr.mxu0 0.0
      %488 = vmatpush2.msra.mxu0 0.0
      %489 = vmatprep.subr.mxu0 0.0
      %490 = vmatpush2.msra.mxu0 0.0
      %491 = vmatprep.subr.mxu0 0.0
      %492 = vmatpush2.msra.mxu0 0.0
      %493 = vmatprep.subr.mxu0 0.0
      %494 = vmatpush2.msra.mxu0 0.0
      %495 = vmatprep.subr.mxu0 0.0
      %496 = vmatpush2.msra.mxu0 0.0
      %497 = vmatprep.subr.mxu0 0.0
      %498 = vmatpush2.msra.mxu0 0.0
      %499 = vmatprep.subr.mxu0 0.0
      %500 = vmatpush2.msra.mxu0 0.0
      %501 = vmatprep.subr.mxu0 0.0
      %502 = vmatpush2.msra.mxu0 0.0
      %503 = vmatprep.subr.mxu0 0.0
      %504 = vmatpush2.msra.mxu0 0.0
      %505 = vmatprep.subr.mxu0 0.0
      %506 = vmatpush2.msra.mxu0 0.0
      %507 = vmatprep.subr.mxu0 0.0
      %508 = vmatpush2.msra.mxu0 0.0
      %509 = vmatprep.subr.mxu0 0.0
      %510 = vmatpush2.msra.mxu0 0.0
      %511 = vmatprep.mubr.f32.mxu0 0.0
      %512 = vmatmul.mubr.f32.gmra.mxu0 %v348
      %v513 = vpop.f32.mrf.mxu0
      %v514 = vadd.f32 %v344, %v513
      %v515 = vpop.f32.mrf.mxu0
      %516 = vmatprep.mubr.f32.mxu0 0.0
      %517 = vmatmul.mubr.f32.gmra.mxu0 %v351
      %v518 = vpop.f32.mrf.mxu0
      %v519 = vadd.f32 %v344, %v518
      %v520 = vpop.f32.mrf.mxu0
      %521 = vmatprep.mubr.f32.mxu0 0.0
      %522 = vmatmul.mubr.f32.gmra.mxu0 %v354
      %v523 = vpop.f32.mrf.mxu0
      %v524 = vadd.f32 %v344, %v523
      %v525 = vpop.f32.mrf.mxu0
      %526 = vmatprep.mubr.f32.mxu0 0.0
      %527 = vmatmul.mubr.f32.gmra.mxu0 %v357
      %v528 = vpop.f32.mrf.mxu0
      %v529 = vadd.f32 %v344, %v528
      %v530 = vpop.f32.mrf.mxu0
      %531 = vmatprep.mubr.f32.mxu0 0.0
      %532 = vmatmul.mubr.f32.gmra.mxu0 %v360
      %v533 = vpop.f32.mrf.mxu0
      %v534 = vadd.f32 %v344, %v533
      %v535 = vpop.f32.mrf.mxu0
      %536 = vmatprep.mubr.f32.mxu0 0.0
      %537 = vmatmul.mubr.f32.gmra.mxu0 %v363
      %v538 = vpop.f32.mrf.mxu0
      %v539 = vadd.f32 %v344, %v538
      %v540 = vpop.f32.mrf.mxu0
      %541 = vmatprep.mubr.f32.mxu0 0.0
      %542 = vmatmul.mubr.f32.gmra.mxu0 %v366
      %v543 = vpop.f32.mrf.mxu0
      %v544 = vadd.f32 %v344, %v543
      %v545 = vpop.f32.mrf.mxu0
      %546 = vmatprep.mubr.f32.mxu0 0.0
      %547 = vmatmul.mubr.f32.gmra.mxu0 %v369
      %v548 = vpop.f32.mrf.mxu0
      %v549 = vadd.f32 %v344, %v548
      %v550 = vpop.f32.mrf.mxu0
      %551 = vmatprep.mubr.f32.mxu0 0.0
      %552 = vmatmul.mubr.f32.gmra.mxu0 %v372
      %v553 = vpop.f32.mrf.mxu0
      %v554 = vadd.f32 %v344, %v553
      %v555 = vpop.f32.mrf.mxu0
      %556 = vmatprep.mubr.f32.mxu0 0.0
      %557 = vmatmul.mubr.f32.gmra.mxu0 %v375
      %v558 = vpop.f32.mrf.mxu0
      %v559 = vadd.f32 %v344, %v558
      %v560 = vpop.f32.mrf.mxu0
      %561 = vmatprep.mubr.f32.mxu0 0.0
      %562 = vmatmul.mubr.f32.gmra.mxu0 %v378
      %v563 = vpop.f32.mrf.mxu0
      %v564 = vadd.f32 %v344, %v563
      %v565 = vpop.f32.mrf.mxu0
      %566 = vmatprep.mubr.f32.mxu0 0.0
      %567 = vmatmul.mubr.f32.gmra.mxu0 %v381
      %v568 = vpop.f32.mrf.mxu0
      %v569 = vadd.f32 %v344, %v568
      %v570 = vpop.f32.mrf.mxu0
      %571 = vmatprep.mubr.f32.mxu0 0.0
      %572 = vmatmul.mubr.f32.gmra.mxu0 %v384
      %v573 = vpop.f32.mrf.mxu0
      %v574 = vadd.f32 %v344, %v573
      %v575 = vpop.f32.mrf.mxu0
      %576 = vmatprep.mubr.f32.mxu0 0.0
      %577 = vmatmul.mubr.f32.gmra.mxu0 %v387
      %v578 = vpop.f32.mrf.mxu0
      %v579 = vadd.f32 %v344, %v578
      %v580 = vpop.f32.mrf.mxu0
      %581 = vmatprep.mubr.f32.mxu0 0.0
      %582 = vmatmul.mubr.f32.gmra.mxu0 %v390
      %v583 = vpop.f32.mrf.mxu0
      %v584 = vadd.f32 %v344, %v583
      %v585 = vpop.f32.mrf.mxu0
      %586 = vmatprep.mubr.f32.mxu0 0.0
      %587 = vmatmul.mubr.f32.gmra.mxu0 %v393
      %v588 = vpop.f32.mrf.mxu0
      %v589 = vadd.f32 %v344, %v588
      %v590 = vpop.f32.mrf.mxu0
      %591 = vmatprep.mubr.f32.mxu0 0.0
      %592 = vmatmul.mubr.f32.gmra.mxu0 %v396
      %v593 = vpop.f32.mrf.mxu0
      %v594 = vadd.f32 %v344, %v593
      %v595 = vpop.f32.mrf.mxu0
      %596 = vmatprep.mubr.f32.mxu0 0.0
      %597 = vmatmul.mubr.f32.gmra.mxu0 %v399
      %v598 = vpop.f32.mrf.mxu0
      %v599 = vadd.f32 %v344, %v598
      %v600 = vpop.f32.mrf.mxu0
      %601 = vmatprep.mubr.f32.mxu0 0.0
      %602 = vmatmul.mubr.f32.gmra.mxu0 %v402
      %v603 = vpop.f32.mrf.mxu0
      %v604 = vadd.f32 %v344, %v603
      %v605 = vpop.f32.mrf.mxu0
      %606 = vmatprep.mubr.f32.mxu0 0.0
      %607 = vmatmul.mubr.f32.gmra.mxu0 %v405
      %v608 = vpop.f32.mrf.mxu0
      %v609 = vadd.f32 %v344, %v608
      %v610 = vpop.f32.mrf.mxu0
      %611 = vmatprep.mubr.f32.mxu0 0.0
      %612 = vmatmul.mubr.f32.gmra.mxu0 %v408
      %v613 = vpop.f32.mrf.mxu0
      %v614 = vadd.f32 %v344, %v613
      %v615 = vpop.f32.mrf.mxu0
      %616 = vmatprep.mubr.f32.mxu0 0.0
      %617 = vmatmul.mubr.f32.gmra.mxu0 %v411
      %v618 = vpop.f32.mrf.mxu0
      %v619 = vadd.f32 %v344, %v618
      %v620 = vpop.f32.mrf.mxu0
      %621 = vmatprep.mubr.f32.mxu0 0.0
      %622 = vmatmul.mubr.f32.gmra.mxu0 %v414
      %v623 = vpop.f32.mrf.mxu0
      %v624 = vadd.f32 %v344, %v623
      %v625 = vpop.f32.mrf.mxu0
      %626 = vmatprep.mubr.f32.mxu0 0.0
      %627 = vmatmul.mubr.f32.gmra.mxu0 %v417
      %v628 = vpop.f32.mrf.mxu0
      %v629 = vadd.f32 %v344, %v628
      %v630 = vpop.f32.mrf.mxu0
      %631 = vmatprep.mubr.f32.mxu0 0.0
      %632 = vmatmul.mubr.f32.gmra.mxu0 %v420
      %v633 = vpop.f32.mrf.mxu0
      %v634 = vadd.f32 %v344, %v633
      %v635 = vpop.f32.mrf.mxu0
      %636 = vmatprep.mubr.f32.mxu0 0.0
      %637 = vmatmul.mubr.f32.gmra.mxu0 %v423
      %v638 = vpop.f32.mrf.mxu0
      %v639 = vadd.f32 %v344, %v638
      %v640 = vpop.f32.mrf.mxu0
      %641 = vmatprep.mubr.f32.mxu0 0.0
      %642 = vmatmul.mubr.f32.gmra.mxu0 %v426
      %v643 = vpop.f32.mrf.mxu0
      %v644 = vadd.f32 %v344, %v643
      %v645 = vpop.f32.mrf.mxu0
      %646 = vmatprep.mubr.f32.mxu0 0.0
      %647 = vmatmul.mubr.f32.gmra.mxu0 %v429
      %v648 = vpop.f32.mrf.mxu0
      %v649 = vadd.f32 %v344, %v648
      %v650 = vpop.f32.mrf.mxu0
      %651 = vmatprep.mubr.f32.mxu0 0.0
      %652 = vmatmul.mubr.f32.gmra.mxu0 %v432
      %v653 = vpop.f32.mrf.mxu0
      %v654 = vadd.f32 %v344, %v653
      %v655 = vpop.f32.mrf.mxu0
      %656 = vmatprep.mubr.f32.mxu0 0.0
      %657 = vmatmul.mubr.f32.gmra.mxu0 %v435
      %v658 = vpop.f32.mrf.mxu0
      %v659 = vadd.f32 %v344, %v658
      %v660 = vpop.f32.mrf.mxu0
      %661 = vmatprep.mubr.f32.mxu0 0.0
      %662 = vmatmul.mubr.f32.gmra.mxu0 %v438
      %v663 = vpop.f32.mrf.mxu0
      %v664 = vadd.f32 %v344, %v663
      %v665 = vpop.f32.mrf.mxu0
      %666 = vmatprep.mubr.f32.mxu0 0.0
      %667 = vmatmul.mubr.f32.gmra.mxu0 %v441
      %v668 = vpop.f32.mrf.mxu0
      %v669 = vadd.f32 %v344, %v668
      %v670 = vpop.f32.mrf.mxu0
      %671 = vdwg.mxu0
      %v672 = vmax.f32 %v514, 0.0
      %v673 = vmax.f32 %v519, 0.0
      %v674 = vmax.f32 %v524, 0.0
      %v675 = vmax.f32 %v529, 0.0
      %v676 = vmax.f32 %v534, 0.0
      %v677 = vmax.f32 %v539, 0.0
      %v678 = vmax.f32 %v544, 0.0
      %v679 = vmax.f32 %v549, 0.0
      %v680 = vmax.f32 %v554, 0.0
      %v681 = vmax.f32 %v559, 0.0
      %v682 = vmax.f32 %v564, 0.0
      %v683 = vmax.f32 %v569, 0.0
      %v684 = vmax.f32 %v574, 0.0
      %v685 = vmax.f32 %v579, 0.0
      %v686 = vmax.f32 %v584, 0.0
      %v687 = vmax.f32 %v589, 0.0
      %v688 = vmax.f32 %v594, 0.0
      %v689 = vmax.f32 %v599, 0.0
      %v690 = vmax.f32 %v604, 0.0
      %v691 = vmax.f32 %v609, 0.0
      %v692 = vmax.f32 %v614, 0.0
      %v693 = vmax.f32 %v619, 0.0
      %v694 = vmax.f32 %v624, 0.0
      %v695 = vmax.f32 %v629, 0.0
      %v696 = vmax.f32 %v634, 0.0
      %v697 = vmax.f32 %v639, 0.0
      %v698 = vmax.f32 %v644, 0.0
      %v699 = vmax.f32 %v649, 0.0
      %v700 = vmax.f32 %v654, 0.0
      %v701 = vmax.f32 %v659, 0.0
      %v702 = vmax.f32 %v664, 0.0
      %v703 = vmax.f32 %v669, 0.0
      %vm704 = vcmask 130048
      %705 = vst.msk [vmem:[#allocation2] sm:$0xff] %vm704, 0.0
      %706 = vst.msk [vmem:[#allocation2 + $0x8] sm:$0xff] %vm704, 0.0
      %vm707 = vcmask 123904
      %708 = vst.msk [vmem:[#allocation2 + $0x10] sm:$0x3] %vm707, 0.0
      %s709 = scalar_lea.vmem [#allocation2], 408
      %710 = vst.msk [vmem:[%s709] sm:$0xff] %vm704, 0.0
      %711 = vst.msk [vmem:[%s709 + $0x8] sm:$0xff] %vm704, 0.0
      %712 = vst.msk [vmem:[%s709 + $0x10] sm:$0x3] %vm707, 0.0
      %s713 = scalar_lea.vmem [#allocation2], 24
      %vm714 = vcmask 122880
      %715 = vst.msk [vmem:[%s713] sm:$0x1] %vm714, 0.0
      %716 = vst.msk [vmem:[%s713 + $0x18] sm:$0x1] %vm714, 0.0
      %717 = vst.msk [vmem:[%s713 + $0x30] sm:$0x1] %vm714, 0.0
      %718 = vst.msk [vmem:[%s713 + $0x48] sm:$0x1] %vm714, 0.0
      %719 = vst.msk [vmem:[%s713 + $0x60] sm:$0x1] %vm714, 0.0
      %720 = vst.msk [vmem:[%s713 + $0x78] sm:$0x1] %vm714, 0.0
      %721 = vst.msk [vmem:[%s713 + $0x90] sm:$0x1] %vm714, 0.0
      %722 = vst.msk [vmem:[%s713 + $0xa8] sm:$0x1] %vm714, 0.0
      %723 = vst.msk [vmem:[%s713 + $0xc0] sm:$0x1] %vm714, 0.0
      %724 = vst.msk [vmem:[%s713 + $0xd8] sm:$0x1] %vm714, 0.0
      %725 = vst.msk [vmem:[%s713 + $0xf0] sm:$0x1] %vm714, 0.0
      %726 = vst.msk [vmem:[%s713 + $0x108] sm:$0x1] %vm714, 0.0
      %727 = vst.msk [vmem:[%s713 + $0x120] sm:$0x1] %vm714, 0.0
      %728 = vst.msk [vmem:[%s713 + $0x138] sm:$0x1] %vm714, 0.0
      %729 = vst.msk [vmem:[%s713 + $0x150] sm:$0x1] %vm714, 0.0
      %730 = vst.msk [vmem:[%s713 + $0x168] sm:$0x1] %vm714, 0.0
      %731 = vst.msk [vmem:[%s713 + $0x11] sm:$0x1] %vm714, 0.0
      %732 = vst.msk [vmem:[%s713 + $0x29] sm:$0x1] %vm714, 0.0
      %733 = vst.msk [vmem:[%s713 + $0x41] sm:$0x1] %vm714, 0.0
      %734 = vst.msk [vmem:[%s713 + $0x59] sm:$0x1] %vm714, 0.0
      %735 = vst.msk [vmem:[%s713 + $0x71] sm:$0x1] %vm714, 0.0
      %736 = vst.msk [vmem:[%s713 + $0x89] sm:$0x1] %vm714, 0.0
      %737 = vst.msk [vmem:[%s713 + $0xa1] sm:$0x1] %vm714, 0.0
      %738 = vst.msk [vmem:[%s713 + $0xb9] sm:$0x1] %vm714, 0.0
      %739 = vst.msk [vmem:[%s713 + $0xd1] sm:$0x1] %vm714, 0.0
      %740 = vst.msk [vmem:[%s713 + $0xe9] sm:$0x1] %vm714, 0.0
      %741 = vst.msk [vmem:[%s713 + $0x101] sm:$0x1] %vm714, 0.0
      %742 = vst.msk [vmem:[%s713 + $0x119] sm:$0x1] %vm714, 0.0
      %743 = vst.msk [vmem:[%s713 + $0x131] sm:$0x1] %vm714, 0.0
      %744 = vst.msk [vmem:[%s713 + $0x149] sm:$0x1] %vm714, 0.0
      %745 = vst.msk [vmem:[%s713 + $0x161] sm:$0x1] %vm714, 0.0
      %746 = vst.msk [vmem:[%s713 + $0x179] sm:$0x1] %vm714, 0.0
      %747 = vst.msk [vmem:[%s713 + $0x1] sm:$0xff] %vm704, %v672
      %748 = vst.msk [vmem:[%s713 + $0x9] sm:$0xff] %vm704, %v673
      %749 = vst.msk [vmem:[%s713 + $0x19] sm:$0xff] %vm704, %v674
      %750 = vst.msk [vmem:[%s713 + $0x21] sm:$0xff] %vm704, %v675
      %751 = vst.msk [vmem:[%s713 + $0x31] sm:$0xff] %vm704, %v676
      %752 = vst.msk [vmem:[%s713 + $0x39] sm:$0xff] %vm704, %v677
      %753 = vst.msk [vmem:[%s713 + $0x49] sm:$0xff] %vm704, %v678
      %754 = vst.msk [vmem:[%s713 + $0x51] sm:$0xff] %vm704, %v679
      %755 = vst.msk [vmem:[%s713 + $0x61] sm:$0xff] %vm704, %v680
      %756 = vst.msk [vmem:[%s713 + $0x69] sm:$0xff] %vm704, %v681
      %757 = vst.msk [vmem:[%s713 + $0x79] sm:$0xff] %vm704, %v682
      %758 = vst.msk [vmem:[%s713 + $0x81] sm:$0xff] %vm704, %v683
      %759 = vst.msk [vmem:[%s713 + $0x91] sm:$0xff] %vm704, %v684
      %760 = vst.msk [vmem:[%s713 + $0x99] sm:$0xff] %vm704, %v685
      %761 = vst.msk [vmem:[%s713 + $0xa9] sm:$0xff] %vm704, %v686
      %762 = vst.msk [vmem:[%s713 + $0xb1] sm:$0xff] %vm704, %v687
      %763 = vst.msk [vmem:[%s713 + $0xc1] sm:$0xff] %vm704, %v688
      %764 = vst.msk [vmem:[%s713 + $0xc9] sm:$0xff] %vm704, %v689
      %765 = vst.msk [vmem:[%s713 + $0xd9] sm:$0xff] %vm704, %v690
      %766 = vst.msk [vmem:[%s713 + $0xe1] sm:$0xff] %vm704, %v691
      %767 = vst.msk [vmem:[%s713 + $0xf1] sm:$0xff] %vm704, %v692
      %768 = vst.msk [vmem:[%s713 + $0xf9] sm:$0xff] %vm704, %v693
      %769 = vst.msk [vmem:[%s713 + $0x109] sm:$0xff] %vm704, %v694
      %770 = vst.msk [vmem:[%s713 + $0x111] sm:$0xff] %vm704, %v695
      %771 = vst.msk [vmem:[%s713 + $0x121] sm:$0xff] %vm704, %v696
      %772 = vst.msk [vmem:[%s713 + $0x129] sm:$0xff] %vm704, %v697
      %773 = vst.msk [vmem:[%s713 + $0x139] sm:$0xff] %vm704, %v698
      %774 = vst.msk [vmem:[%s713 + $0x141] sm:$0xff] %vm704, %v699
      %775 = vst.msk [vmem:[%s713 + $0x151] sm:$0xff] %vm704, %v700
      %776 = vst.msk [vmem:[%s713 + $0x159] sm:$0xff] %vm704, %v701
      %777 = vst.msk [vmem:[%s713 + $0x169] sm:$0xff] %vm704, %v702
      %778 = vst.msk [vmem:[%s713 + $0x171] sm:$0xff] %vm704, %v703
      %v779 = vld [vmem:[#allocation2] sm:$0xff]
      %v780 = vld [vmem:[#allocation2 + $0x8] sm:$0xff]
      %v781 = vld [vmem:[#allocation2 + $0x18] sm:$0xff]
      %v782 = vld [vmem:[#allocation2 + $0x20] sm:$0xff]
      %v783 = vld [vmem:[#allocation2 + $0x30] sm:$0xff]
      %v784 = vld [vmem:[#allocation2 + $0x38] sm:$0xff]
      %v785 = vld [vmem:[#allocation2 + $0x48] sm:$0xff]
      %v786 = vld [vmem:[#allocation2 + $0x50] sm:$0xff]
      %v787 = vld [vmem:[#allocation2 + $0x60] sm:$0xff]
      %v788 = vld [vmem:[#allocation2 + $0x68] sm:$0xff]
      %v789 = vld [vmem:[#allocation2 + $0x78] sm:$0xff]
      %v790 = vld [vmem:[#allocation2 + $0x80] sm:$0xff]
      %v791 = vld [vmem:[#allocation2 + $0x90] sm:$0xff]
      %v792 = vld [vmem:[#allocation2 + $0x98] sm:$0xff]
      %v793 = vld [vmem:[#allocation2 + $0xa8] sm:$0xff]
      %v794 = vld [vmem:[#allocation2 + $0xb0] sm:$0xff]
      %v795 = vld [vmem:[#allocation2 + $0xc0] sm:$0xff]
      %v796 = vld [vmem:[#allocation2 + $0xc8] sm:$0xff]
      %v797 = vld [vmem:[#allocation2 + $0xd8] sm:$0xff]
      %v798 = vld [vmem:[#allocation2 + $0xe0] sm:$0xff]
      %v799 = vld [vmem:[#allocation2 + $0xf0] sm:$0xff]
      %v800 = vld [vmem:[#allocation2 + $0xf8] sm:$0xff]
      %v801 = vld [vmem:[#allocation2 + $0x108] sm:$0xff]
      %v802 = vld [vmem:[#allocation2 + $0x110] sm:$0xff]
      %v803 = vld [vmem:[#allocation2 + $0x120] sm:$0xff]
      %v804 = vld [vmem:[#allocation2 + $0x128] sm:$0xff]
      %v805 = vld [vmem:[#allocation2 + $0x138] sm:$0xff]
      %v806 = vld [vmem:[#allocation2 + $0x140] sm:$0xff]
      %v807 = vld [vmem:[#allocation2 + $0x150] sm:$0xff]
      %v808 = vld [vmem:[#allocation2 + $0x158] sm:$0xff]
      %v809 = vld [vmem:[#allocation2 + $0x168] sm:$0xff]
      %v810 = vld [vmem:[#allocation2 + $0x170] sm:$0xff]
      %v811 = vld [vmem:[%s2] sm:$0xff]
      %v812 = vld [vmem:[%s2 + $0x8] sm:$0xff]
      %v813 = vld [vmem:[#allocation2 + $0x1] sm:$0xff]
      %v814 = vld [vmem:[#allocation2 + $0x9] sm:$0xff]
      %v815 = vld [vmem:[#allocation2 + $0x19] sm:$0xff]
      %v816 = vld [vmem:[#allocation2 + $0x21] sm:$0xff]
      %v817 = vld [vmem:[#allocation2 + $0x31] sm:$0xff]
      %v818 = vld [vmem:[#allocation2 + $0x39] sm:$0xff]
      %v819 = vld [vmem:[#allocation2 + $0x49] sm:$0xff]
      %v820 = vld [vmem:[#allocation2 + $0x51] sm:$0xff]
      %v821 = vld [vmem:[#allocation2 + $0x61] sm:$0xff]
      %v822 = vld [vmem:[#allocation2 + $0x69] sm:$0xff]
      %v823 = vld [vmem:[#allocation2 + $0x79] sm:$0xff]
      %v824 = vld [vmem:[#allocation2 + $0x81] sm:$0xff]
      %v825 = vld [vmem:[#allocation2 + $0x91] sm:$0xff]
      %v826 = vld [vmem:[#allocation2 + $0x99] sm:$0xff]
      %v827 = vld [vmem:[#allocation2 + $0xa9] sm:$0xff]
      %v828 = vld [vmem:[#allocation2 + $0xb1] sm:$0xff]
      %v829 = vld [vmem:[#allocation2 + $0xc1] sm:$0xff]
      %v830 = vld [vmem:[#allocation2 + $0xc9] sm:$0xff]
      %v831 = vld [vmem:[#allocation2 + $0xd9] sm:$0xff]
      %v832 = vld [vmem:[#allocation2 + $0xe1] sm:$0xff]
      %v833 = vld [vmem:[#allocation2 + $0xf1] sm:$0xff]
      %v834 = vld [vmem:[#allocation2 + $0xf9] sm:$0xff]
      %v835 = vld [vmem:[#allocation2 + $0x109] sm:$0xff]
      %v836 = vld [vmem:[#allocation2 + $0x111] sm:$0xff]
      %v837 = vld [vmem:[#allocation2 + $0x121] sm:$0xff]
      %v838 = vld [vmem:[#allocation2 + $0x129] sm:$0xff]
      %v839 = vld [vmem:[#allocation2 + $0x139] sm:$0xff]
      %v840 = vld [vmem:[#allocation2 + $0x141] sm:$0xff]
      %v841 = vld [vmem:[#allocation2 + $0x151] sm:$0xff]
      %v842 = vld [vmem:[#allocation2 + $0x159] sm:$0xff]
      %v843 = vld [vmem:[#allocation2 + $0x169] sm:$0xff]
      %v844 = vld [vmem:[#allocation2 + $0x171] sm:$0xff]
      %s845 = scalar_lea.vmem %s2, 16
      %v846 = vld [vmem:[%s845] sm:$0xff]
      %v847 = vld [vmem:[%s845 + $0x8] sm:$0xff]
      %v849 = vsel %vm704, %v813, 0
      %v852 = vsel %vm704, %v814, 0
      %v855 = vsel %vm704, %v815, 0
      %v858 = vsel %vm704, %v816, 0
      %v861 = vsel %vm704, %v817, 0
      %v864 = vsel %vm704, %v818, 0
      %v867 = vsel %vm704, %v819, 0
      %v870 = vsel %vm704, %v820, 0
      %v873 = vsel %vm704, %v821, 0
      %v876 = vsel %vm704, %v822, 0
      %v879 = vsel %vm704, %v823, 0
      %v882 = vsel %vm704, %v824, 0
      %v885 = vsel %vm704, %v825, 0
      %v888 = vsel %vm704, %v826, 0
      %v891 = vsel %vm704, %v827, 0
      %v894 = vsel %vm704, %v828, 0
      %v897 = vsel %vm704, %v829, 0
      %v900 = vsel %vm704, %v830, 0
      %v903 = vsel %vm704, %v831, 0
      %v906 = vsel %vm704, %v832, 0
      %v909 = vsel %vm704, %v833, 0
      %v912 = vsel %vm704, %v834, 0
      %v915 = vsel %vm704, %v835, 0
      %v918 = vsel %vm704, %v836, 0
      %v921 = vsel %vm704, %v837, 0
      %v924 = vsel %vm704, %v838, 0
      %v927 = vsel %vm704, %v839, 0
      %v930 = vsel %vm704, %v840, 0
      %v933 = vsel %vm704, %v841, 0
      %v936 = vsel %vm704, %v842, 0
      %v939 = vsel %vm704, %v843, 0
      %v942 = vsel %vm704, %v844, 0
      %944 = vmatprep.subr.mxu0 0.0
      %945 = vmatpush1.msra.mxu0 0.0
      %946 = vmatprep.subr.mxu0 0.0
      %947 = vmatpush1.msra.mxu0 0.0
      %948 = vmatprep.subr.mxu0 0.0
      %949 = vmatpush1.msra.mxu0 0.0
      %950 = vmatprep.subr.mxu0 0.0
      %951 = vmatpush1.msra.mxu0 0.0
      %952 = vmatprep.subr.mxu0 0.0
      %953 = vmatpush1.msra.mxu0 0.0
      %954 = vmatprep.subr.mxu0 0.0
      %955 = vmatpush1.msra.mxu0 0.0
      %956 = vmatprep.subr.mxu0 0.0
      %957 = vmatpush1.msra.mxu0 0.0
      %958 = vmatprep.subr.mxu0 0.0
      %959 = vmatpush1.msra.mxu0 0.0
      %960 = vmatprep.subr.mxu0 0.0
      %961 = vmatpush1.msra.mxu0 0.0
      %962 = vmatprep.subr.mxu0 0.0
      %963 = vmatpush1.msra.mxu0 0.0
      %964 = vmatprep.subr.mxu0 0.0
      %965 = vmatpush1.msra.mxu0 0.0
      %966 = vmatprep.subr.mxu0 0.0
      %967 = vmatpush1.msra.mxu0 0.0
      %968 = vmatprep.subr.mxu0 0.0
      %969 = vmatpush1.msra.mxu0 0.0
      %970 = vmatprep.subr.mxu0 0.0
      %971 = vmatpush1.msra.mxu0 0.0
      %972 = vmatprep.subr.mxu0 0.0
      %973 = vmatpush1.msra.mxu0 %v847
      %974 = vmatprep.subr.mxu0 0.0
      %975 = vmatpush1.msra.mxu0 %v846
      %976 = vmatprep.subr.mxu0 0.0
      %977 = vmatpush2.msra.mxu0 0.0
      %978 = vmatprep.subr.mxu0 0.0
      %979 = vmatpush2.msra.mxu0 0.0
      %980 = vmatprep.subr.mxu0 0.0
      %981 = vmatpush2.msra.mxu0 0.0
      %982 = vmatprep.subr.mxu0 0.0
      %983 = vmatpush2.msra.mxu0 0.0
      %984 = vmatprep.subr.mxu0 0.0
      %985 = vmatpush2.msra.mxu0 0.0
      %986 = vmatprep.subr.mxu0 0.0
      %987 = vmatpush2.msra.mxu0 0.0
      %988 = vmatprep.subr.mxu0 0.0
      %989 = vmatpush2.msra.mxu0 0.0
      %990 = vmatprep.subr.mxu0 0.0
      %991 = vmatpush2.msra.mxu0 0.0
      %992 = vmatprep.subr.mxu0 0.0
      %993 = vmatpush2.msra.mxu0 0.0
      %994 = vmatprep.subr.mxu0 0.0
      %995 = vmatpush2.msra.mxu0 0.0
      %996 = vmatprep.subr.mxu0 0.0
      %997 = vmatpush2.msra.mxu0 0.0
      %998 = vmatprep.subr.mxu0 0.0
      %999 = vmatpush2.msra.mxu0 0.0
      %1000 = vmatprep.subr.mxu0 0.0
      %1001 = vmatpush2.msra.mxu0 0.0
      %1002 = vmatprep.subr.mxu0 0.0
      %1003 = vmatpush2.msra.mxu0 0.0
      %1004 = vmatprep.subr.mxu0 0.0
      %1005 = vmatpush2.msra.mxu0 0.0
      %1006 = vmatprep.subr.mxu0 0.0
      %1007 = vmatpush2.msra.mxu0 0.0
      %1008 = vmatprep.mubr.f32.mxu0 0.0
      %1009 = vmatmul.mubr.f32.gmra.mxu0 %v849
      %v1010 = vpop.f32.mrf.mxu0
      %v1011 = vadd.f32 0.0, %v1010
      %v1012 = vpop.f32.mrf.mxu0
      %1013 = vmatprep.mubr.f32.mxu0 0.0
      %1014 = vmatmul.mubr.f32.gmra.mxu0 %v852
      %v1015 = vpop.f32.mrf.mxu0
      %v1016 = vadd.f32 0.0, %v1015
      %v1017 = vpop.f32.mrf.mxu0
      %1018 = vmatprep.mubr.f32.mxu0 0.0
      %1019 = vmatmul.mubr.f32.gmra.mxu0 %v855
      %v1020 = vpop.f32.mrf.mxu0
      %v1021 = vadd.f32 0.0, %v1020
      %v1022 = vpop.f32.mrf.mxu0
      %1023 = vmatprep.mubr.f32.mxu0 0.0
      %1024 = vmatmul.mubr.f32.gmra.mxu0 %v858
      %v1025 = vpop.f32.mrf.mxu0
      %v1026 = vadd.f32 0.0, %v1025
      %v1027 = vpop.f32.mrf.mxu0
      %1028 = vmatprep.mubr.f32.mxu0 0.0
      %1029 = vmatmul.mubr.f32.gmra.mxu0 %v861
      %v1030 = vpop.f32.mrf.mxu0
      %v1031 = vadd.f32 0.0, %v1030
      %v1032 = vpop.f32.mrf.mxu0
      %1033 = vmatprep.mubr.f32.mxu0 0.0
      %1034 = vmatmul.mubr.f32.gmra.mxu0 %v864
      %v1035 = vpop.f32.mrf.mxu0
      %v1036 = vadd.f32 0.0, %v1035
      %v1037 = vpop.f32.mrf.mxu0
      %1038 = vmatprep.mubr.f32.mxu0 0.0
      %1039 = vmatmul.mubr.f32.gmra.mxu0 %v867
      %v1040 = vpop.f32.mrf.mxu0
      %v1041 = vadd.f32 0.0, %v1040
      %v1042 = vpop.f32.mrf.mxu0
      %1043 = vmatprep.mubr.f32.mxu0 0.0
      %1044 = vmatmul.mubr.f32.gmra.mxu0 %v870
      %v1045 = vpop.f32.mrf.mxu0
      %v1046 = vadd.f32 0.0, %v1045
      %v1047 = vpop.f32.mrf.mxu0
      %1048 = vmatprep.mubr.f32.mxu0 0.0
      %1049 = vmatmul.mubr.f32.gmra.mxu0 %v873
      %v1050 = vpop.f32.mrf.mxu0
      %v1051 = vadd.f32 0.0, %v1050
      %v1052 = vpop.f32.mrf.mxu0
      %1053 = vmatprep.mubr.f32.mxu0 0.0
      %1054 = vmatmul.mubr.f32.gmra.mxu0 %v876
      %v1055 = vpop.f32.mrf.mxu0
      %v1056 = vadd.f32 0.0, %v1055
      %v1057 = vpop.f32.mrf.mxu0
      %1058 = vmatprep.mubr.f32.mxu0 0.0
      %1059 = vmatmul.mubr.f32.gmra.mxu0 %v879
      %v1060 = vpop.f32.mrf.mxu0
      %v1061 = vadd.f32 0.0, %v1060
      %v1062 = vpop.f32.mrf.mxu0
      %1063 = vmatprep.mubr.f32.mxu0 0.0
      %1064 = vmatmul.mubr.f32.gmra.mxu0 %v882
      %v1065 = vpop.f32.mrf.mxu0
      %v1066 = vadd.f32 0.0, %v1065
      %v1067 = vpop.f32.mrf.mxu0
      %1068 = vmatprep.mubr.f32.mxu0 0.0
      %1069 = vmatmul.mubr.f32.gmra.mxu0 %v885
      %v1070 = vpop.f32.mrf.mxu0
      %v1071 = vadd.f32 0.0, %v1070
      %v1072 = vpop.f32.mrf.mxu0
      %1073 = vmatprep.mubr.f32.mxu0 0.0
      %1074 = vmatmul.mubr.f32.gmra.mxu0 %v888
      %v1075 = vpop.f32.mrf.mxu0
      %v1076 = vadd.f32 0.0, %v1075
      %v1077 = vpop.f32.mrf.mxu0
      %1078 = vmatprep.mubr.f32.mxu0 0.0
      %1079 = vmatmul.mubr.f32.gmra.mxu0 %v891
      %v1080 = vpop.f32.mrf.mxu0
      %v1081 = vadd.f32 0.0, %v1080
      %v1082 = vpop.f32.mrf.mxu0
      %1083 = vmatprep.mubr.f32.mxu0 0.0
      %1084 = vmatmul.mubr.f32.gmra.mxu0 %v894
      %v1085 = vpop.f32.mrf.mxu0
      %v1086 = vadd.f32 0.0, %v1085
      %v1087 = vpop.f32.mrf.mxu0
      %1088 = vmatprep.mubr.f32.mxu0 0.0
      %1089 = vmatmul.mubr.f32.gmra.mxu0 %v897
      %v1090 = vpop.f32.mrf.mxu0
      %v1091 = vadd.f32 0.0, %v1090
      %v1092 = vpop.f32.mrf.mxu0
      %1093 = vmatprep.mubr.f32.mxu0 0.0
      %1094 = vmatmul.mubr.f32.gmra.mxu0 %v900
      %v1095 = vpop.f32.mrf.mxu0
      %v1096 = vadd.f32 0.0, %v1095
      %v1097 = vpop.f32.mrf.mxu0
      %1098 = vmatprep.mubr.f32.mxu0 0.0
      %1099 = vmatmul.mubr.f32.gmra.mxu0 %v903
      %v1100 = vpop.f32.mrf.mxu0
      %v1101 = vadd.f32 0.0, %v1100
      %v1102 = vpop.f32.mrf.mxu0
      %1103 = vmatprep.mubr.f32.mxu0 0.0
      %1104 = vmatmul.mubr.f32.gmra.mxu0 %v906
      %v1105 = vpop.f32.mrf.mxu0
      %v1106 = vadd.f32 0.0, %v1105
      %v1107 = vpop.f32.mrf.mxu0
      %1108 = vmatprep.mubr.f32.mxu0 0.0
      %1109 = vmatmul.mubr.f32.gmra.mxu0 %v909
      %v1110 = vpop.f32.mrf.mxu0
      %v1111 = vadd.f32 0.0, %v1110
      %v1112 = vpop.f32.mrf.mxu0
      %1113 = vmatprep.mubr.f32.mxu0 0.0
      %1114 = vmatmul.mubr.f32.gmra.mxu0 %v912
      %v1115 = vpop.f32.mrf.mxu0
      %v1116 = vadd.f32 0.0, %v1115
      %v1117 = vpop.f32.mrf.mxu0
      %1118 = vmatprep.mubr.f32.mxu0 0.0
      %1119 = vmatmul.mubr.f32.gmra.mxu0 %v915
      %v1120 = vpop.f32.mrf.mxu0
      %v1121 = vadd.f32 0.0, %v1120
      %v1122 = vpop.f32.mrf.mxu0
      %1123 = vmatprep.mubr.f32.mxu0 0.0
      %1124 = vmatmul.mubr.f32.gmra.mxu0 %v918
      %v1125 = vpop.f32.mrf.mxu0
      %v1126 = vadd.f32 0.0, %v1125
      %v1127 = vpop.f32.mrf.mxu0
      %1128 = vmatprep.mubr.f32.mxu0 0.0
      %1129 = vmatmul.mubr.f32.gmra.mxu0 %v921
      %v1130 = vpop.f32.mrf.mxu0
      %v1131 = vadd.f32 0.0, %v1130
      %v1132 = vpop.f32.mrf.mxu0
      %1133 = vmatprep.mubr.f32.mxu0 0.0
      %1134 = vmatmul.mubr.f32.gmra.mxu0 %v924
      %v1135 = vpop.f32.mrf.mxu0
      %v1136 = vadd.f32 0.0, %v1135
      %v1137 = vpop.f32.mrf.mxu0
      %1138 = vmatprep.mubr.f32.mxu0 0.0
      %1139 = vmatmul.mubr.f32.gmra.mxu0 %v927
      %v1140 = vpop.f32.mrf.mxu0
      %v1141 = vadd.f32 0.0, %v1140
      %v1142 = vpop.f32.mrf.mxu0
      %1143 = vmatprep.mubr.f32.mxu0 0.0
      %1144 = vmatmul.mubr.f32.gmra.mxu0 %v930
      %v1145 = vpop.f32.mrf.mxu0
      %v1146 = vadd.f32 0.0, %v1145
      %v1147 = vpop.f32.mrf.mxu0
      %1148 = vmatprep.mubr.f32.mxu0 0.0
      %1149 = vmatmul.mubr.f32.gmra.mxu0 %v933
      %v1150 = vpop.f32.mrf.mxu0
      %v1151 = vadd.f32 0.0, %v1150
      %v1152 = vpop.f32.mrf.mxu0
      %1153 = vmatprep.mubr.f32.mxu0 0.0
      %1154 = vmatmul.mubr.f32.gmra.mxu0 %v936
      %v1155 = vpop.f32.mrf.mxu0
      %v1156 = vadd.f32 0.0, %v1155
      %v1157 = vpop.f32.mrf.mxu0
      %1158 = vmatprep.mubr.f32.mxu0 0.0
      %1159 = vmatmul.mubr.f32.gmra.mxu0 %v939
      %v1160 = vpop.f32.mrf.mxu0
      %v1161 = vadd.f32 0.0, %v1160
      %v1162 = vpop.f32.mrf.mxu0
      %1163 = vmatprep.mubr.f32.mxu0 0.0
      %1164 = vmatmul.mubr.f32.gmra.mxu0 %v942
      %v1165 = vpop.f32.mrf.mxu0
      %v1166 = vadd.f32 0.0, %v1165
      %v1167 = vpop.f32.mrf.mxu0
      %1168 = vdwg.mxu0
      %v1170 = vsel %vm704, %v779, 0
      %v1173 = vsel %vm704, %v780, 0
      %v1176 = vsel %vm704, %v781, 0
      %v1179 = vsel %vm704, %v782, 0
      %v1182 = vsel %vm704, %v783, 0
      %v1185 = vsel %vm704, %v784, 0
      %v1188 = vsel %vm704, %v785, 0
      %v1191 = vsel %vm704, %v786, 0
      %v1194 = vsel %vm704, %v787, 0
      %v1197 = vsel %vm704, %v788, 0
      %v1200 = vsel %vm704, %v789, 0
      %v1203 = vsel %vm704, %v790, 0
      %v1206 = vsel %vm704, %v791, 0
      %v1209 = vsel %vm704, %v792, 0
      %v1212 = vsel %vm704, %v793, 0
      %v1215 = vsel %vm704, %v794, 0
      %v1218 = vsel %vm704, %v795, 0
      %v1221 = vsel %vm704, %v796, 0
      %v1224 = vsel %vm704, %v797, 0
      %v1227 = vsel %vm704, %v798, 0
      %v1230 = vsel %vm704, %v799, 0
      %v1233 = vsel %vm704, %v800, 0
      %v1236 = vsel %vm704, %v801, 0
      %v1239 = vsel %vm704, %v802, 0
      %v1242 = vsel %vm704, %v803, 0
      %v1245 = vsel %vm704, %v804, 0
      %v1248 = vsel %vm704, %v805, 0
      %v1251 = vsel %vm704, %v806, 0
      %v1254 = vsel %vm704, %v807, 0
      %v1257 = vsel %vm704, %v808, 0
      %v1260 = vsel %vm704, %v809, 0
      %v1263 = vsel %vm704, %v810, 0
      %1265 = vmatprep.subr.mxu0 0.0
      %1266 = vmatpush1.msra.mxu0 0.0
      %1267 = vmatprep.subr.mxu0 0.0
      %1268 = vmatpush1.msra.mxu0 0.0
      %1269 = vmatprep.subr.mxu0 0.0
      %1270 = vmatpush1.msra.mxu0 0.0
      %1271 = vmatprep.subr.mxu0 0.0
      %1272 = vmatpush1.msra.mxu0 0.0
      %1273 = vmatprep.subr.mxu0 0.0
      %1274 = vmatpush1.msra.mxu0 0.0
      %1275 = vmatprep.subr.mxu0 0.0
      %1276 = vmatpush1.msra.mxu0 0.0
      %1277 = vmatprep.subr.mxu0 0.0
      %1278 = vmatpush1.msra.mxu0 0.0
      %1279 = vmatprep.subr.mxu0 0.0
      %1280 = vmatpush1.msra.mxu0 0.0
      %1281 = vmatprep.subr.mxu0 0.0
      %1282 = vmatpush1.msra.mxu0 0.0
      %1283 = vmatprep.subr.mxu0 0.0
      %1284 = vmatpush1.msra.mxu0 0.0
      %1285 = vmatprep.subr.mxu0 0.0
      %1286 = vmatpush1.msra.mxu0 0.0
      %1287 = vmatprep.subr.mxu0 0.0
      %1288 = vmatpush1.msra.mxu0 0.0
      %1289 = vmatprep.subr.mxu0 0.0
      %1290 = vmatpush1.msra.mxu0 0.0
      %1291 = vmatprep.subr.mxu0 0.0
      %1292 = vmatpush1.msra.mxu0 0.0
      %1293 = vmatprep.subr.mxu0 0.0
      %1294 = vmatpush1.msra.mxu0 %v812
      %1295 = vmatprep.subr.mxu0 0.0
      %1296 = vmatpush1.msra.mxu0 %v811
      %1297 = vmatprep.subr.mxu0 0.0
      %1298 = vmatpush2.msra.mxu0 0.0
      %1299 = vmatprep.subr.mxu0 0.0
      %1300 = vmatpush2.msra.mxu0 0.0
      %1301 = vmatprep.subr.mxu0 0.0
      %1302 = vmatpush2.msra.mxu0 0.0
      %1303 = vmatprep.subr.mxu0 0.0
      %1304 = vmatpush2.msra.mxu0 0.0
      %1305 = vmatprep.subr.mxu0 0.0
      %1306 = vmatpush2.msra.mxu0 0.0
      %1307 = vmatprep.subr.mxu0 0.0
      %1308 = vmatpush2.msra.mxu0 0.0
      %1309 = vmatprep.subr.mxu0 0.0
      %1310 = vmatpush2.msra.mxu0 0.0
      %1311 = vmatprep.subr.mxu0 0.0
      %1312 = vmatpush2.msra.mxu0 0.0
      %1313 = vmatprep.subr.mxu0 0.0
      %1314 = vmatpush2.msra.mxu0 0.0
      %1315 = vmatprep.subr.mxu0 0.0
      %1316 = vmatpush2.msra.mxu0 0.0
      %1317 = vmatprep.subr.mxu0 0.0
      %1318 = vmatpush2.msra.mxu0 0.0
      %1319 = vmatprep.subr.mxu0 0.0
      %1320 = vmatpush2.msra.mxu0 0.0
      %1321 = vmatprep.subr.mxu0 0.0
      %1322 = vmatpush2.msra.mxu0 0.0
      %1323 = vmatprep.subr.mxu0 0.0
      %1324 = vmatpush2.msra.mxu0 0.0
      %1325 = vmatprep.subr.mxu0 0.0
      %1326 = vmatpush2.msra.mxu0 0.0
      %1327 = vmatprep.subr.mxu0 0.0
      %1328 = vmatpush2.msra.mxu0 0.0
      %1329 = vmatprep.mubr.f32.mxu0 0.0
      %1330 = vmatmul.mubr.f32.gmra.mxu0 %v1170
      %v1331 = vpop.f32.mrf.mxu0
      %v1332 = vadd.f32 %v1011, %v1331
      %v1333 = vpop.f32.mrf.mxu0
      %1334 = vmatprep.mubr.f32.mxu0 0.0
      %1335 = vmatmul.mubr.f32.gmra.mxu0 %v1173
      %v1336 = vpop.f32.mrf.mxu0
      %v1337 = vadd.f32 %v1016, %v1336
      %v1338 = vpop.f32.mrf.mxu0
      %1339 = vmatprep.mubr.f32.mxu0 0.0
      %1340 = vmatmul.mubr.f32.gmra.mxu0 %v1176
      %v1341 = vpop.f32.mrf.mxu0
      %v1342 = vadd.f32 %v1021, %v1341
      %v1343 = vpop.f32.mrf.mxu0
      %1344 = vmatprep.mubr.f32.mxu0 0.0
      %1345 = vmatmul.mubr.f32.gmra.mxu0 %v1179
      %v1346 = vpop.f32.mrf.mxu0
      %v1347 = vadd.f32 %v1026, %v1346
      %v1348 = vpop.f32.mrf.mxu0
      %1349 = vmatprep.mubr.f32.mxu0 0.0
      %1350 = vmatmul.mubr.f32.gmra.mxu0 %v1182
      %v1351 = vpop.f32.mrf.mxu0
      %v1352 = vadd.f32 %v1031, %v1351
      %v1353 = vpop.f32.mrf.mxu0
      %1354 = vmatprep.mubr.f32.mxu0 0.0
      %1355 = vmatmul.mubr.f32.gmra.mxu0 %v1185
      %v1356 = vpop.f32.mrf.mxu0
      %v1357 = vadd.f32 %v1036, %v1356
      %v1358 = vpop.f32.mrf.mxu0
      %1359 = vmatprep.mubr.f32.mxu0 0.0
      %1360 = vmatmul.mubr.f32.gmra.mxu0 %v1188
      %v1361 = vpop.f32.mrf.mxu0
      %v1362 = vadd.f32 %v1041, %v1361
      %v1363 = vpop.f32.mrf.mxu0
      %1364 = vmatprep.mubr.f32.mxu0 0.0
      %1365 = vmatmul.mubr.f32.gmra.mxu0 %v1191
      %v1366 = vpop.f32.mrf.mxu0
      %v1367 = vadd.f32 %v1046, %v1366
      %v1368 = vpop.f32.mrf.mxu0
      %1369 = vmatprep.mubr.f32.mxu0 0.0
      %1370 = vmatmul.mubr.f32.gmra.mxu0 %v1194
      %v1371 = vpop.f32.mrf.mxu0
      %v1372 = vadd.f32 %v1051, %v1371
      %v1373 = vpop.f32.mrf.mxu0
      %1374 = vmatprep.mubr.f32.mxu0 0.0
      %1375 = vmatmul.mubr.f32.gmra.mxu0 %v1197
      %v1376 = vpop.f32.mrf.mxu0
      %v1377 = vadd.f32 %v1056, %v1376
      %v1378 = vpop.f32.mrf.mxu0
      %1379 = vmatprep.mubr.f32.mxu0 0.0
      %1380 = vmatmul.mubr.f32.gmra.mxu0 %v1200
      %v1381 = vpop.f32.mrf.mxu0
      %v1382 = vadd.f32 %v1061, %v1381
      %v1383 = vpop.f32.mrf.mxu0
      %1384 = vmatprep.mubr.f32.mxu0 0.0
      %1385 = vmatmul.mubr.f32.gmra.mxu0 %v1203
      %v1386 = vpop.f32.mrf.mxu0
      %v1387 = vadd.f32 %v1066, %v1386
      %v1388 = vpop.f32.mrf.mxu0
      %1389 = vmatprep.mubr.f32.mxu0 0.0
      %1390 = vmatmul.mubr.f32.gmra.mxu0 %v1206
      %v1391 = vpop.f32.mrf.mxu0
      %v1392 = vadd.f32 %v1071, %v1391
      %v1393 = vpop.f32.mrf.mxu0
      %1394 = vmatprep.mubr.f32.mxu0 0.0
      %1395 = vmatmul.mubr.f32.gmra.mxu0 %v1209
      %v1396 = vpop.f32.mrf.mxu0
      %v1397 = vadd.f32 %v1076, %v1396
      %v1398 = vpop.f32.mrf.mxu0
      %1399 = vmatprep.mubr.f32.mxu0 0.0
      %1400 = vmatmul.mubr.f32.gmra.mxu0 %v1212
      %v1401 = vpop.f32.mrf.mxu0
      %v1402 = vadd.f32 %v1081, %v1401
      %v1403 = vpop.f32.mrf.mxu0
      %1404 = vmatprep.mubr.f32.mxu0 0.0
      %1405 = vmatmul.mubr.f32.gmra.mxu0 %v1215
      %v1406 = vpop.f32.mrf.mxu0
      %v1407 = vadd.f32 %v1086, %v1406
      %v1408 = vpop.f32.mrf.mxu0
      %1409 = vmatprep.mubr.f32.mxu0 0.0
      %1410 = vmatmul.mubr.f32.gmra.mxu0 %v1218
      %v1411 = vpop.f32.mrf.mxu0
      %v1412 = vadd.f32 %v1091, %v1411
      %v1413 = vpop.f32.mrf.mxu0
      %1414 = vmatprep.mubr.f32.mxu0 0.0
      %1415 = vmatmul.mubr.f32.gmra.mxu0 %v1221
      %v1416 = vpop.f32.mrf.mxu0
      %v1417 = vadd.f32 %v1096, %v1416
      %v1418 = vpop.f32.mrf.mxu0
      %1419 = vmatprep.mubr.f32.mxu0 0.0
      %1420 = vmatmul.mubr.f32.gmra.mxu0 %v1224
      %v1421 = vpop.f32.mrf.mxu0
      %v1422 = vadd.f32 %v1101, %v1421
      %v1423 = vpop.f32.mrf.mxu0
      %1424 = vmatprep.mubr.f32.mxu0 0.0
      %1425 = vmatmul.mubr.f32.gmra.mxu0 %v1227
      %v1426 = vpop.f32.mrf.mxu0
      %v1427 = vadd.f32 %v1106, %v1426
      %v1428 = vpop.f32.mrf.mxu0
      %1429 = vmatprep.mubr.f32.mxu0 0.0
      %1430 = vmatmul.mubr.f32.gmra.mxu0 %v1230
      %v1431 = vpop.f32.mrf.mxu0
      %v1432 = vadd.f32 %v1111, %v1431
      %v1433 = vpop.f32.mrf.mxu0
      %1434 = vmatprep.mubr.f32.mxu0 0.0
      %1435 = vmatmul.mubr.f32.gmra.mxu0 %v1233
      %v1436 = vpop.f32.mrf.mxu0
      %v1437 = vadd.f32 %v1116, %v1436
      %v1438 = vpop.f32.mrf.mxu0
      %1439 = vmatprep.mubr.f32.mxu0 0.0
      %1440 = vmatmul.mubr.f32.gmra.mxu0 %v1236
      %v1441 = vpop.f32.mrf.mxu0
      %v1442 = vadd.f32 %v1121, %v1441
      %v1443 = vpop.f32.mrf.mxu0
      %1444 = vmatprep.mubr.f32.mxu0 0.0
      %1445 = vmatmul.mubr.f32.gmra.mxu0 %v1239
      %v1446 = vpop.f32.mrf.mxu0
      %v1447 = vadd.f32 %v1126, %v1446
      %v1448 = vpop.f32.mrf.mxu0
      %1449 = vmatprep.mubr.f32.mxu0 0.0
      %1450 = vmatmul.mubr.f32.gmra.mxu0 %v1242
      %v1451 = vpop.f32.mrf.mxu0
      %v1452 = vadd.f32 %v1131, %v1451
      %v1453 = vpop.f32.mrf.mxu0
      %1454 = vmatprep.mubr.f32.mxu0 0.0
      %1455 = vmatmul.mubr.f32.gmra.mxu0 %v1245
      %v1456 = vpop.f32.mrf.mxu0
      %v1457 = vadd.f32 %v1136, %v1456
      %v1458 = vpop.f32.mrf.mxu0
      %1459 = vmatprep.mubr.f32.mxu0 0.0
      %1460 = vmatmul.mubr.f32.gmra.mxu0 %v1248
      %v1461 = vpop.f32.mrf.mxu0
      %v1462 = vadd.f32 %v1141, %v1461
      %v1463 = vpop.f32.mrf.mxu0
      %1464 = vmatprep.mubr.f32.mxu0 0.0
      %1465 = vmatmul.mubr.f32.gmra.mxu0 %v1251
      %v1466 = vpop.f32.mrf.mxu0
      %v1467 = vadd.f32 %v1146, %v1466
      %v1468 = vpop.f32.mrf.mxu0
      %1469 = vmatprep.mubr.f32.mxu0 0.0
      %1470 = vmatmul.mubr.f32.gmra.mxu0 %v1254
      %v1471 = vpop.f32.mrf.mxu0
      %v1472 = vadd.f32 %v1151, %v1471
      %v1473 = vpop.f32.mrf.mxu0
      %1474 = vmatprep.mubr.f32.mxu0 0.0
      %1475 = vmatmul.mubr.f32.gmra.mxu0 %v1257
      %v1476 = vpop.f32.mrf.mxu0
      %v1477 = vadd.f32 %v1156, %v1476
      %v1478 = vpop.f32.mrf.mxu0
      %1479 = vmatprep.mubr.f32.mxu0 0.0
      %1480 = vmatmul.mubr.f32.gmra.mxu0 %v1260
      %v1481 = vpop.f32.mrf.mxu0
      %v1482 = vadd.f32 %v1161, %v1481
      %v1483 = vpop.f32.mrf.mxu0
      %1484 = vmatprep.mubr.f32.mxu0 0.0
      %1485 = vmatmul.mubr.f32.gmra.mxu0 %v1263
      %v1486 = vpop.f32.mrf.mxu0
      %v1487 = vadd.f32 %v1166, %v1486
      %v1488 = vpop.f32.mrf.mxu0
      %1489 = vdwg.mxu0
      %v1490 = vld [vmem:[#allocation2 + $0x2] sm:$0xff]
      %v1491 = vld [vmem:[#allocation2 + $0xa] sm:$0xff]
      %v1492 = vld [vmem:[#allocation2 + $0x1a] sm:$0xff]
      %v1493 = vld [vmem:[#allocation2 + $0x22] sm:$0xff]
      %v1494 = vld [vmem:[#allocation2 + $0x32] sm:$0xff]
      %v1495 = vld [vmem:[#allocation2 + $0x3a] sm:$0xff]
      %v1496 = vld [vmem:[#allocation2 + $0x4a] sm:$0xff]
      %v1497 = vld [vmem:[#allocation2 + $0x52] sm:$0xff]
      %v1498 = vld [vmem:[#allocation2 + $0x62] sm:$0xff]
      %v1499 = vld [vmem:[#allocation2 + $0x6a] sm:$0xff]
      %v1500 = vld [vmem:[#allocation2 + $0x7a] sm:$0xff]
      %v1501 = vld [vmem:[#allocation2 + $0x82] sm:$0xff]
      %v1502 = vld [vmem:[#allocation2 + $0x92] sm:$0xff]
      %v1503 = vld [vmem:[#allocation2 + $0x9a] sm:$0xff]
      %v1504 = vld [vmem:[#allocation2 + $0xaa] sm:$0xff]
      %v1505 = vld [vmem:[#allocation2 + $0xb2] sm:$0xff]
      %v1506 = vld [vmem:[#allocation2 + $0xc2] sm:$0xff]
      %v1507 = vld [vmem:[#allocation2 + $0xca] sm:$0xff]
      %v1508 = vld [vmem:[#allocation2 + $0xda] sm:$0xff]
      %v1509 = vld [vmem:[#allocation2 + $0xe2] sm:$0xff]
      %v1510 = vld [vmem:[#allocation2 + $0xf2] sm:$0xff]
      %v1511 = vld [vmem:[#allocation2 + $0xfa] sm:$0xff]
      %v1512 = vld [vmem:[#allocation2 + $0x10a] sm:$0xff]
      %v1513 = vld [vmem:[#allocation2 + $0x112] sm:$0xff]
      %v1514 = vld [vmem:[#allocation2 + $0x122] sm:$0xff]
      %v1515 = vld [vmem:[#allocation2 + $0x12a] sm:$0xff]
      %v1516 = vld [vmem:[#allocation2 + $0x13a] sm:$0xff]
      %v1517 = vld [vmem:[#allocation2 + $0x142] sm:$0xff]
      %v1518 = vld [vmem:[#allocation2 + $0x152] sm:$0xff]
      %v1519 = vld [vmem:[#allocation2 + $0x15a] sm:$0xff]
      %v1520 = vld [vmem:[#allocation2 + $0x16a] sm:$0xff]
      %v1521 = vld [vmem:[#allocation2 + $0x172] sm:$0xff]
      %s1522 = scalar_lea.vmem %s2, 32
      %v1523 = vld [vmem:[%s1522] sm:$0xff]
      %v1524 = vld [vmem:[%s1522 + $0x8] sm:$0xff]
      %v1526 = vsel %vm704, %v1490, 0
      %v1529 = vsel %vm704, %v1491, 0
      %v1532 = vsel %vm704, %v1492, 0
      %v1535 = vsel %vm704, %v1493, 0
      %v1538 = vsel %vm704, %v1494, 0
      %v1541 = vsel %vm704, %v1495, 0
      %v1544 = vsel %vm704, %v1496, 0
      %v1547 = vsel %vm704, %v1497, 0
      %v1550 = vsel %vm704, %v1498, 0
      %v1553 = vsel %vm704, %v1499, 0
      %v1556 = vsel %vm704, %v1500, 0
      %v1559 = vsel %vm704, %v1501, 0
      %v1562 = vsel %vm704, %v1502, 0
      %v1565 = vsel %vm704, %v1503, 0
      %v1568 = vsel %vm704, %v1504, 0
      %v1571 = vsel %vm704, %v1505, 0
      %v1574 = vsel %vm704, %v1506, 0
      %v1577 = vsel %vm704, %v1507, 0
      %v1580 = vsel %vm704, %v1508, 0
      %v1583 = vsel %vm704, %v1509, 0
      %v1586 = vsel %vm704, %v1510, 0
      %v1589 = vsel %vm704, %v1511, 0
      %v1592 = vsel %vm704, %v1512, 0
      %v1595 = vsel %vm704, %v1513, 0
      %v1598 = vsel %vm704, %v1514, 0
      %v1601 = vsel %vm704, %v1515, 0
      %v1604 = vsel %vm704, %v1516, 0
      %v1607 = vsel %vm704, %v1517, 0
      %v1610 = vsel %vm704, %v1518, 0
      %v1613 = vsel %vm704, %v1519, 0
      %v1616 = vsel %vm704, %v1520, 0
      %v1619 = vsel %vm704, %v1521, 0
      %1621 = vmatprep.subr.mxu0 0.0
      %1622 = vmatpush1.msra.mxu0 0.0
      %1623 = vmatprep.subr.mxu0 0.0
      %1624 = vmatpush1.msra.mxu0 0.0
      %1625 = vmatprep.subr.mxu0 0.0
      %1626 = vmatpush1.msra.mxu0 0.0
      %1627 = vmatprep.subr.mxu0 0.0
      %1628 = vmatpush1.msra.mxu0 0.0
      %1629 = vmatprep.subr.mxu0 0.0
      %1630 = vmatpush1.msra.mxu0 0.0
      %1631 = vmatprep.subr.mxu0 0.0
      %1632 = vmatpush1.msra.mxu0 0.0
      %1633 = vmatprep.subr.mxu0 0.0
      %1634 = vmatpush1.msra.mxu0 0.0
      %1635 = vmatprep.subr.mxu0 0.0
      %1636 = vmatpush1.msra.mxu0 0.0
      %1637 = vmatprep.subr.mxu0 0.0
      %1638 = vmatpush1.msra.mxu0 0.0
      %1639 = vmatprep.subr.mxu0 0.0
      %1640 = vmatpush1.msra.mxu0 0.0
      %1641 = vmatprep.subr.mxu0 0.0
      %1642 = vmatpush1.msra.mxu0 0.0
      %1643 = vmatprep.subr.mxu0 0.0
      %1644 = vmatpush1.msra.mxu0 0.0
      %1645 = vmatprep.subr.mxu0 0.0
      %1646 = vmatpush1.msra.mxu0 0.0
      %1647 = vmatprep.subr.mxu0 0.0
      %1648 = vmatpush1.msra.mxu0 0.0
      %1649 = vmatprep.subr.mxu0 0.0
      %1650 = vmatpush1.msra.mxu0 %v1524
      %1651 = vmatprep.subr.mxu0 0.0
      %1652 = vmatpush1.msra.mxu0 %v1523
      %1653 = vmatprep.subr.mxu0 0.0
      %1654 = vmatpush2.msra.mxu0 0.0
      %1655 = vmatprep.subr.mxu0 0.0
      %1656 = vmatpush2.msra.mxu0 0.0
      %1657 = vmatprep.subr.mxu0 0.0
      %1658 = vmatpush2.msra.mxu0 0.0
      %1659 = vmatprep.subr.mxu0 0.0
      %1660 = vmatpush2.msra.mxu0 0.0
      %1661 = vmatprep.subr.mxu0 0.0
      %1662 = vmatpush2.msra.mxu0 0.0
      %1663 = vmatprep.subr.mxu0 0.0
      %1664 = vmatpush2.msra.mxu0 0.0
      %1665 = vmatprep.subr.mxu0 0.0
      %1666 = vmatpush2.msra.mxu0 0.0
      %1667 = vmatprep.subr.mxu0 0.0
      %1668 = vmatpush2.msra.mxu0 0.0
      %1669 = vmatprep.subr.mxu0 0.0
      %1670 = vmatpush2.msra.mxu0 0.0
      %1671 = vmatprep.subr.mxu0 0.0
      %1672 = vmatpush2.msra.mxu0 0.0
      %1673 = vmatprep.subr.mxu0 0.0
      %1674 = vmatpush2.msra.mxu0 0.0
      %1675 = vmatprep.subr.mxu0 0.0
      %1676 = vmatpush2.msra.mxu0 0.0
      %1677 = vmatprep.subr.mxu0 0.0
      %1678 = vmatpush2.msra.mxu0 0.0
      %1679 = vmatprep.subr.mxu0 0.0
      %1680 = vmatpush2.msra.mxu0 0.0
      %1681 = vmatprep.subr.mxu0 0.0
      %1682 = vmatpush2.msra.mxu0 0.0
      %1683 = vmatprep.subr.mxu0 0.0
      %1684 = vmatpush2.msra.mxu0 0.0
      %1685 = vmatprep.mubr.f32.mxu0 0.0
      %1686 = vmatmul.mubr.f32.gmra.mxu0 %v1526
      %v1687 = vpop.f32.mrf.mxu0
      %v1688 = vadd.f32 0.0, %v1687
      %v1689 = vpop.f32.mrf.mxu0
      %1690 = vmatprep.mubr.f32.mxu0 0.0
      %1691 = vmatmul.mubr.f32.gmra.mxu0 %v1529
      %v1692 = vpop.f32.mrf.mxu0
      %v1693 = vadd.f32 0.0, %v1692
      %v1694 = vpop.f32.mrf.mxu0
      %1695 = vmatprep.mubr.f32.mxu0 0.0
      %1696 = vmatmul.mubr.f32.gmra.mxu0 %v1532
      %v1697 = vpop.f32.mrf.mxu0
      %v1698 = vadd.f32 0.0, %v1697
      %v1699 = vpop.f32.mrf.mxu0
      %1700 = vmatprep.mubr.f32.mxu0 0.0
      %1701 = vmatmul.mubr.f32.gmra.mxu0 %v1535
      %v1702 = vpop.f32.mrf.mxu0
      %v1703 = vadd.f32 0.0, %v1702
      %v1704 = vpop.f32.mrf.mxu0
      %1705 = vmatprep.mubr.f32.mxu0 0.0
      %1706 = vmatmul.mubr.f32.gmra.mxu0 %v1538
      %v1707 = vpop.f32.mrf.mxu0
      %v1708 = vadd.f32 0.0, %v1707
      %v1709 = vpop.f32.mrf.mxu0
      %1710 = vmatprep.mubr.f32.mxu0 0.0
      %1711 = vmatmul.mubr.f32.gmra.mxu0 %v1541
      %v1712 = vpop.f32.mrf.mxu0
      %v1713 = vadd.f32 0.0, %v1712
      %v1714 = vpop.f32.mrf.mxu0
      %1715 = vmatprep.mubr.f32.mxu0 0.0
      %1716 = vmatmul.mubr.f32.gmra.mxu0 %v1544
      %v1717 = vpop.f32.mrf.mxu0
      %v1718 = vadd.f32 0.0, %v1717
      %v1719 = vpop.f32.mrf.mxu0
      %1720 = vmatprep.mubr.f32.mxu0 0.0
      %1721 = vmatmul.mubr.f32.gmra.mxu0 %v1547
      %v1722 = vpop.f32.mrf.mxu0
      %v1723 = vadd.f32 0.0, %v1722
      %v1724 = vpop.f32.mrf.mxu0
      %1725 = vmatprep.mubr.f32.mxu0 0.0
      %1726 = vmatmul.mubr.f32.gmra.mxu0 %v1550
      %v1727 = vpop.f32.mrf.mxu0
      %v1728 = vadd.f32 0.0, %v1727
      %v1729 = vpop.f32.mrf.mxu0
      %1730 = vmatprep.mubr.f32.mxu0 0.0
      %1731 = vmatmul.mubr.f32.gmra.mxu0 %v1553
      %v1732 = vpop.f32.mrf.mxu0
      %v1733 = vadd.f32 0.0, %v1732
      %v1734 = vpop.f32.mrf.mxu0
      %1735 = vmatprep.mubr.f32.mxu0 0.0
      %1736 = vmatmul.mubr.f32.gmra.mxu0 %v1556
      %v1737 = vpop.f32.mrf.mxu0
      %v1738 = vadd.f32 0.0, %v1737
      %v1739 = vpop.f32.mrf.mxu0
      %1740 = vmatprep.mubr.f32.mxu0 0.0
      %1741 = vmatmul.mubr.f32.gmra.mxu0 %v1559
      %v1742 = vpop.f32.mrf.mxu0
      %v1743 = vadd.f32 0.0, %v1742
      %v1744 = vpop.f32.mrf.mxu0
      %1745 = vmatprep.mubr.f32.mxu0 0.0
      %1746 = vmatmul.mubr.f32.gmra.mxu0 %v1562
      %v1747 = vpop.f32.mrf.mxu0
      %v1748 = vadd.f32 0.0, %v1747
      %v1749 = vpop.f32.mrf.mxu0
      %1750 = vmatprep.mubr.f32.mxu0 0.0
      %1751 = vmatmul.mubr.f32.gmra.mxu0 %v1565
      %v1752 = vpop.f32.mrf.mxu0
      %v1753 = vadd.f32 0.0, %v1752
      %v1754 = vpop.f32.mrf.mxu0
      %1755 = vmatprep.mubr.f32.mxu0 0.0
      %1756 = vmatmul.mubr.f32.gmra.mxu0 %v1568
      %v1757 = vpop.f32.mrf.mxu0
      %v1758 = vadd.f32 0.0, %v1757
      %v1759 = vpop.f32.mrf.mxu0
      %1760 = vmatprep.mubr.f32.mxu0 0.0
      %1761 = vmatmul.mubr.f32.gmra.mxu0 %v1571
      %v1762 = vpop.f32.mrf.mxu0
      %v1763 = vadd.f32 0.0, %v1762
      %v1764 = vpop.f32.mrf.mxu0
      %1765 = vmatprep.mubr.f32.mxu0 0.0
      %1766 = vmatmul.mubr.f32.gmra.mxu0 %v1574
      %v1767 = vpop.f32.mrf.mxu0
      %v1768 = vadd.f32 0.0, %v1767
      %v1769 = vpop.f32.mrf.mxu0
      %1770 = vmatprep.mubr.f32.mxu0 0.0
      %1771 = vmatmul.mubr.f32.gmra.mxu0 %v1577
      %v1772 = vpop.f32.mrf.mxu0
      %v1773 = vadd.f32 0.0, %v1772
      %v1774 = vpop.f32.mrf.mxu0
      %1775 = vmatprep.mubr.f32.mxu0 0.0
      %1776 = vmatmul.mubr.f32.gmra.mxu0 %v1580
      %v1777 = vpop.f32.mrf.mxu0
      %v1778 = vadd.f32 0.0, %v1777
      %v1779 = vpop.f32.mrf.mxu0
      %1780 = vmatprep.mubr.f32.mxu0 0.0
      %1781 = vmatmul.mubr.f32.gmra.mxu0 %v1583
      %v1782 = vpop.f32.mrf.mxu0
      %v1783 = vadd.f32 0.0, %v1782
      %v1784 = vpop.f32.mrf.mxu0
      %1785 = vmatprep.mubr.f32.mxu0 0.0
      %1786 = vmatmul.mubr.f32.gmra.mxu0 %v1586
      %v1787 = vpop.f32.mrf.mxu0
      %v1788 = vadd.f32 0.0, %v1787
      %v1789 = vpop.f32.mrf.mxu0
      %1790 = vmatprep.mubr.f32.mxu0 0.0
      %1791 = vmatmul.mubr.f32.gmra.mxu0 %v1589
      %v1792 = vpop.f32.mrf.mxu0
      %v1793 = vadd.f32 0.0, %v1792
      %v1794 = vpop.f32.mrf.mxu0
      %1795 = vmatprep.mubr.f32.mxu0 0.0
      %1796 = vmatmul.mubr.f32.gmra.mxu0 %v1592
      %v1797 = vpop.f32.mrf.mxu0
      %v1798 = vadd.f32 0.0, %v1797
      %v1799 = vpop.f32.mrf.mxu0
      %1800 = vmatprep.mubr.f32.mxu0 0.0
      %1801 = vmatmul.mubr.f32.gmra.mxu0 %v1595
      %v1802 = vpop.f32.mrf.mxu0
      %v1803 = vadd.f32 0.0, %v1802
      %v1804 = vpop.f32.mrf.mxu0
      %1805 = vmatprep.mubr.f32.mxu0 0.0
      %1806 = vmatmul.mubr.f32.gmra.mxu0 %v1598
      %v1807 = vpop.f32.mrf.mxu0
      %v1808 = vadd.f32 0.0, %v1807
      %v1809 = vpop.f32.mrf.mxu0
      %1810 = vmatprep.mubr.f32.mxu0 0.0
      %1811 = vmatmul.mubr.f32.gmra.mxu0 %v1601
      %v1812 = vpop.f32.mrf.mxu0
      %v1813 = vadd.f32 0.0, %v1812
      %v1814 = vpop.f32.mrf.mxu0
      %1815 = vmatprep.mubr.f32.mxu0 0.0
      %1816 = vmatmul.mubr.f32.gmra.mxu0 %v1604
      %v1817 = vpop.f32.mrf.mxu0
      %v1818 = vadd.f32 0.0, %v1817
      %v1819 = vpop.f32.mrf.mxu0
      %1820 = vmatprep.mubr.f32.mxu0 0.0
      %1821 = vmatmul.mubr.f32.gmra.mxu0 %v1607
      %v1822 = vpop.f32.mrf.mxu0
      %v1823 = vadd.f32 0.0, %v1822
      %v1824 = vpop.f32.mrf.mxu0
      %1825 = vmatprep.mubr.f32.mxu0 0.0
      %1826 = vmatmul.mubr.f32.gmra.mxu0 %v1610
      %v1827 = vpop.f32.mrf.mxu0
      %v1828 = vadd.f32 0.0, %v1827
      %v1829 = vpop.f32.mrf.mxu0
      %1830 = vmatprep.mubr.f32.mxu0 0.0
      %1831 = vmatmul.mubr.f32.gmra.mxu0 %v1613
      %v1832 = vpop.f32.mrf.mxu0
      %v1833 = vadd.f32 0.0, %v1832
      %v1834 = vpop.f32.mrf.mxu0
      %1835 = vmatprep.mubr.f32.mxu0 0.0
      %1836 = vmatmul.mubr.f32.gmra.mxu0 %v1616
      %v1837 = vpop.f32.mrf.mxu0
      %v1838 = vadd.f32 0.0, %v1837
      %v1839 = vpop.f32.mrf.mxu0
      %1840 = vmatprep.mubr.f32.mxu0 0.0
      %1841 = vmatmul.mubr.f32.gmra.mxu0 %v1619
      %v1842 = vpop.f32.mrf.mxu0
      %v1843 = vadd.f32 0.0, %v1842
      %v1844 = vpop.f32.mrf.mxu0
      %1845 = vdwg.mxu0
      %v1846 = vadd.f32 %v1332, %v1688
      %v1847 = vadd.f32 %v1337, %v1693
      %v1848 = vadd.f32 %v1342, %v1698
      %v1849 = vadd.f32 %v1347, %v1703
      %v1850 = vadd.f32 %v1352, %v1708
      %v1851 = vadd.f32 %v1357, %v1713
      %v1852 = vadd.f32 %v1362, %v1718
      %v1853 = vadd.f32 %v1367, %v1723
      %v1854 = vadd.f32 %v1372, %v1728
      %v1855 = vadd.f32 %v1377, %v1733
      %v1856 = vadd.f32 %v1382, %v1738
      %v1857 = vadd.f32 %v1387, %v1743
      %v1858 = vadd.f32 %v1392, %v1748
      %v1859 = vadd.f32 %v1397, %v1753
      %v1860 = vadd.f32 %v1402, %v1758
      %v1861 = vadd.f32 %v1407, %v1763
      %v1862 = vadd.f32 %v1412, %v1768
      %v1863 = vadd.f32 %v1417, %v1773
      %v1864 = vadd.f32 %v1422, %v1778
      %v1865 = vadd.f32 %v1427, %v1783
      %v1866 = vadd.f32 %v1432, %v1788
      %v1867 = vadd.f32 %v1437, %v1793
      %v1868 = vadd.f32 %v1442, %v1798
      %v1869 = vadd.f32 %v1447, %v1803
      %v1870 = vadd.f32 %v1452, %v1808
      %v1871 = vadd.f32 %v1457, %v1813
      %v1872 = vadd.f32 %v1462, %v1818
      %v1873 = vadd.f32 %v1467, %v1823
      %v1874 = vadd.f32 %v1472, %v1828
      %v1875 = vadd.f32 %v1477, %v1833
      %v1876 = vadd.f32 %v1482, %v1838
      %v1877 = vadd.f32 %v1487, %v1843
      %v1878 = vld [vmem:[%s713] sm:$0xff]
      %v1879 = vld [vmem:[%s713 + $0x8] sm:$0xff]
      %v1880 = vld [vmem:[%s713 + $0x18] sm:$0xff]
      %v1881 = vld [vmem:[%s713 + $0x20] sm:$0xff]
      %v1882 = vld [vmem:[%s713 + $0x30] sm:$0xff]
      %v1883 = vld [vmem:[%s713 + $0x38] sm:$0xff]
      %v1884 = vld [vmem:[%s713 + $0x48] sm:$0xff]
      %v1885 = vld [vmem:[%s713 + $0x50] sm:$0xff]
      %v1886 = vld [vmem:[%s713 + $0x60] sm:$0xff]
      %v1887 = vld [vmem:[%s713 + $0x68] sm:$0xff]
      %v1888 = vld [vmem:[%s713 + $0x78] sm:$0xff]
      %v1889 = vld [vmem:[%s713 + $0x80] sm:$0xff]
      %v1890 = vld [vmem:[%s713 + $0x90] sm:$0xff]
      %v1891 = vld [vmem:[%s713 + $0x98] sm:$0xff]
      %v1892 = vld [vmem:[%s713 + $0xa8] sm:$0xff]
      %v1893 = vld [vmem:[%s713 + $0xb0] sm:$0xff]
      %v1894 = vld [vmem:[%s713 + $0xc0] sm:$0xff]
      %v1895 = vld [vmem:[%s713 + $0xc8] sm:$0xff]
      %v1896 = vld [vmem:[%s713 + $0xd8] sm:$0xff]
      %v1897 = vld [vmem:[%s713 + $0xe0] sm:$0xff]
      %v1898 = vld [vmem:[%s713 + $0xf0] sm:$0xff]
      %v1899 = vld [vmem:[%s713 + $0xf8] sm:$0xff]
      %v1900 = vld [vmem:[%s713 + $0x108] sm:$0xff]
      %v1901 = vld [vmem:[%s713 + $0x110] sm:$0xff]
      %v1902 = vld [vmem:[%s713 + $0x120] sm:$0xff]
      %v1903 = vld [vmem:[%s713 + $0x128] sm:$0xff]
      %v1904 = vld [vmem:[%s713 + $0x138] sm:$0xff]
      %v1905 = vld [vmem:[%s713 + $0x140] sm:$0xff]
      %v1906 = vld [vmem:[%s713 + $0x150] sm:$0xff]
      %v1907 = vld [vmem:[%s713 + $0x158] sm:$0xff]
      %v1908 = vld [vmem:[%s713 + $0x168] sm:$0xff]
      %v1909 = vld [vmem:[%s713 + $0x170] sm:$0xff]
      %s1910 = scalar_lea.vmem %s2, 48
      %v1911 = vld [vmem:[%s1910] sm:$0xff]
      %v1912 = vld [vmem:[%s1910 + $0x8] sm:$0xff]
      %v1914 = vsel %vm704, %v1878, 0
      %v1917 = vsel %vm704, %v1879, 0
      %v1920 = vsel %vm704, %v1880, 0
      %v1923 = vsel %vm704, %v1881, 0
      %v1926 = vsel %vm704, %v1882, 0
      %v1929 = vsel %vm704, %v1883, 0
      %v1932 = vsel %vm704, %v1884, 0
      %v1935 = vsel %vm704, %v1885, 0
      %v1938 = vsel %vm704, %v1886, 0
      %v1941 = vsel %vm704, %v1887, 0
      %v1944 = vsel %vm704, %v1888, 0
      %v1947 = vsel %vm704, %v1889, 0
      %v1950 = vsel %vm704, %v1890, 0
      %v1953 = vsel %vm704, %v1891, 0
      %v1956 = vsel %vm704, %v1892, 0
      %v1959 = vsel %vm704, %v1893, 0
      %v1962 = vsel %vm704, %v1894, 0
      %v1965 = vsel %vm704, %v1895, 0
      %v1968 = vsel %vm704, %v1896, 0
      %v1971 = vsel %vm704, %v1897, 0
      %v1974 = vsel %vm704, %v1898, 0
      %v1977 = vsel %vm704, %v1899, 0
      %v1980 = vsel %vm704, %v1900, 0
      %v1983 = vsel %vm704, %v1901, 0
      %v1986 = vsel %vm704, %v1902, 0
      %v1989 = vsel %vm704, %v1903, 0
      %v1992 = vsel %vm704, %v1904, 0
      %v1995 = vsel %vm704, %v1905, 0
      %v1998 = vsel %vm704, %v1906, 0
      %v2001 = vsel %vm704, %v1907, 0
      %v2004 = vsel %vm704, %v1908, 0
      %v2007 = vsel %vm704, %v1909, 0
      %2009 = vmatprep.subr.mxu0 0.0
      %2010 = vmatpush1.msra.mxu0 0.0
      %2011 = vmatprep.subr.mxu0 0.0
      %2012 = vmatpush1.msra.mxu0 0.0
      %2013 = vmatprep.subr.mxu0 0.0
      %2014 = vmatpush1.msra.mxu0 0.0
      %2015 = vmatprep.subr.mxu0 0.0
      %2016 = vmatpush1.msra.mxu0 0.0
      %2017 = vmatprep.subr.mxu0 0.0
      %2018 = vmatpush1.msra.mxu0 0.0
      %2019 = vmatprep.subr.mxu0 0.0
      %2020 = vmatpush1.msra.mxu0 0.0
      %2021 = vmatprep.subr.mxu0 0.0
      %2022 = vmatpush1.msra.mxu0 0.0
      %2023 = vmatprep.subr.mxu0 0.0
      %2024 = vmatpush1.msra.mxu0 0.0
      %2025 = vmatprep.subr.mxu0 0.0
      %2026 = vmatpush1.msra.mxu0 0.0
      %2027 = vmatprep.subr.mxu0 0.0
      %2028 = vmatpush1.msra.mxu0 0.0
      %2029 = vmatprep.subr.mxu0 0.0
      %2030 = vmatpush1.msra.mxu0 0.0
      %2031 = vmatprep.subr.mxu0 0.0
      %2032 = vmatpush1.msra.mxu0 0.0
      %2033 = vmatprep.subr.mxu0 0.0
      %2034 = vmatpush1.msra.mxu0 0.0
      %2035 = vmatprep.subr.mxu0 0.0
      %2036 = vmatpush1.msra.mxu0 0.0
      %2037 = vmatprep.subr.mxu0 0.0
      %2038 = vmatpush1.msra.mxu0 %v1912
      %2039 = vmatprep.subr.mxu0 0.0
      %2040 = vmatpush1.msra.mxu0 %v1911
      %2041 = vmatprep.subr.mxu0 0.0
      %2042 = vmatpush2.msra.mxu0 0.0
      %2043 = vmatprep.subr.mxu0 0.0
      %2044 = vmatpush2.msra.mxu0 0.0
      %2045 = vmatprep.subr.mxu0 0.0
      %2046 = vmatpush2.msra.mxu0 0.0
      %2047 = vmatprep.subr.mxu0 0.0
      %2048 = vmatpush2.msra.mxu0 0.0
      %2049 = vmatprep.subr.mxu0 0.0
      %2050 = vmatpush2.msra.mxu0 0.0
      %2051 = vmatprep.subr.mxu0 0.0
      %2052 = vmatpush2.msra.mxu0 0.0
      %2053 = vmatprep.subr.mxu0 0.0
      %2054 = vmatpush2.msra.mxu0 0.0
      %2055 = vmatprep.subr.mxu0 0.0
      %2056 = vmatpush2.msra.mxu0 0.0
      %2057 = vmatprep.subr.mxu0 0.0
      %2058 = vmatpush2.msra.mxu0 0.0
      %2059 = vmatprep.subr.mxu0 0.0
      %2060 = vmatpush2.msra.mxu0 0.0
      %2061 = vmatprep.subr.mxu0 0.0
      %2062 = vmatpush2.msra.mxu0 0.0
      %2063 = vmatprep.subr.mxu0 0.0
      %2064 = vmatpush2.msra.mxu0 0.0
      %2065 = vmatprep.subr.mxu0 0.0
      %2066 = vmatpush2.msra.mxu0 0.0
      %2067 = vmatprep.subr.mxu0 0.0
      %2068 = vmatpush2.msra.mxu0 0.0
      %2069 = vmatprep.subr.mxu0 0.0
      %2070 = vmatpush2.msra.mxu0 0.0
      %2071 = vmatprep.subr.mxu0 0.0
      %2072 = vmatpush2.msra.mxu0 0.0
      %2073 = vmatprep.mubr.f32.mxu0 0.0
      %2074 = vmatmul.mubr.f32.gmra.mxu0 %v1914
      %v2075 = vpop.f32.mrf.mxu0
      %v2076 = vadd.f32 0.0, %v2075
      %v2077 = vpop.f32.mrf.mxu0
      %2078 = vmatprep.mubr.f32.mxu0 0.0
      %2079 = vmatmul.mubr.f32.gmra.mxu0 %v1917
      %v2080 = vpop.f32.mrf.mxu0
      %v2081 = vadd.f32 0.0, %v2080
      %v2082 = vpop.f32.mrf.mxu0
      %2083 = vmatprep.mubr.f32.mxu0 0.0
      %2084 = vmatmul.mubr.f32.gmra.mxu0 %v1920
      %v2085 = vpop.f32.mrf.mxu0
      %v2086 = vadd.f32 0.0, %v2085
      %v2087 = vpop.f32.mrf.mxu0
      %2088 = vmatprep.mubr.f32.mxu0 0.0
      %2089 = vmatmul.mubr.f32.gmra.mxu0 %v1923
      %v2090 = vpop.f32.mrf.mxu0
      %v2091 = vadd.f32 0.0, %v2090
      %v2092 = vpop.f32.mrf.mxu0
      %2093 = vmatprep.mubr.f32.mxu0 0.0
      %2094 = vmatmul.mubr.f32.gmra.mxu0 %v1926
      %v2095 = vpop.f32.mrf.mxu0
      %v2096 = vadd.f32 0.0, %v2095
      %v2097 = vpop.f32.mrf.mxu0
      %2098 = vmatprep.mubr.f32.mxu0 0.0
      %2099 = vmatmul.mubr.f32.gmra.mxu0 %v1929
      %v2100 = vpop.f32.mrf.mxu0
      %v2101 = vadd.f32 0.0, %v2100
      %v2102 = vpop.f32.mrf.mxu0
      %2103 = vmatprep.mubr.f32.mxu0 0.0
      %2104 = vmatmul.mubr.f32.gmra.mxu0 %v1932
      %v2105 = vpop.f32.mrf.mxu0
      %v2106 = vadd.f32 0.0, %v2105
      %v2107 = vpop.f32.mrf.mxu0
      %2108 = vmatprep.mubr.f32.mxu0 0.0
      %2109 = vmatmul.mubr.f32.gmra.mxu0 %v1935
      %v2110 = vpop.f32.mrf.mxu0
      %v2111 = vadd.f32 0.0, %v2110
      %v2112 = vpop.f32.mrf.mxu0
      %2113 = vmatprep.mubr.f32.mxu0 0.0
      %2114 = vmatmul.mubr.f32.gmra.mxu0 %v1938
      %v2115 = vpop.f32.mrf.mxu0
      %v2116 = vadd.f32 0.0, %v2115
      %v2117 = vpop.f32.mrf.mxu0
      %2118 = vmatprep.mubr.f32.mxu0 0.0
      %2119 = vmatmul.mubr.f32.gmra.mxu0 %v1941
      %v2120 = vpop.f32.mrf.mxu0
      %v2121 = vadd.f32 0.0, %v2120
      %v2122 = vpop.f32.mrf.mxu0
      %2123 = vmatprep.mubr.f32.mxu0 0.0
      %2124 = vmatmul.mubr.f32.gmra.mxu0 %v1944
      %v2125 = vpop.f32.mrf.mxu0
      %v2126 = vadd.f32 0.0, %v2125
      %v2127 = vpop.f32.mrf.mxu0
      %2128 = vmatprep.mubr.f32.mxu0 0.0
      %2129 = vmatmul.mubr.f32.gmra.mxu0 %v1947
      %v2130 = vpop.f32.mrf.mxu0
      %v2131 = vadd.f32 0.0, %v2130
      %v2132 = vpop.f32.mrf.mxu0
      %2133 = vmatprep.mubr.f32.mxu0 0.0
      %2134 = vmatmul.mubr.f32.gmra.mxu0 %v1950
      %v2135 = vpop.f32.mrf.mxu0
      %v2136 = vadd.f32 0.0, %v2135
      %v2137 = vpop.f32.mrf.mxu0
      %2138 = vmatprep.mubr.f32.mxu0 0.0
      %2139 = vmatmul.mubr.f32.gmra.mxu0 %v1953
      %v2140 = vpop.f32.mrf.mxu0
      %v2141 = vadd.f32 0.0, %v2140
      %v2142 = vpop.f32.mrf.mxu0
      %2143 = vmatprep.mubr.f32.mxu0 0.0
      %2144 = vmatmul.mubr.f32.gmra.mxu0 %v1956
      %v2145 = vpop.f32.mrf.mxu0
      %v2146 = vadd.f32 0.0, %v2145
      %v2147 = vpop.f32.mrf.mxu0
      %2148 = vmatprep.mubr.f32.mxu0 0.0
      %2149 = vmatmul.mubr.f32.gmra.mxu0 %v1959
      %v2150 = vpop.f32.mrf.mxu0
      %v2151 = vadd.f32 0.0, %v2150
      %v2152 = vpop.f32.mrf.mxu0
      %2153 = vmatprep.mubr.f32.mxu0 0.0
      %2154 = vmatmul.mubr.f32.gmra.mxu0 %v1962
      %v2155 = vpop.f32.mrf.mxu0
      %v2156 = vadd.f32 0.0, %v2155
      %v2157 = vpop.f32.mrf.mxu0
      %2158 = vmatprep.mubr.f32.mxu0 0.0
      %2159 = vmatmul.mubr.f32.gmra.mxu0 %v1965
      %v2160 = vpop.f32.mrf.mxu0
      %v2161 = vadd.f32 0.0, %v2160
      %v2162 = vpop.f32.mrf.mxu0
      %2163 = vmatprep.mubr.f32.mxu0 0.0
      %2164 = vmatmul.mubr.f32.gmra.mxu0 %v1968
      %v2165 = vpop.f32.mrf.mxu0
      %v2166 = vadd.f32 0.0, %v2165
      %v2167 = vpop.f32.mrf.mxu0
      %2168 = vmatprep.mubr.f32.mxu0 0.0
      %2169 = vmatmul.mubr.f32.gmra.mxu0 %v1971
      %v2170 = vpop.f32.mrf.mxu0
      %v2171 = vadd.f32 0.0, %v2170
      %v2172 = vpop.f32.mrf.mxu0
      %2173 = vmatprep.mubr.f32.mxu0 0.0
      %2174 = vmatmul.mubr.f32.gmra.mxu0 %v1974
      %v2175 = vpop.f32.mrf.mxu0
      %v2176 = vadd.f32 0.0, %v2175
      %v2177 = vpop.f32.mrf.mxu0
      %2178 = vmatprep.mubr.f32.mxu0 0.0
      %2179 = vmatmul.mubr.f32.gmra.mxu0 %v1977
      %v2180 = vpop.f32.mrf.mxu0
      %v2181 = vadd.f32 0.0, %v2180
      %v2182 = vpop.f32.mrf.mxu0
      %2183 = vmatprep.mubr.f32.mxu0 0.0
      %2184 = vmatmul.mubr.f32.gmra.mxu0 %v1980
      %v2185 = vpop.f32.mrf.mxu0
      %v2186 = vadd.f32 0.0, %v2185
      %v2187 = vpop.f32.mrf.mxu0
      %2188 = vmatprep.mubr.f32.mxu0 0.0
      %2189 = vmatmul.mubr.f32.gmra.mxu0 %v1983
      %v2190 = vpop.f32.mrf.mxu0
      %v2191 = vadd.f32 0.0, %v2190
      %v2192 = vpop.f32.mrf.mxu0
      %2193 = vmatprep.mubr.f32.mxu0 0.0
      %2194 = vmatmul.mubr.f32.gmra.mxu0 %v1986
      %v2195 = vpop.f32.mrf.mxu0
      %v2196 = vadd.f32 0.0, %v2195
      %v2197 = vpop.f32.mrf.mxu0
      %2198 = vmatprep.mubr.f32.mxu0 0.0
      %2199 = vmatmul.mubr.f32.gmra.mxu0 %v1989
      %v2200 = vpop.f32.mrf.mxu0
      %v2201 = vadd.f32 0.0, %v2200
      %v2202 = vpop.f32.mrf.mxu0
      %2203 = vmatprep.mubr.f32.mxu0 0.0
      %2204 = vmatmul.mubr.f32.gmra.mxu0 %v1992
      %v2205 = vpop.f32.mrf.mxu0
      %v2206 = vadd.f32 0.0, %v2205
      %v2207 = vpop.f32.mrf.mxu0
      %2208 = vmatprep.mubr.f32.mxu0 0.0
      %2209 = vmatmul.mubr.f32.gmra.mxu0 %v1995
      %v2210 = vpop.f32.mrf.mxu0
      %v2211 = vadd.f32 0.0, %v2210
      %v2212 = vpop.f32.mrf.mxu0
      %2213 = vmatprep.mubr.f32.mxu0 0.0
      %2214 = vmatmul.mubr.f32.gmra.mxu0 %v1998
      %v2215 = vpop.f32.mrf.mxu0
      %v2216 = vadd.f32 0.0, %v2215
      %v2217 = vpop.f32.mrf.mxu0
      %2218 = vmatprep.mubr.f32.mxu0 0.0
      %2219 = vmatmul.mubr.f32.gmra.mxu0 %v2001
      %v2220 = vpop.f32.mrf.mxu0
      %v2221 = vadd.f32 0.0, %v2220
      %v2222 = vpop.f32.mrf.mxu0
      %2223 = vmatprep.mubr.f32.mxu0 0.0
      %2224 = vmatmul.mubr.f32.gmra.mxu0 %v2004
      %v2225 = vpop.f32.mrf.mxu0
      %v2226 = vadd.f32 0.0, %v2225
      %v2227 = vpop.f32.mrf.mxu0
      %2228 = vmatprep.mubr.f32.mxu0 0.0
      %2229 = vmatmul.mubr.f32.gmra.mxu0 %v2007
      %v2230 = vpop.f32.mrf.mxu0
      %v2231 = vadd.f32 0.0, %v2230
      %v2232 = vpop.f32.mrf.mxu0
      %2233 = vdwg.mxu0
      %v2234 = vadd.f32 %v1846, %v2076
      %v2235 = vadd.f32 %v1847, %v2081
      %v2236 = vadd.f32 %v1848, %v2086
      %v2237 = vadd.f32 %v1849, %v2091
      %v2238 = vadd.f32 %v1850, %v2096
      %v2239 = vadd.f32 %v1851, %v2101
      %v2240 = vadd.f32 %v1852, %v2106
      %v2241 = vadd.f32 %v1853, %v2111
      %v2242 = vadd.f32 %v1854, %v2116
      %v2243 = vadd.f32 %v1855, %v2121
      %v2244 = vadd.f32 %v1856, %v2126
      %v2245 = vadd.f32 %v1857, %v2131
      %v2246 = vadd.f32 %v1858, %v2136
      %v2247 = vadd.f32 %v1859, %v2141
      %v2248 = vadd.f32 %v1860, %v2146
      %v2249 = vadd.f32 %v1861, %v2151
      %v2250 = vadd.f32 %v1862, %v2156
      %v2251 = vadd.f32 %v1863, %v2161
      %v2252 = vadd.f32 %v1864, %v2166
      %v2253 = vadd.f32 %v1865, %v2171
      %v2254 = vadd.f32 %v1866, %v2176
      %v2255 = vadd.f32 %v1867, %v2181
      %v2256 = vadd.f32 %v1868, %v2186
      %v2257 = vadd.f32 %v1869, %v2191
      %v2258 = vadd.f32 %v1870, %v2196
      %v2259 = vadd.f32 %v1871, %v2201
      %v2260 = vadd.f32 %v1872, %v2206
      %v2261 = vadd.f32 %v1873, %v2211
      %v2262 = vadd.f32 %v1874, %v2216
      %v2263 = vadd.f32 %v1875, %v2221
      %v2264 = vadd.f32 %v1876, %v2226
      %v2265 = vadd.f32 %v1877, %v2231
      %v2266 = vld [vmem:[%s713 + $0x1] sm:$0xff]
      %v2267 = vld [vmem:[%s713 + $0x9] sm:$0xff]
      %v2268 = vld [vmem:[%s713 + $0x19] sm:$0xff]
      %v2269 = vld [vmem:[%s713 + $0x21] sm:$0xff]
      %v2270 = vld [vmem:[%s713 + $0x31] sm:$0xff]
      %v2271 = vld [vmem:[%s713 + $0x39] sm:$0xff]
      %v2272 = vld [vmem:[%s713 + $0x49] sm:$0xff]
      %v2273 = vld [vmem:[%s713 + $0x51] sm:$0xff]
      %v2274 = vld [vmem:[%s713 + $0x61] sm:$0xff]
      %v2275 = vld [vmem:[%s713 + $0x69] sm:$0xff]
      %v2276 = vld [vmem:[%s713 + $0x79] sm:$0xff]
      %v2277 = vld [vmem:[%s713 + $0x81] sm:$0xff]
      %v2278 = vld [vmem:[%s713 + $0x91] sm:$0xff]
      %v2279 = vld [vmem:[%s713 + $0x99] sm:$0xff]
      %v2280 = vld [vmem:[%s713 + $0xa9] sm:$0xff]
      %v2281 = vld [vmem:[%s713 + $0xb1] sm:$0xff]
      %v2282 = vld [vmem:[%s713 + $0xc1] sm:$0xff]
      %v2283 = vld [vmem:[%s713 + $0xc9] sm:$0xff]
      %v2284 = vld [vmem:[%s713 + $0xd9] sm:$0xff]
      %v2285 = vld [vmem:[%s713 + $0xe1] sm:$0xff]
      %v2286 = vld [vmem:[%s713 + $0xf1] sm:$0xff]
      %v2287 = vld [vmem:[%s713 + $0xf9] sm:$0xff]
      %v2288 = vld [vmem:[%s713 + $0x109] sm:$0xff]
      %v2289 = vld [vmem:[%s713 + $0x111] sm:$0xff]
      %v2290 = vld [vmem:[%s713 + $0x121] sm:$0xff]
      %v2291 = vld [vmem:[%s713 + $0x129] sm:$0xff]
      %v2292 = vld [vmem:[%s713 + $0x139] sm:$0xff]
      %v2293 = vld [vmem:[%s713 + $0x141] sm:$0xff]
      %v2294 = vld [vmem:[%s713 + $0x151] sm:$0xff]
      %v2295 = vld [vmem:[%s713 + $0x159] sm:$0xff]
      %v2296 = vld [vmem:[%s713 + $0x169] sm:$0xff]
      %v2297 = vld [vmem:[%s713 + $0x171] sm:$0xff]
      %s2298 = scalar_lea.vmem %s2, 64
      %v2299 = vld [vmem:[%s2298] sm:$0xff]
      %v2300 = vld [vmem:[%s2298 + $0x8] sm:$0xff]
      %v2302 = vsel %vm704, %v2266, 0
      %v2305 = vsel %vm704, %v2267, 0
      %v2308 = vsel %vm704, %v2268, 0
      %v2311 = vsel %vm704, %v2269, 0
      %v2314 = vsel %vm704, %v2270, 0
      %v2317 = vsel %vm704, %v2271, 0
      %v2320 = vsel %vm704, %v2272, 0
      %v2323 = vsel %vm704, %v2273, 0
      %v2326 = vsel %vm704, %v2274, 0
      %v2329 = vsel %vm704, %v2275, 0
      %v2332 = vsel %vm704, %v2276, 0
      %v2335 = vsel %vm704, %v2277, 0
      %v2338 = vsel %vm704, %v2278, 0
      %v2341 = vsel %vm704, %v2279, 0
      %v2344 = vsel %vm704, %v2280, 0
      %v2347 = vsel %vm704, %v2281, 0
      %v2350 = vsel %vm704, %v2282, 0
      %v2353 = vsel %vm704, %v2283, 0
      %v2356 = vsel %vm704, %v2284, 0
      %v2359 = vsel %vm704, %v2285, 0
      %v2362 = vsel %vm704, %v2286, 0
      %v2365 = vsel %vm704, %v2287, 0
      %v2368 = vsel %vm704, %v2288, 0
      %v2371 = vsel %vm704, %v2289, 0
      %v2374 = vsel %vm704, %v2290, 0
      %v2377 = vsel %vm704, %v2291, 0
      %v2380 = vsel %vm704, %v2292, 0
      %v2383 = vsel %vm704, %v2293, 0
      %v2386 = vsel %vm704, %v2294, 0
      %v2389 = vsel %vm704, %v2295, 0
      %v2392 = vsel %vm704, %v2296, 0
      %v2395 = vsel %vm704, %v2297, 0
      %2397 = vmatprep.subr.mxu0 0.0
      %2398 = vmatpush1.msra.mxu0 0.0
      %2399 = vmatprep.subr.mxu0 0.0
      %2400 = vmatpush1.msra.mxu0 0.0
      %2401 = vmatprep.subr.mxu0 0.0
      %2402 = vmatpush1.msra.mxu0 0.0
      %2403 = vmatprep.subr.mxu0 0.0
      %2404 = vmatpush1.msra.mxu0 0.0
      %2405 = vmatprep.subr.mxu0 0.0
      %2406 = vmatpush1.msra.mxu0 0.0
      %2407 = vmatprep.subr.mxu0 0.0
      %2408 = vmatpush1.msra.mxu0 0.0
      %2409 = vmatprep.subr.mxu0 0.0
      %2410 = vmatpush1.msra.mxu0 0.0
      %2411 = vmatprep.subr.mxu0 0.0
      %2412 = vmatpush1.msra.mxu0 0.0
      %2413 = vmatprep.subr.mxu0 0.0
      %2414 = vmatpush1.msra.mxu0 0.0
      %2415 = vmatprep.subr.mxu0 0.0
      %2416 = vmatpush1.msra.mxu0 0.0
      %2417 = vmatprep.subr.mxu0 0.0
      %2418 = vmatpush1.msra.mxu0 0.0
      %2419 = vmatprep.subr.mxu0 0.0
      %2420 = vmatpush1.msra.mxu0 0.0
      %2421 = vmatprep.subr.mxu0 0.0
      %2422 = vmatpush1.msra.mxu0 0.0
      %2423 = vmatprep.subr.mxu0 0.0
      %2424 = vmatpush1.msra.mxu0 0.0
      %2425 = vmatprep.subr.mxu0 0.0
      %2426 = vmatpush1.msra.mxu0 %v2300
      %2427 = vmatprep.subr.mxu0 0.0
      %2428 = vmatpush1.msra.mxu0 %v2299
      %2429 = vmatprep.subr.mxu0 0.0
      %2430 = vmatpush2.msra.mxu0 0.0
      %2431 = vmatprep.subr.mxu0 0.0
      %2432 = vmatpush2.msra.mxu0 0.0
      %2433 = vmatprep.subr.mxu0 0.0
      %2434 = vmatpush2.msra.mxu0 0.0
      %2435 = vmatprep.subr.mxu0 0.0
      %2436 = vmatpush2.msra.mxu0 0.0
      %2437 = vmatprep.subr.mxu0 0.0
      %2438 = vmatpush2.msra.mxu0 0.0
      %2439 = vmatprep.subr.mxu0 0.0
      %2440 = vmatpush2.msra.mxu0 0.0
      %2441 = vmatprep.subr.mxu0 0.0
      %2442 = vmatpush2.msra.mxu0 0.0
      %2443 = vmatprep.subr.mxu0 0.0
      %2444 = vmatpush2.msra.mxu0 0.0
      %2445 = vmatprep.subr.mxu0 0.0
      %2446 = vmatpush2.msra.mxu0 0.0
      %2447 = vmatprep.subr.mxu0 0.0
      %2448 = vmatpush2.msra.mxu0 0.0
      %2449 = vmatprep.subr.mxu0 0.0
      %2450 = vmatpush2.msra.mxu0 0.0
      %2451 = vmatprep.subr.mxu0 0.0
      %2452 = vmatpush2.msra.mxu0 0.0
      %2453 = vmatprep.subr.mxu0 0.0
      %2454 = vmatpush2.msra.mxu0 0.0
      %2455 = vmatprep.subr.mxu0 0.0
      %2456 = vmatpush2.msra.mxu0 0.0
      %2457 = vmatprep.subr.mxu0 0.0
      %2458 = vmatpush2.msra.mxu0 0.0
      %2459 = vmatprep.subr.mxu0 0.0
      %2460 = vmatpush2.msra.mxu0 0.0
      %2461 = vmatprep.mubr.f32.mxu0 0.0
      %2462 = vmatmul.mubr.f32.gmra.mxu0 %v2302
      %v2463 = vpop.f32.mrf.mxu0
      %v2464 = vadd.f32 0.0, %v2463
      %v2465 = vpop.f32.mrf.mxu0
      %2466 = vmatprep.mubr.f32.mxu0 0.0
      %2467 = vmatmul.mubr.f32.gmra.mxu0 %v2305
      %v2468 = vpop.f32.mrf.mxu0
      %v2469 = vadd.f32 0.0, %v2468
      %v2470 = vpop.f32.mrf.mxu0
      %2471 = vmatprep.mubr.f32.mxu0 0.0
      %2472 = vmatmul.mubr.f32.gmra.mxu0 %v2308
      %v2473 = vpop.f32.mrf.mxu0
      %v2474 = vadd.f32 0.0, %v2473
      %v2475 = vpop.f32.mrf.mxu0
      %2476 = vmatprep.mubr.f32.mxu0 0.0
      %2477 = vmatmul.mubr.f32.gmra.mxu0 %v2311
      %v2478 = vpop.f32.mrf.mxu0
      %v2479 = vadd.f32 0.0, %v2478
      %v2480 = vpop.f32.mrf.mxu0
      %2481 = vmatprep.mubr.f32.mxu0 0.0
      %2482 = vmatmul.mubr.f32.gmra.mxu0 %v2314
      %v2483 = vpop.f32.mrf.mxu0
      %v2484 = vadd.f32 0.0, %v2483
      %v2485 = vpop.f32.mrf.mxu0
      %2486 = vmatprep.mubr.f32.mxu0 0.0
      %2487 = vmatmul.mubr.f32.gmra.mxu0 %v2317
      %v2488 = vpop.f32.mrf.mxu0
      %v2489 = vadd.f32 0.0, %v2488
      %v2490 = vpop.f32.mrf.mxu0
      %2491 = vmatprep.mubr.f32.mxu0 0.0
      %2492 = vmatmul.mubr.f32.gmra.mxu0 %v2320
      %v2493 = vpop.f32.mrf.mxu0
      %v2494 = vadd.f32 0.0, %v2493
      %v2495 = vpop.f32.mrf.mxu0
      %2496 = vmatprep.mubr.f32.mxu0 0.0
      %2497 = vmatmul.mubr.f32.gmra.mxu0 %v2323
      %v2498 = vpop.f32.mrf.mxu0
      %v2499 = vadd.f32 0.0, %v2498
      %v2500 = vpop.f32.mrf.mxu0
      %2501 = vmatprep.mubr.f32.mxu0 0.0
      %2502 = vmatmul.mubr.f32.gmra.mxu0 %v2326
      %v2503 = vpop.f32.mrf.mxu0
      %v2504 = vadd.f32 0.0, %v2503
      %v2505 = vpop.f32.mrf.mxu0
      %2506 = vmatprep.mubr.f32.mxu0 0.0
      %2507 = vmatmul.mubr.f32.gmra.mxu0 %v2329
      %v2508 = vpop.f32.mrf.mxu0
      %v2509 = vadd.f32 0.0, %v2508
      %v2510 = vpop.f32.mrf.mxu0
      %2511 = vmatprep.mubr.f32.mxu0 0.0
      %2512 = vmatmul.mubr.f32.gmra.mxu0 %v2332
      %v2513 = vpop.f32.mrf.mxu0
      %v2514 = vadd.f32 0.0, %v2513
      %v2515 = vpop.f32.mrf.mxu0
      %2516 = vmatprep.mubr.f32.mxu0 0.0
      %2517 = vmatmul.mubr.f32.gmra.mxu0 %v2335
      %v2518 = vpop.f32.mrf.mxu0
      %v2519 = vadd.f32 0.0, %v2518
      %v2520 = vpop.f32.mrf.mxu0
      %2521 = vmatprep.mubr.f32.mxu0 0.0
      %2522 = vmatmul.mubr.f32.gmra.mxu0 %v2338
      %v2523 = vpop.f32.mrf.mxu0
      %v2524 = vadd.f32 0.0, %v2523
      %v2525 = vpop.f32.mrf.mxu0
      %2526 = vmatprep.mubr.f32.mxu0 0.0
      %2527 = vmatmul.mubr.f32.gmra.mxu0 %v2341
      %v2528 = vpop.f32.mrf.mxu0
      %v2529 = vadd.f32 0.0, %v2528
      %v2530 = vpop.f32.mrf.mxu0
      %2531 = vmatprep.mubr.f32.mxu0 0.0
      %2532 = vmatmul.mubr.f32.gmra.mxu0 %v2344
      %v2533 = vpop.f32.mrf.mxu0
      %v2534 = vadd.f32 0.0, %v2533
      %v2535 = vpop.f32.mrf.mxu0
      %2536 = vmatprep.mubr.f32.mxu0 0.0
      %2537 = vmatmul.mubr.f32.gmra.mxu0 %v2347
      %v2538 = vpop.f32.mrf.mxu0
      %v2539 = vadd.f32 0.0, %v2538
      %v2540 = vpop.f32.mrf.mxu0
      %2541 = vmatprep.mubr.f32.mxu0 0.0
      %2542 = vmatmul.mubr.f32.gmra.mxu0 %v2350
      %v2543 = vpop.f32.mrf.mxu0
      %v2544 = vadd.f32 0.0, %v2543
      %v2545 = vpop.f32.mrf.mxu0
      %2546 = vmatprep.mubr.f32.mxu0 0.0
      %2547 = vmatmul.mubr.f32.gmra.mxu0 %v2353
      %v2548 = vpop.f32.mrf.mxu0
      %v2549 = vadd.f32 0.0, %v2548
      %v2550 = vpop.f32.mrf.mxu0
      %2551 = vmatprep.mubr.f32.mxu0 0.0
      %2552 = vmatmul.mubr.f32.gmra.mxu0 %v2356
      %v2553 = vpop.f32.mrf.mxu0
      %v2554 = vadd.f32 0.0, %v2553
      %v2555 = vpop.f32.mrf.mxu0
      %2556 = vmatprep.mubr.f32.mxu0 0.0
      %2557 = vmatmul.mubr.f32.gmra.mxu0 %v2359
      %v2558 = vpop.f32.mrf.mxu0
      %v2559 = vadd.f32 0.0, %v2558
      %v2560 = vpop.f32.mrf.mxu0
      %2561 = vmatprep.mubr.f32.mxu0 0.0
      %2562 = vmatmul.mubr.f32.gmra.mxu0 %v2362
      %v2563 = vpop.f32.mrf.mxu0
      %v2564 = vadd.f32 0.0, %v2563
      %v2565 = vpop.f32.mrf.mxu0
      %2566 = vmatprep.mubr.f32.mxu0 0.0
      %2567 = vmatmul.mubr.f32.gmra.mxu0 %v2365
      %v2568 = vpop.f32.mrf.mxu0
      %v2569 = vadd.f32 0.0, %v2568
      %v2570 = vpop.f32.mrf.mxu0
      %2571 = vmatprep.mubr.f32.mxu0 0.0
      %2572 = vmatmul.mubr.f32.gmra.mxu0 %v2368
      %v2573 = vpop.f32.mrf.mxu0
      %v2574 = vadd.f32 0.0, %v2573
      %v2575 = vpop.f32.mrf.mxu0
      %2576 = vmatprep.mubr.f32.mxu0 0.0
      %2577 = vmatmul.mubr.f32.gmra.mxu0 %v2371
      %v2578 = vpop.f32.mrf.mxu0
      %v2579 = vadd.f32 0.0, %v2578
      %v2580 = vpop.f32.mrf.mxu0
      %2581 = vmatprep.mubr.f32.mxu0 0.0
      %2582 = vmatmul.mubr.f32.gmra.mxu0 %v2374
      %v2583 = vpop.f32.mrf.mxu0
      %v2584 = vadd.f32 0.0, %v2583
      %v2585 = vpop.f32.mrf.mxu0
      %2586 = vmatprep.mubr.f32.mxu0 0.0
      %2587 = vmatmul.mubr.f32.gmra.mxu0 %v2377
      %v2588 = vpop.f32.mrf.mxu0
      %v2589 = vadd.f32 0.0, %v2588
      %v2590 = vpop.f32.mrf.mxu0
      %2591 = vmatprep.mubr.f32.mxu0 0.0
      %2592 = vmatmul.mubr.f32.gmra.mxu0 %v2380
      %v2593 = vpop.f32.mrf.mxu0
      %v2594 = vadd.f32 0.0, %v2593
      %v2595 = vpop.f32.mrf.mxu0
      %2596 = vmatprep.mubr.f32.mxu0 0.0
      %2597 = vmatmul.mubr.f32.gmra.mxu0 %v2383
      %v2598 = vpop.f32.mrf.mxu0
      %v2599 = vadd.f32 0.0, %v2598
      %v2600 = vpop.f32.mrf.mxu0
      %2601 = vmatprep.mubr.f32.mxu0 0.0
      %2602 = vmatmul.mubr.f32.gmra.mxu0 %v2386
      %v2603 = vpop.f32.mrf.mxu0
      %v2604 = vadd.f32 0.0, %v2603
      %v2605 = vpop.f32.mrf.mxu0
      %2606 = vmatprep.mubr.f32.mxu0 0.0
      %2607 = vmatmul.mubr.f32.gmra.mxu0 %v2389
      %v2608 = vpop.f32.mrf.mxu0
      %v2609 = vadd.f32 0.0, %v2608
      %v2610 = vpop.f32.mrf.mxu0
      %2611 = vmatprep.mubr.f32.mxu0 0.0
      %2612 = vmatmul.mubr.f32.gmra.mxu0 %v2392
      %v2613 = vpop.f32.mrf.mxu0
      %v2614 = vadd.f32 0.0, %v2613
      %v2615 = vpop.f32.mrf.mxu0
      %2616 = vmatprep.mubr.f32.mxu0 0.0
      %2617 = vmatmul.mubr.f32.gmra.mxu0 %v2395
      %v2618 = vpop.f32.mrf.mxu0
      %v2619 = vadd.f32 0.0, %v2618
      %v2620 = vpop.f32.mrf.mxu0
      %2621 = vdwg.mxu0
      %v2622 = vadd.f32 %v2234, %v2464
      %v2623 = vadd.f32 %v2235, %v2469
      %v2624 = vadd.f32 %v2236, %v2474
      %v2625 = vadd.f32 %v2237, %v2479
      %v2626 = vadd.f32 %v2238, %v2484
      %v2627 = vadd.f32 %v2239, %v2489
      %v2628 = vadd.f32 %v2240, %v2494
      %v2629 = vadd.f32 %v2241, %v2499
      %v2630 = vadd.f32 %v2242, %v2504
      %v2631 = vadd.f32 %v2243, %v2509
      %v2632 = vadd.f32 %v2244, %v2514
      %v2633 = vadd.f32 %v2245, %v2519
      %v2634 = vadd.f32 %v2246, %v2524
      %v2635 = vadd.f32 %v2247, %v2529
      %v2636 = vadd.f32 %v2248, %v2534
      %v2637 = vadd.f32 %v2249, %v2539
      %v2638 = vadd.f32 %v2250, %v2544
      %v2639 = vadd.f32 %v2251, %v2549
      %v2640 = vadd.f32 %v2252, %v2554
      %v2641 = vadd.f32 %v2253, %v2559
      %v2642 = vadd.f32 %v2254, %v2564
      %v2643 = vadd.f32 %v2255, %v2569
      %v2644 = vadd.f32 %v2256, %v2574
      %v2645 = vadd.f32 %v2257, %v2579
      %v2646 = vadd.f32 %v2258, %v2584
      %v2647 = vadd.f32 %v2259, %v2589
      %v2648 = vadd.f32 %v2260, %v2594
      %v2649 = vadd.f32 %v2261, %v2599
      %v2650 = vadd.f32 %v2262, %v2604
      %v2651 = vadd.f32 %v2263, %v2609
      %v2652 = vadd.f32 %v2264, %v2614
      %v2653 = vadd.f32 %v2265, %v2619
      %v2654 = vld [vmem:[%s713 + $0x2] sm:$0xff]
      %v2655 = vld [vmem:[%s713 + $0xa] sm:$0xff]
      %v2656 = vld [vmem:[%s713 + $0x1a] sm:$0xff]
      %v2657 = vld [vmem:[%s713 + $0x22] sm:$0xff]
      %v2658 = vld [vmem:[%s713 + $0x32] sm:$0xff]
      %v2659 = vld [vmem:[%s713 + $0x3a] sm:$0xff]
      %v2660 = vld [vmem:[%s713 + $0x4a] sm:$0xff]
      %v2661 = vld [vmem:[%s713 + $0x52] sm:$0xff]
      %v2662 = vld [vmem:[%s713 + $0x62] sm:$0xff]
      %v2663 = vld [vmem:[%s713 + $0x6a] sm:$0xff]
      %v2664 = vld [vmem:[%s713 + $0x7a] sm:$0xff]
      %v2665 = vld [vmem:[%s713 + $0x82] sm:$0xff]
      %v2666 = vld [vmem:[%s713 + $0x92] sm:$0xff]
      %v2667 = vld [vmem:[%s713 + $0x9a] sm:$0xff]
      %v2668 = vld [vmem:[%s713 + $0xaa] sm:$0xff]
      %v2669 = vld [vmem:[%s713 + $0xb2] sm:$0xff]
      %v2670 = vld [vmem:[%s713 + $0xc2] sm:$0xff]
      %v2671 = vld [vmem:[%s713 + $0xca] sm:$0xff]
      %v2672 = vld [vmem:[%s713 + $0xda] sm:$0xff]
      %v2673 = vld [vmem:[%s713 + $0xe2] sm:$0xff]
      %v2674 = vld [vmem:[%s713 + $0xf2] sm:$0xff]
      %v2675 = vld [vmem:[%s713 + $0xfa] sm:$0xff]
      %v2676 = vld [vmem:[%s713 + $0x10a] sm:$0xff]
      %v2677 = vld [vmem:[%s713 + $0x112] sm:$0xff]
      %v2678 = vld [vmem:[%s713 + $0x122] sm:$0xff]
      %v2679 = vld [vmem:[%s713 + $0x12a] sm:$0xff]
      %v2680 = vld [vmem:[%s713 + $0x13a] sm:$0xff]
      %v2681 = vld [vmem:[%s713 + $0x142] sm:$0xff]
      %v2682 = vld [vmem:[%s713 + $0x152] sm:$0xff]
      %v2683 = vld [vmem:[%s713 + $0x15a] sm:$0xff]
      %v2684 = vld [vmem:[%s713 + $0x16a] sm:$0xff]
      %v2685 = vld [vmem:[%s713 + $0x172] sm:$0xff]
      %s2686 = scalar_lea.vmem %s2, 80
      %v2687 = vld [vmem:[%s2686] sm:$0xff]
      %v2688 = vld [vmem:[%s2686 + $0x8] sm:$0xff]
      %v2690 = vsel %vm704, %v2654, 0
      %v2693 = vsel %vm704, %v2655, 0
      %v2696 = vsel %vm704, %v2656, 0
      %v2699 = vsel %vm704, %v2657, 0
      %v2702 = vsel %vm704, %v2658, 0
      %v2705 = vsel %vm704, %v2659, 0
      %v2708 = vsel %vm704, %v2660, 0
      %v2711 = vsel %vm704, %v2661, 0
      %v2714 = vsel %vm704, %v2662, 0
      %v2717 = vsel %vm704, %v2663, 0
      %v2720 = vsel %vm704, %v2664, 0
      %v2723 = vsel %vm704, %v2665, 0
      %v2726 = vsel %vm704, %v2666, 0
      %v2729 = vsel %vm704, %v2667, 0
      %v2732 = vsel %vm704, %v2668, 0
      %v2735 = vsel %vm704, %v2669, 0
      %v2738 = vsel %vm704, %v2670, 0
      %v2741 = vsel %vm704, %v2671, 0
      %v2744 = vsel %vm704, %v2672, 0
      %v2747 = vsel %vm704, %v2673, 0
      %v2750 = vsel %vm704, %v2674, 0
      %v2753 = vsel %vm704, %v2675, 0
      %v2756 = vsel %vm704, %v2676, 0
      %v2759 = vsel %vm704, %v2677, 0
      %v2762 = vsel %vm704, %v2678, 0
      %v2765 = vsel %vm704, %v2679, 0
      %v2768 = vsel %vm704, %v2680, 0
      %v2771 = vsel %vm704, %v2681, 0
      %v2774 = vsel %vm704, %v2682, 0
      %v2777 = vsel %vm704, %v2683, 0
      %v2780 = vsel %vm704, %v2684, 0
      %v2783 = vsel %vm704, %v2685, 0
      %2785 = vmatprep.subr.mxu0 0.0
      %2786 = vmatpush1.msra.mxu0 0.0
      %2787 = vmatprep.subr.mxu0 0.0
      %2788 = vmatpush1.msra.mxu0 0.0
      %2789 = vmatprep.subr.mxu0 0.0
      %2790 = vmatpush1.msra.mxu0 0.0
      %2791 = vmatprep.subr.mxu0 0.0
      %2792 = vmatpush1.msra.mxu0 0.0
      %2793 = vmatprep.subr.mxu0 0.0
      %2794 = vmatpush1.msra.mxu0 0.0
      %2795 = vmatprep.subr.mxu0 0.0
      %2796 = vmatpush1.msra.mxu0 0.0
      %2797 = vmatprep.subr.mxu0 0.0
      %2798 = vmatpush1.msra.mxu0 0.0
      %2799 = vmatprep.subr.mxu0 0.0
      %2800 = vmatpush1.msra.mxu0 0.0
      %2801 = vmatprep.subr.mxu0 0.0
      %2802 = vmatpush1.msra.mxu0 0.0
      %2803 = vmatprep.subr.mxu0 0.0
      %2804 = vmatpush1.msra.mxu0 0.0
      %2805 = vmatprep.subr.mxu0 0.0
      %2806 = vmatpush1.msra.mxu0 0.0
      %2807 = vmatprep.subr.mxu0 0.0
      %2808 = vmatpush1.msra.mxu0 0.0
      %2809 = vmatprep.subr.mxu0 0.0
      %2810 = vmatpush1.msra.mxu0 0.0
      %2811 = vmatprep.subr.mxu0 0.0
      %2812 = vmatpush1.msra.mxu0 0.0
      %2813 = vmatprep.subr.mxu0 0.0
      %2814 = vmatpush1.msra.mxu0 %v2688
      %2815 = vmatprep.subr.mxu0 0.0
      %2816 = vmatpush1.msra.mxu0 %v2687
      %2817 = vmatprep.subr.mxu0 0.0
      %2818 = vmatpush2.msra.mxu0 0.0
      %2819 = vmatprep.subr.mxu0 0.0
      %2820 = vmatpush2.msra.mxu0 0.0
      %2821 = vmatprep.subr.mxu0 0.0
      %2822 = vmatpush2.msra.mxu0 0.0
      %2823 = vmatprep.subr.mxu0 0.0
      %2824 = vmatpush2.msra.mxu0 0.0
      %2825 = vmatprep.subr.mxu0 0.0
      %2826 = vmatpush2.msra.mxu0 0.0
      %2827 = vmatprep.subr.mxu0 0.0
      %2828 = vmatpush2.msra.mxu0 0.0
      %2829 = vmatprep.subr.mxu0 0.0
      %2830 = vmatpush2.msra.mxu0 0.0
      %2831 = vmatprep.subr.mxu0 0.0
      %2832 = vmatpush2.msra.mxu0 0.0
      %2833 = vmatprep.subr.mxu0 0.0
      %2834 = vmatpush2.msra.mxu0 0.0
      %2835 = vmatprep.subr.mxu0 0.0
      %2836 = vmatpush2.msra.mxu0 0.0
      %2837 = vmatprep.subr.mxu0 0.0
      %2838 = vmatpush2.msra.mxu0 0.0
      %2839 = vmatprep.subr.mxu0 0.0
      %2840 = vmatpush2.msra.mxu0 0.0
      %2841 = vmatprep.subr.mxu0 0.0
      %2842 = vmatpush2.msra.mxu0 0.0
      %2843 = vmatprep.subr.mxu0 0.0
      %2844 = vmatpush2.msra.mxu0 0.0
      %2845 = vmatprep.subr.mxu0 0.0
      %2846 = vmatpush2.msra.mxu0 0.0
      %2847 = vmatprep.subr.mxu0 0.0
      %2848 = vmatpush2.msra.mxu0 0.0
      %2849 = vmatprep.mubr.f32.mxu0 0.0
      %2850 = vmatmul.mubr.f32.gmra.mxu0 %v2690
      %v2851 = vpop.f32.mrf.mxu0
      %v2852 = vadd.f32 0.0, %v2851
      %v2853 = vpop.f32.mrf.mxu0
      %2854 = vmatprep.mubr.f32.mxu0 0.0
      %2855 = vmatmul.mubr.f32.gmra.mxu0 %v2693
      %v2856 = vpop.f32.mrf.mxu0
      %v2857 = vadd.f32 0.0, %v2856
      %v2858 = vpop.f32.mrf.mxu0
      %2859 = vmatprep.mubr.f32.mxu0 0.0
      %2860 = vmatmul.mubr.f32.gmra.mxu0 %v2696
      %v2861 = vpop.f32.mrf.mxu0
      %v2862 = vadd.f32 0.0, %v2861
      %v2863 = vpop.f32.mrf.mxu0
      %2864 = vmatprep.mubr.f32.mxu0 0.0
      %2865 = vmatmul.mubr.f32.gmra.mxu0 %v2699
      %v2866 = vpop.f32.mrf.mxu0
      %v2867 = vadd.f32 0.0, %v2866
      %v2868 = vpop.f32.mrf.mxu0
      %2869 = vmatprep.mubr.f32.mxu0 0.0
      %2870 = vmatmul.mubr.f32.gmra.mxu0 %v2702
      %v2871 = vpop.f32.mrf.mxu0
      %v2872 = vadd.f32 0.0, %v2871
      %v2873 = vpop.f32.mrf.mxu0
      %2874 = vmatprep.mubr.f32.mxu0 0.0
      %2875 = vmatmul.mubr.f32.gmra.mxu0 %v2705
      %v2876 = vpop.f32.mrf.mxu0
      %v2877 = vadd.f32 0.0, %v2876
      %v2878 = vpop.f32.mrf.mxu0
      %2879 = vmatprep.mubr.f32.mxu0 0.0
      %2880 = vmatmul.mubr.f32.gmra.mxu0 %v2708
      %v2881 = vpop.f32.mrf.mxu0
      %v2882 = vadd.f32 0.0, %v2881
      %v2883 = vpop.f32.mrf.mxu0
      %2884 = vmatprep.mubr.f32.mxu0 0.0
      %2885 = vmatmul.mubr.f32.gmra.mxu0 %v2711
      %v2886 = vpop.f32.mrf.mxu0
      %v2887 = vadd.f32 0.0, %v2886
      %v2888 = vpop.f32.mrf.mxu0
      %2889 = vmatprep.mubr.f32.mxu0 0.0
      %2890 = vmatmul.mubr.f32.gmra.mxu0 %v2714
      %v2891 = vpop.f32.mrf.mxu0
      %v2892 = vadd.f32 0.0, %v2891
      %v2893 = vpop.f32.mrf.mxu0
      %2894 = vmatprep.mubr.f32.mxu0 0.0
      %2895 = vmatmul.mubr.f32.gmra.mxu0 %v2717
      %v2896 = vpop.f32.mrf.mxu0
      %v2897 = vadd.f32 0.0, %v2896
      %v2898 = vpop.f32.mrf.mxu0
      %2899 = vmatprep.mubr.f32.mxu0 0.0
      %2900 = vmatmul.mubr.f32.gmra.mxu0 %v2720
      %v2901 = vpop.f32.mrf.mxu0
      %v2902 = vadd.f32 0.0, %v2901
      %v2903 = vpop.f32.mrf.mxu0
      %2904 = vmatprep.mubr.f32.mxu0 0.0
      %2905 = vmatmul.mubr.f32.gmra.mxu0 %v2723
      %v2906 = vpop.f32.mrf.mxu0
      %v2907 = vadd.f32 0.0, %v2906
      %v2908 = vpop.f32.mrf.mxu0
      %2909 = vmatprep.mubr.f32.mxu0 0.0
      %2910 = vmatmul.mubr.f32.gmra.mxu0 %v2726
      %v2911 = vpop.f32.mrf.mxu0
      %v2912 = vadd.f32 0.0, %v2911
      %v2913 = vpop.f32.mrf.mxu0
      %2914 = vmatprep.mubr.f32.mxu0 0.0
      %2915 = vmatmul.mubr.f32.gmra.mxu0 %v2729
      %v2916 = vpop.f32.mrf.mxu0
      %v2917 = vadd.f32 0.0, %v2916
      %v2918 = vpop.f32.mrf.mxu0
      %2919 = vmatprep.mubr.f32.mxu0 0.0
      %2920 = vmatmul.mubr.f32.gmra.mxu0 %v2732
      %v2921 = vpop.f32.mrf.mxu0
      %v2922 = vadd.f32 0.0, %v2921
      %v2923 = vpop.f32.mrf.mxu0
      %2924 = vmatprep.mubr.f32.mxu0 0.0
      %2925 = vmatmul.mubr.f32.gmra.mxu0 %v2735
      %v2926 = vpop.f32.mrf.mxu0
      %v2927 = vadd.f32 0.0, %v2926
      %v2928 = vpop.f32.mrf.mxu0
      %2929 = vmatprep.mubr.f32.mxu0 0.0
      %2930 = vmatmul.mubr.f32.gmra.mxu0 %v2738
      %v2931 = vpop.f32.mrf.mxu0
      %v2932 = vadd.f32 0.0, %v2931
      %v2933 = vpop.f32.mrf.mxu0
      %2934 = vmatprep.mubr.f32.mxu0 0.0
      %2935 = vmatmul.mubr.f32.gmra.mxu0 %v2741
      %v2936 = vpop.f32.mrf.mxu0
      %v2937 = vadd.f32 0.0, %v2936
      %v2938 = vpop.f32.mrf.mxu0
      %2939 = vmatprep.mubr.f32.mxu0 0.0
      %2940 = vmatmul.mubr.f32.gmra.mxu0 %v2744
      %v2941 = vpop.f32.mrf.mxu0
      %v2942 = vadd.f32 0.0, %v2941
      %v2943 = vpop.f32.mrf.mxu0
      %2944 = vmatprep.mubr.f32.mxu0 0.0
      %2945 = vmatmul.mubr.f32.gmra.mxu0 %v2747
      %v2946 = vpop.f32.mrf.mxu0
      %v2947 = vadd.f32 0.0, %v2946
      %v2948 = vpop.f32.mrf.mxu0
      %2949 = vmatprep.mubr.f32.mxu0 0.0
      %2950 = vmatmul.mubr.f32.gmra.mxu0 %v2750
      %v2951 = vpop.f32.mrf.mxu0
      %v2952 = vadd.f32 0.0, %v2951
      %v2953 = vpop.f32.mrf.mxu0
      %2954 = vmatprep.mubr.f32.mxu0 0.0
      %2955 = vmatmul.mubr.f32.gmra.mxu0 %v2753
      %v2956 = vpop.f32.mrf.mxu0
      %v2957 = vadd.f32 0.0, %v2956
      %v2958 = vpop.f32.mrf.mxu0
      %2959 = vmatprep.mubr.f32.mxu0 0.0
      %2960 = vmatmul.mubr.f32.gmra.mxu0 %v2756
      %v2961 = vpop.f32.mrf.mxu0
      %v2962 = vadd.f32 0.0, %v2961
      %v2963 = vpop.f32.mrf.mxu0
      %2964 = vmatprep.mubr.f32.mxu0 0.0
      %2965 = vmatmul.mubr.f32.gmra.mxu0 %v2759
      %v2966 = vpop.f32.mrf.mxu0
      %v2967 = vadd.f32 0.0, %v2966
      %v2968 = vpop.f32.mrf.mxu0
      %2969 = vmatprep.mubr.f32.mxu0 0.0
      %2970 = vmatmul.mubr.f32.gmra.mxu0 %v2762
      %v2971 = vpop.f32.mrf.mxu0
      %v2972 = vadd.f32 0.0, %v2971
      %v2973 = vpop.f32.mrf.mxu0
      %2974 = vmatprep.mubr.f32.mxu0 0.0
      %2975 = vmatmul.mubr.f32.gmra.mxu0 %v2765
      %v2976 = vpop.f32.mrf.mxu0
      %v2977 = vadd.f32 0.0, %v2976
      %v2978 = vpop.f32.mrf.mxu0
      %2979 = vmatprep.mubr.f32.mxu0 0.0
      %2980 = vmatmul.mubr.f32.gmra.mxu0 %v2768
      %v2981 = vpop.f32.mrf.mxu0
      %v2982 = vadd.f32 0.0, %v2981
      %v2983 = vpop.f32.mrf.mxu0
      %2984 = vmatprep.mubr.f32.mxu0 0.0
      %2985 = vmatmul.mubr.f32.gmra.mxu0 %v2771
      %v2986 = vpop.f32.mrf.mxu0
      %v2987 = vadd.f32 0.0, %v2986
      %v2988 = vpop.f32.mrf.mxu0
      %2989 = vmatprep.mubr.f32.mxu0 0.0
      %2990 = vmatmul.mubr.f32.gmra.mxu0 %v2774
      %v2991 = vpop.f32.mrf.mxu0
      %v2992 = vadd.f32 0.0, %v2991
      %v2993 = vpop.f32.mrf.mxu0
      %2994 = vmatprep.mubr.f32.mxu0 0.0
      %2995 = vmatmul.mubr.f32.gmra.mxu0 %v2777
      %v2996 = vpop.f32.mrf.mxu0
      %v2997 = vadd.f32 0.0, %v2996
      %v2998 = vpop.f32.mrf.mxu0
      %2999 = vmatprep.mubr.f32.mxu0 0.0
      %3000 = vmatmul.mubr.f32.gmra.mxu0 %v2780
      %v3001 = vpop.f32.mrf.mxu0
      %v3002 = vadd.f32 0.0, %v3001
      %v3003 = vpop.f32.mrf.mxu0
      %3004 = vmatprep.mubr.f32.mxu0 0.0
      %3005 = vmatmul.mubr.f32.gmra.mxu0 %v2783
      %v3006 = vpop.f32.mrf.mxu0
      %v3007 = vadd.f32 0.0, %v3006
      %v3008 = vpop.f32.mrf.mxu0
      %3009 = vdwg.mxu0
      %v3010 = vadd.f32 %v2622, %v2852
      %v3011 = vadd.f32 %v2623, %v2857
      %v3012 = vadd.f32 %v2624, %v2862
      %v3013 = vadd.f32 %v2625, %v2867
      %v3014 = vadd.f32 %v2626, %v2872
      %v3015 = vadd.f32 %v2627, %v2877
      %v3016 = vadd.f32 %v2628, %v2882
      %v3017 = vadd.f32 %v2629, %v2887
      %v3018 = vadd.f32 %v2630, %v2892
      %v3019 = vadd.f32 %v2631, %v2897
      %v3020 = vadd.f32 %v2632, %v2902
      %v3021 = vadd.f32 %v2633, %v2907
      %v3022 = vadd.f32 %v2634, %v2912
      %v3023 = vadd.f32 %v2635, %v2917
      %v3024 = vadd.f32 %v2636, %v2922
      %v3025 = vadd.f32 %v2637, %v2927
      %v3026 = vadd.f32 %v2638, %v2932
      %v3027 = vadd.f32 %v2639, %v2937
      %v3028 = vadd.f32 %v2640, %v2942
      %v3029 = vadd.f32 %v2641, %v2947
      %v3030 = vadd.f32 %v2642, %v2952
      %v3031 = vadd.f32 %v2643, %v2957
      %v3032 = vadd.f32 %v2644, %v2962
      %v3033 = vadd.f32 %v2645, %v2967
      %v3034 = vadd.f32 %v2646, %v2972
      %v3035 = vadd.f32 %v2647, %v2977
      %v3036 = vadd.f32 %v2648, %v2982
      %v3037 = vadd.f32 %v2649, %v2987
      %v3038 = vadd.f32 %v2650, %v2992
      %v3039 = vadd.f32 %v2651, %v2997
      %v3040 = vadd.f32 %v2652, %v3002
      %v3041 = vadd.f32 %v2653, %v3007
      %s3042 = scalar_lea.vmem [#allocation2], 48
      %v3043 = vld [vmem:[%s3042] sm:$0xff]
      %v3044 = vld [vmem:[%s3042 + $0x8] sm:$0xff]
      %v3045 = vld [vmem:[%s3042 + $0x18] sm:$0xff]
      %v3046 = vld [vmem:[%s3042 + $0x20] sm:$0xff]
      %v3047 = vld [vmem:[%s3042 + $0x30] sm:$0xff]
      %v3048 = vld [vmem:[%s3042 + $0x38] sm:$0xff]
      %v3049 = vld [vmem:[%s3042 + $0x48] sm:$0xff]
      %v3050 = vld [vmem:[%s3042 + $0x50] sm:$0xff]
      %v3051 = vld [vmem:[%s3042 + $0x60] sm:$0xff]
      %v3052 = vld [vmem:[%s3042 + $0x68] sm:$0xff]
      %v3053 = vld [vmem:[%s3042 + $0x78] sm:$0xff]
      %v3054 = vld [vmem:[%s3042 + $0x80] sm:$0xff]
      %v3055 = vld [vmem:[%s3042 + $0x90] sm:$0xff]
      %v3056 = vld [vmem:[%s3042 + $0x98] sm:$0xff]
      %v3057 = vld [vmem:[%s3042 + $0xa8] sm:$0xff]
      %v3058 = vld [vmem:[%s3042 + $0xb0] sm:$0xff]
      %v3059 = vld [vmem:[%s3042 + $0xc0] sm:$0xff]
      %v3060 = vld [vmem:[%s3042 + $0xc8] sm:$0xff]
      %v3061 = vld [vmem:[%s3042 + $0xd8] sm:$0xff]
      %v3062 = vld [vmem:[%s3042 + $0xe0] sm:$0xff]
      %v3063 = vld [vmem:[%s3042 + $0xf0] sm:$0xff]
      %v3064 = vld [vmem:[%s3042 + $0xf8] sm:$0xff]
      %v3065 = vld [vmem:[%s3042 + $0x108] sm:$0xff]
      %v3066 = vld [vmem:[%s3042 + $0x110] sm:$0xff]
      %v3067 = vld [vmem:[%s3042 + $0x120] sm:$0xff]
      %v3068 = vld [vmem:[%s3042 + $0x128] sm:$0xff]
      %v3069 = vld [vmem:[%s3042 + $0x138] sm:$0xff]
      %v3070 = vld [vmem:[%s3042 + $0x140] sm:$0xff]
      %v3071 = vld [vmem:[%s3042 + $0x150] sm:$0xff]
      %v3072 = vld [vmem:[%s3042 + $0x158] sm:$0xff]
      %v3073 = vld [vmem:[%s3042 + $0x168] sm:$0xff]
      %v3074 = vld [vmem:[%s3042 + $0x170] sm:$0xff]
      %s3075 = scalar_lea.vmem %s2, 96
      %v3076 = vld [vmem:[%s3075] sm:$0xff]
      %v3077 = vld [vmem:[%s3075 + $0x8] sm:$0xff]
      %v3079 = vsel %vm704, %v3043, 0
      %v3082 = vsel %vm704, %v3044, 0
      %v3085 = vsel %vm704, %v3045, 0
      %v3088 = vsel %vm704, %v3046, 0
      %v3091 = vsel %vm704, %v3047, 0
      %v3094 = vsel %vm704, %v3048, 0
      %v3097 = vsel %vm704, %v3049, 0
      %v3100 = vsel %vm704, %v3050, 0
      %v3103 = vsel %vm704, %v3051, 0
      %v3106 = vsel %vm704, %v3052, 0
      %v3109 = vsel %vm704, %v3053, 0
      %v3112 = vsel %vm704, %v3054, 0
      %v3115 = vsel %vm704, %v3055, 0
      %v3118 = vsel %vm704, %v3056, 0
      %v3121 = vsel %vm704, %v3057, 0
      %v3124 = vsel %vm704, %v3058, 0
      %v3127 = vsel %vm704, %v3059, 0
      %v3130 = vsel %vm704, %v3060, 0
      %v3133 = vsel %vm704, %v3061, 0
      %v3136 = vsel %vm704, %v3062, 0
      %v3139 = vsel %vm704, %v3063, 0
      %v3142 = vsel %vm704, %v3064, 0
      %v3145 = vsel %vm704, %v3065, 0
      %v3148 = vsel %vm704, %v3066, 0
      %v3151 = vsel %vm704, %v3067, 0
      %v3154 = vsel %vm704, %v3068, 0
      %v3157 = vsel %vm704, %v3069, 0
      %v3160 = vsel %vm704, %v3070, 0
      %v3163 = vsel %vm704, %v3071, 0
      %v3166 = vsel %vm704, %v3072, 0
      %v3169 = vsel %vm704, %v3073, 0
      %v3172 = vsel %vm704, %v3074, 0
      %3174 = vmatprep.subr.mxu0 0.0
      %3175 = vmatpush1.msra.mxu0 0.0
      %3176 = vmatprep.subr.mxu0 0.0
      %3177 = vmatpush1.msra.mxu0 0.0
      %3178 = vmatprep.subr.mxu0 0.0
      %3179 = vmatpush1.msra.mxu0 0.0
      %3180 = vmatprep.subr.mxu0 0.0
      %3181 = vmatpush1.msra.mxu0 0.0
      %3182 = vmatprep.subr.mxu0 0.0
      %3183 = vmatpush1.msra.mxu0 0.0
      %3184 = vmatprep.subr.mxu0 0.0
      %3185 = vmatpush1.msra.mxu0 0.0
      %3186 = vmatprep.subr.mxu0 0.0
      %3187 = vmatpush1.msra.mxu0 0.0
      %3188 = vmatprep.subr.mxu0 0.0
      %3189 = vmatpush1.msra.mxu0 0.0
      %3190 = vmatprep.subr.mxu0 0.0
      %3191 = vmatpush1.msra.mxu0 0.0
      %3192 = vmatprep.subr.mxu0 0.0
      %3193 = vmatpush1.msra.mxu0 0.0
      %3194 = vmatprep.subr.mxu0 0.0
      %3195 = vmatpush1.msra.mxu0 0.0
      %3196 = vmatprep.subr.mxu0 0.0
      %3197 = vmatpush1.msra.mxu0 0.0
      %3198 = vmatprep.subr.mxu0 0.0
      %3199 = vmatpush1.msra.mxu0 0.0
      %3200 = vmatprep.subr.mxu0 0.0
      %3201 = vmatpush1.msra.mxu0 0.0
      %3202 = vmatprep.subr.mxu0 0.0
      %3203 = vmatpush1.msra.mxu0 %v3077
      %3204 = vmatprep.subr.mxu0 0.0
      %3205 = vmatpush1.msra.mxu0 %v3076
      %3206 = vmatprep.subr.mxu0 0.0
      %3207 = vmatpush2.msra.mxu0 0.0
      %3208 = vmatprep.subr.mxu0 0.0
      %3209 = vmatpush2.msra.mxu0 0.0
      %3210 = vmatprep.subr.mxu0 0.0
      %3211 = vmatpush2.msra.mxu0 0.0
      %3212 = vmatprep.subr.mxu0 0.0
      %3213 = vmatpush2.msra.mxu0 0.0
      %3214 = vmatprep.subr.mxu0 0.0
      %3215 = vmatpush2.msra.mxu0 0.0
      %3216 = vmatprep.subr.mxu0 0.0
      %3217 = vmatpush2.msra.mxu0 0.0
      %3218 = vmatprep.subr.mxu0 0.0
      %3219 = vmatpush2.msra.mxu0 0.0
      %3220 = vmatprep.subr.mxu0 0.0
      %3221 = vmatpush2.msra.mxu0 0.0
      %3222 = vmatprep.subr.mxu0 0.0
      %3223 = vmatpush2.msra.mxu0 0.0
      %3224 = vmatprep.subr.mxu0 0.0
      %3225 = vmatpush2.msra.mxu0 0.0
      %3226 = vmatprep.subr.mxu0 0.0
      %3227 = vmatpush2.msra.mxu0 0.0
      %3228 = vmatprep.subr.mxu0 0.0
      %3229 = vmatpush2.msra.mxu0 0.0
      %3230 = vmatprep.subr.mxu0 0.0
      %3231 = vmatpush2.msra.mxu0 0.0
      %3232 = vmatprep.subr.mxu0 0.0
      %3233 = vmatpush2.msra.mxu0 0.0
      %3234 = vmatprep.subr.mxu0 0.0
      %3235 = vmatpush2.msra.mxu0 0.0
      %3236 = vmatprep.subr.mxu0 0.0
      %3237 = vmatpush2.msra.mxu0 0.0
      %3238 = vmatprep.mubr.f32.mxu0 0.0
      %3239 = vmatmul.mubr.f32.gmra.mxu0 %v3079
      %v3240 = vpop.f32.mrf.mxu0
      %v3241 = vadd.f32 0.0, %v3240
      %v3242 = vpop.f32.mrf.mxu0
      %3243 = vmatprep.mubr.f32.mxu0 0.0
      %3244 = vmatmul.mubr.f32.gmra.mxu0 %v3082
      %v3245 = vpop.f32.mrf.mxu0
      %v3246 = vadd.f32 0.0, %v3245
      %v3247 = vpop.f32.mrf.mxu0
      %3248 = vmatprep.mubr.f32.mxu0 0.0
      %3249 = vmatmul.mubr.f32.gmra.mxu0 %v3085
      %v3250 = vpop.f32.mrf.mxu0
      %v3251 = vadd.f32 0.0, %v3250
      %v3252 = vpop.f32.mrf.mxu0
      %3253 = vmatprep.mubr.f32.mxu0 0.0
      %3254 = vmatmul.mubr.f32.gmra.mxu0 %v3088
      %v3255 = vpop.f32.mrf.mxu0
      %v3256 = vadd.f32 0.0, %v3255
      %v3257 = vpop.f32.mrf.mxu0
      %3258 = vmatprep.mubr.f32.mxu0 0.0
      %3259 = vmatmul.mubr.f32.gmra.mxu0 %v3091
      %v3260 = vpop.f32.mrf.mxu0
      %v3261 = vadd.f32 0.0, %v3260
      %v3262 = vpop.f32.mrf.mxu0
      %3263 = vmatprep.mubr.f32.mxu0 0.0
      %3264 = vmatmul.mubr.f32.gmra.mxu0 %v3094
      %v3265 = vpop.f32.mrf.mxu0
      %v3266 = vadd.f32 0.0, %v3265
      %v3267 = vpop.f32.mrf.mxu0
      %3268 = vmatprep.mubr.f32.mxu0 0.0
      %3269 = vmatmul.mubr.f32.gmra.mxu0 %v3097
      %v3270 = vpop.f32.mrf.mxu0
      %v3271 = vadd.f32 0.0, %v3270
      %v3272 = vpop.f32.mrf.mxu0
      %3273 = vmatprep.mubr.f32.mxu0 0.0
      %3274 = vmatmul.mubr.f32.gmra.mxu0 %v3100
      %v3275 = vpop.f32.mrf.mxu0
      %v3276 = vadd.f32 0.0, %v3275
      %v3277 = vpop.f32.mrf.mxu0
      %3278 = vmatprep.mubr.f32.mxu0 0.0
      %3279 = vmatmul.mubr.f32.gmra.mxu0 %v3103
      %v3280 = vpop.f32.mrf.mxu0
      %v3281 = vadd.f32 0.0, %v3280
      %v3282 = vpop.f32.mrf.mxu0
      %3283 = vmatprep.mubr.f32.mxu0 0.0
      %3284 = vmatmul.mubr.f32.gmra.mxu0 %v3106
      %v3285 = vpop.f32.mrf.mxu0
      %v3286 = vadd.f32 0.0, %v3285
      %v3287 = vpop.f32.mrf.mxu0
      %3288 = vmatprep.mubr.f32.mxu0 0.0
      %3289 = vmatmul.mubr.f32.gmra.mxu0 %v3109
      %v3290 = vpop.f32.mrf.mxu0
      %v3291 = vadd.f32 0.0, %v3290
      %v3292 = vpop.f32.mrf.mxu0
      %3293 = vmatprep.mubr.f32.mxu0 0.0
      %3294 = vmatmul.mubr.f32.gmra.mxu0 %v3112
      %v3295 = vpop.f32.mrf.mxu0
      %v3296 = vadd.f32 0.0, %v3295
      %v3297 = vpop.f32.mrf.mxu0
      %3298 = vmatprep.mubr.f32.mxu0 0.0
      %3299 = vmatmul.mubr.f32.gmra.mxu0 %v3115
      %v3300 = vpop.f32.mrf.mxu0
      %v3301 = vadd.f32 0.0, %v3300
      %v3302 = vpop.f32.mrf.mxu0
      %3303 = vmatprep.mubr.f32.mxu0 0.0
      %3304 = vmatmul.mubr.f32.gmra.mxu0 %v3118
      %v3305 = vpop.f32.mrf.mxu0
      %v3306 = vadd.f32 0.0, %v3305
      %v3307 = vpop.f32.mrf.mxu0
      %3308 = vmatprep.mubr.f32.mxu0 0.0
      %3309 = vmatmul.mubr.f32.gmra.mxu0 %v3121
      %v3310 = vpop.f32.mrf.mxu0
      %v3311 = vadd.f32 0.0, %v3310
      %v3312 = vpop.f32.mrf.mxu0
      %3313 = vmatprep.mubr.f32.mxu0 0.0
      %3314 = vmatmul.mubr.f32.gmra.mxu0 %v3124
      %v3315 = vpop.f32.mrf.mxu0
      %v3316 = vadd.f32 0.0, %v3315
      %v3317 = vpop.f32.mrf.mxu0
      %3318 = vmatprep.mubr.f32.mxu0 0.0
      %3319 = vmatmul.mubr.f32.gmra.mxu0 %v3127
      %v3320 = vpop.f32.mrf.mxu0
      %v3321 = vadd.f32 0.0, %v3320
      %v3322 = vpop.f32.mrf.mxu0
      %3323 = vmatprep.mubr.f32.mxu0 0.0
      %3324 = vmatmul.mubr.f32.gmra.mxu0 %v3130
      %v3325 = vpop.f32.mrf.mxu0
      %v3326 = vadd.f32 0.0, %v3325
      %v3327 = vpop.f32.mrf.mxu0
      %3328 = vmatprep.mubr.f32.mxu0 0.0
      %3329 = vmatmul.mubr.f32.gmra.mxu0 %v3133
      %v3330 = vpop.f32.mrf.mxu0
      %v3331 = vadd.f32 0.0, %v3330
      %v3332 = vpop.f32.mrf.mxu0
      %3333 = vmatprep.mubr.f32.mxu0 0.0
      %3334 = vmatmul.mubr.f32.gmra.mxu0 %v3136
      %v3335 = vpop.f32.mrf.mxu0
      %v3336 = vadd.f32 0.0, %v3335
      %v3337 = vpop.f32.mrf.mxu0
      %3338 = vmatprep.mubr.f32.mxu0 0.0
      %3339 = vmatmul.mubr.f32.gmra.mxu0 %v3139
      %v3340 = vpop.f32.mrf.mxu0
      %v3341 = vadd.f32 0.0, %v3340
      %v3342 = vpop.f32.mrf.mxu0
      %3343 = vmatprep.mubr.f32.mxu0 0.0
      %3344 = vmatmul.mubr.f32.gmra.mxu0 %v3142
      %v3345 = vpop.f32.mrf.mxu0
      %v3346 = vadd.f32 0.0, %v3345
      %v3347 = vpop.f32.mrf.mxu0
      %3348 = vmatprep.mubr.f32.mxu0 0.0
      %3349 = vmatmul.mubr.f32.gmra.mxu0 %v3145
      %v3350 = vpop.f32.mrf.mxu0
      %v3351 = vadd.f32 0.0, %v3350
      %v3352 = vpop.f32.mrf.mxu0
      %3353 = vmatprep.mubr.f32.mxu0 0.0
      %3354 = vmatmul.mubr.f32.gmra.mxu0 %v3148
      %v3355 = vpop.f32.mrf.mxu0
      %v3356 = vadd.f32 0.0, %v3355
      %v3357 = vpop.f32.mrf.mxu0
      %3358 = vmatprep.mubr.f32.mxu0 0.0
      %3359 = vmatmul.mubr.f32.gmra.mxu0 %v3151
      %v3360 = vpop.f32.mrf.mxu0
      %v3361 = vadd.f32 0.0, %v3360
      %v3362 = vpop.f32.mrf.mxu0
      %3363 = vmatprep.mubr.f32.mxu0 0.0
      %3364 = vmatmul.mubr.f32.gmra.mxu0 %v3154
      %v3365 = vpop.f32.mrf.mxu0
      %v3366 = vadd.f32 0.0, %v3365
      %v3367 = vpop.f32.mrf.mxu0
      %3368 = vmatprep.mubr.f32.mxu0 0.0
      %3369 = vmatmul.mubr.f32.gmra.mxu0 %v3157
      %v3370 = vpop.f32.mrf.mxu0
      %v3371 = vadd.f32 0.0, %v3370
      %v3372 = vpop.f32.mrf.mxu0
      %3373 = vmatprep.mubr.f32.mxu0 0.0
      %3374 = vmatmul.mubr.f32.gmra.mxu0 %v3160
      %v3375 = vpop.f32.mrf.mxu0
      %v3376 = vadd.f32 0.0, %v3375
      %v3377 = vpop.f32.mrf.mxu0
      %3378 = vmatprep.mubr.f32.mxu0 0.0
      %3379 = vmatmul.mubr.f32.gmra.mxu0 %v3163
      %v3380 = vpop.f32.mrf.mxu0
      %v3381 = vadd.f32 0.0, %v3380
      %v3382 = vpop.f32.mrf.mxu0
      %3383 = vmatprep.mubr.f32.mxu0 0.0
      %3384 = vmatmul.mubr.f32.gmra.mxu0 %v3166
      %v3385 = vpop.f32.mrf.mxu0
      %v3386 = vadd.f32 0.0, %v3385
      %v3387 = vpop.f32.mrf.mxu0
      %3388 = vmatprep.mubr.f32.mxu0 0.0
      %3389 = vmatmul.mubr.f32.gmra.mxu0 %v3169
      %v3390 = vpop.f32.mrf.mxu0
      %v3391 = vadd.f32 0.0, %v3390
      %v3392 = vpop.f32.mrf.mxu0
      %3393 = vmatprep.mubr.f32.mxu0 0.0
      %3394 = vmatmul.mubr.f32.gmra.mxu0 %v3172
      %v3395 = vpop.f32.mrf.mxu0
      %v3396 = vadd.f32 0.0, %v3395
      %v3397 = vpop.f32.mrf.mxu0
      %3398 = vdwg.mxu0
      %v3399 = vadd.f32 %v3010, %v3241
      %v3400 = vadd.f32 %v3011, %v3246
      %v3401 = vadd.f32 %v3012, %v3251
      %v3402 = vadd.f32 %v3013, %v3256
      %v3403 = vadd.f32 %v3014, %v3261
      %v3404 = vadd.f32 %v3015, %v3266
      %v3405 = vadd.f32 %v3016, %v3271
      %v3406 = vadd.f32 %v3017, %v3276
      %v3407 = vadd.f32 %v3018, %v3281
      %v3408 = vadd.f32 %v3019, %v3286
      %v3409 = vadd.f32 %v3020, %v3291
      %v3410 = vadd.f32 %v3021, %v3296
      %v3411 = vadd.f32 %v3022, %v3301
      %v3412 = vadd.f32 %v3023, %v3306
      %v3413 = vadd.f32 %v3024, %v3311
      %v3414 = vadd.f32 %v3025, %v3316
      %v3415 = vadd.f32 %v3026, %v3321
      %v3416 = vadd.f32 %v3027, %v3326
      %v3417 = vadd.f32 %v3028, %v3331
      %v3418 = vadd.f32 %v3029, %v3336
      %v3419 = vadd.f32 %v3030, %v3341
      %v3420 = vadd.f32 %v3031, %v3346
      %v3421 = vadd.f32 %v3032, %v3351
      %v3422 = vadd.f32 %v3033, %v3356
      %v3423 = vadd.f32 %v3034, %v3361
      %v3424 = vadd.f32 %v3035, %v3366
      %v3425 = vadd.f32 %v3036, %v3371
      %v3426 = vadd.f32 %v3037, %v3376
      %v3427 = vadd.f32 %v3038, %v3381
      %v3428 = vadd.f32 %v3039, %v3386
      %v3429 = vadd.f32 %v3040, %v3391
      %v3430 = vadd.f32 %v3041, %v3396
      %v3431 = vld [vmem:[%s3042 + $0x1] sm:$0xff]
      %v3432 = vld [vmem:[%s3042 + $0x9] sm:$0xff]
      %v3433 = vld [vmem:[%s3042 + $0x19] sm:$0xff]
      %v3434 = vld [vmem:[%s3042 + $0x21] sm:$0xff]
      %v3435 = vld [vmem:[%s3042 + $0x31] sm:$0xff]
      %v3436 = vld [vmem:[%s3042 + $0x39] sm:$0xff]
      %v3437 = vld [vmem:[%s3042 + $0x49] sm:$0xff]
      %v3438 = vld [vmem:[%s3042 + $0x51] sm:$0xff]
      %v3439 = vld [vmem:[%s3042 + $0x61] sm:$0xff]
      %v3440 = vld [vmem:[%s3042 + $0x69] sm:$0xff]
      %v3441 = vld [vmem:[%s3042 + $0x79] sm:$0xff]
      %v3442 = vld [vmem:[%s3042 + $0x81] sm:$0xff]
      %v3443 = vld [vmem:[%s3042 + $0x91] sm:$0xff]
      %v3444 = vld [vmem:[%s3042 + $0x99] sm:$0xff]
      %v3445 = vld [vmem:[%s3042 + $0xa9] sm:$0xff]
      %v3446 = vld [vmem:[%s3042 + $0xb1] sm:$0xff]
      %v3447 = vld [vmem:[%s3042 + $0xc1] sm:$0xff]
      %v3448 = vld [vmem:[%s3042 + $0xc9] sm:$0xff]
      %v3449 = vld [vmem:[%s3042 + $0xd9] sm:$0xff]
      %v3450 = vld [vmem:[%s3042 + $0xe1] sm:$0xff]
      %v3451 = vld [vmem:[%s3042 + $0xf1] sm:$0xff]
      %v3452 = vld [vmem:[%s3042 + $0xf9] sm:$0xff]
      %v3453 = vld [vmem:[%s3042 + $0x109] sm:$0xff]
      %v3454 = vld [vmem:[%s3042 + $0x111] sm:$0xff]
      %v3455 = vld [vmem:[%s3042 + $0x121] sm:$0xff]
      %v3456 = vld [vmem:[%s3042 + $0x129] sm:$0xff]
      %v3457 = vld [vmem:[%s3042 + $0x139] sm:$0xff]
      %v3458 = vld [vmem:[%s3042 + $0x141] sm:$0xff]
      %v3459 = vld [vmem:[%s3042 + $0x151] sm:$0xff]
      %v3460 = vld [vmem:[%s3042 + $0x159] sm:$0xff]
      %v3461 = vld [vmem:[%s3042 + $0x169] sm:$0xff]
      %v3462 = vld [vmem:[%s3042 + $0x171] sm:$0xff]
      %s3463 = scalar_lea.vmem %s2, 112
      %v3464 = vld [vmem:[%s3463] sm:$0xff]
      %v3465 = vld [vmem:[%s3463 + $0x8] sm:$0xff]
      %v3467 = vsel %vm704, %v3431, 0
      %v3470 = vsel %vm704, %v3432, 0
      %v3473 = vsel %vm704, %v3433, 0
      %v3476 = vsel %vm704, %v3434, 0
      %v3479 = vsel %vm704, %v3435, 0
      %v3482 = vsel %vm704, %v3436, 0
      %v3485 = vsel %vm704, %v3437, 0
      %v3488 = vsel %vm704, %v3438, 0
      %v3491 = vsel %vm704, %v3439, 0
      %v3494 = vsel %vm704, %v3440, 0
      %v3497 = vsel %vm704, %v3441, 0
      %v3500 = vsel %vm704, %v3442, 0
      %v3503 = vsel %vm704, %v3443, 0
      %v3506 = vsel %vm704, %v3444, 0
      %v3509 = vsel %vm704, %v3445, 0
      %v3512 = vsel %vm704, %v3446, 0
      %v3515 = vsel %vm704, %v3447, 0
      %v3518 = vsel %vm704, %v3448, 0
      %v3521 = vsel %vm704, %v3449, 0
      %v3524 = vsel %vm704, %v3450, 0
      %v3527 = vsel %vm704, %v3451, 0
      %v3530 = vsel %vm704, %v3452, 0
      %v3533 = vsel %vm704, %v3453, 0
      %v3536 = vsel %vm704, %v3454, 0
      %v3539 = vsel %vm704, %v3455, 0
      %v3542 = vsel %vm704, %v3456, 0
      %v3545 = vsel %vm704, %v3457, 0
      %v3548 = vsel %vm704, %v3458, 0
      %v3551 = vsel %vm704, %v3459, 0
      %v3554 = vsel %vm704, %v3460, 0
      %v3557 = vsel %vm704, %v3461, 0
      %v3560 = vsel %vm704, %v3462, 0
      %3562 = vmatprep.subr.mxu0 0.0
      %3563 = vmatpush1.msra.mxu0 0.0
      %3564 = vmatprep.subr.mxu0 0.0
      %3565 = vmatpush1.msra.mxu0 0.0
      %3566 = vmatprep.subr.mxu0 0.0
      %3567 = vmatpush1.msra.mxu0 0.0
      %3568 = vmatprep.subr.mxu0 0.0
      %3569 = vmatpush1.msra.mxu0 0.0
      %3570 = vmatprep.subr.mxu0 0.0
      %3571 = vmatpush1.msra.mxu0 0.0
      %3572 = vmatprep.subr.mxu0 0.0
      %3573 = vmatpush1.msra.mxu0 0.0
      %3574 = vmatprep.subr.mxu0 0.0
      %3575 = vmatpush1.msra.mxu0 0.0
      %3576 = vmatprep.subr.mxu0 0.0
      %3577 = vmatpush1.msra.mxu0 0.0
      %3578 = vmatprep.subr.mxu0 0.0
      %3579 = vmatpush1.msra.mxu0 0.0
      %3580 = vmatprep.subr.mxu0 0.0
      %3581 = vmatpush1.msra.mxu0 0.0
      %3582 = vmatprep.subr.mxu0 0.0
      %3583 = vmatpush1.msra.mxu0 0.0
      %3584 = vmatprep.subr.mxu0 0.0
      %3585 = vmatpush1.msra.mxu0 0.0
      %3586 = vmatprep.subr.mxu0 0.0
      %3587 = vmatpush1.msra.mxu0 0.0
      %3588 = vmatprep.subr.mxu0 0.0
      %3589 = vmatpush1.msra.mxu0 0.0
      %3590 = vmatprep.subr.mxu0 0.0
      %3591 = vmatpush1.msra.mxu0 %v3465
      %3592 = vmatprep.subr.mxu0 0.0
      %3593 = vmatpush1.msra.mxu0 %v3464
      %3594 = vmatprep.subr.mxu0 0.0
      %3595 = vmatpush2.msra.mxu0 0.0
      %3596 = vmatprep.subr.mxu0 0.0
      %3597 = vmatpush2.msra.mxu0 0.0
      %3598 = vmatprep.subr.mxu0 0.0
      %3599 = vmatpush2.msra.mxu0 0.0
      %3600 = vmatprep.subr.mxu0 0.0
      %3601 = vmatpush2.msra.mxu0 0.0
      %3602 = vmatprep.subr.mxu0 0.0
      %3603 = vmatpush2.msra.mxu0 0.0
      %3604 = vmatprep.subr.mxu0 0.0
      %3605 = vmatpush2.msra.mxu0 0.0
      %3606 = vmatprep.subr.mxu0 0.0
      %3607 = vmatpush2.msra.mxu0 0.0
      %3608 = vmatprep.subr.mxu0 0.0
      %3609 = vmatpush2.msra.mxu0 0.0
      %3610 = vmatprep.subr.mxu0 0.0
      %3611 = vmatpush2.msra.mxu0 0.0
      %3612 = vmatprep.subr.mxu0 0.0
      %3613 = vmatpush2.msra.mxu0 0.0
      %3614 = vmatprep.subr.mxu0 0.0
      %3615 = vmatpush2.msra.mxu0 0.0
      %3616 = vmatprep.subr.mxu0 0.0
      %3617 = vmatpush2.msra.mxu0 0.0
      %3618 = vmatprep.subr.mxu0 0.0
      %3619 = vmatpush2.msra.mxu0 0.0
      %3620 = vmatprep.subr.mxu0 0.0
      %3621 = vmatpush2.msra.mxu0 0.0
      %3622 = vmatprep.subr.mxu0 0.0
      %3623 = vmatpush2.msra.mxu0 0.0
      %3624 = vmatprep.subr.mxu0 0.0
      %3625 = vmatpush2.msra.mxu0 0.0
      %3626 = vmatprep.mubr.f32.mxu0 0.0
      %3627 = vmatmul.mubr.f32.gmra.mxu0 %v3467
      %v3628 = vpop.f32.mrf.mxu0
      %v3629 = vadd.f32 0.0, %v3628
      %v3630 = vpop.f32.mrf.mxu0
      %3631 = vmatprep.mubr.f32.mxu0 0.0
      %3632 = vmatmul.mubr.f32.gmra.mxu0 %v3470
      %v3633 = vpop.f32.mrf.mxu0
      %v3634 = vadd.f32 0.0, %v3633
      %v3635 = vpop.f32.mrf.mxu0
      %3636 = vmatprep.mubr.f32.mxu0 0.0
      %3637 = vmatmul.mubr.f32.gmra.mxu0 %v3473
      %v3638 = vpop.f32.mrf.mxu0
      %v3639 = vadd.f32 0.0, %v3638
      %v3640 = vpop.f32.mrf.mxu0
      %3641 = vmatprep.mubr.f32.mxu0 0.0
      %3642 = vmatmul.mubr.f32.gmra.mxu0 %v3476
      %v3643 = vpop.f32.mrf.mxu0
      %v3644 = vadd.f32 0.0, %v3643
      %v3645 = vpop.f32.mrf.mxu0
      %3646 = vmatprep.mubr.f32.mxu0 0.0
      %3647 = vmatmul.mubr.f32.gmra.mxu0 %v3479
      %v3648 = vpop.f32.mrf.mxu0
      %v3649 = vadd.f32 0.0, %v3648
      %v3650 = vpop.f32.mrf.mxu0
      %3651 = vmatprep.mubr.f32.mxu0 0.0
      %3652 = vmatmul.mubr.f32.gmra.mxu0 %v3482
      %v3653 = vpop.f32.mrf.mxu0
      %v3654 = vadd.f32 0.0, %v3653
      %v3655 = vpop.f32.mrf.mxu0
      %3656 = vmatprep.mubr.f32.mxu0 0.0
      %3657 = vmatmul.mubr.f32.gmra.mxu0 %v3485
      %v3658 = vpop.f32.mrf.mxu0
      %v3659 = vadd.f32 0.0, %v3658
      %v3660 = vpop.f32.mrf.mxu0
      %3661 = vmatprep.mubr.f32.mxu0 0.0
      %3662 = vmatmul.mubr.f32.gmra.mxu0 %v3488
      %v3663 = vpop.f32.mrf.mxu0
      %v3664 = vadd.f32 0.0, %v3663
      %v3665 = vpop.f32.mrf.mxu0
      %3666 = vmatprep.mubr.f32.mxu0 0.0
      %3667 = vmatmul.mubr.f32.gmra.mxu0 %v3491
      %v3668 = vpop.f32.mrf.mxu0
      %v3669 = vadd.f32 0.0, %v3668
      %v3670 = vpop.f32.mrf.mxu0
      %3671 = vmatprep.mubr.f32.mxu0 0.0
      %3672 = vmatmul.mubr.f32.gmra.mxu0 %v3494
      %v3673 = vpop.f32.mrf.mxu0
      %v3674 = vadd.f32 0.0, %v3673
      %v3675 = vpop.f32.mrf.mxu0
      %3676 = vmatprep.mubr.f32.mxu0 0.0
      %3677 = vmatmul.mubr.f32.gmra.mxu0 %v3497
      %v3678 = vpop.f32.mrf.mxu0
      %v3679 = vadd.f32 0.0, %v3678
      %v3680 = vpop.f32.mrf.mxu0
      %3681 = vmatprep.mubr.f32.mxu0 0.0
      %3682 = vmatmul.mubr.f32.gmra.mxu0 %v3500
      %v3683 = vpop.f32.mrf.mxu0
      %v3684 = vadd.f32 0.0, %v3683
      %v3685 = vpop.f32.mrf.mxu0
      %3686 = vmatprep.mubr.f32.mxu0 0.0
      %3687 = vmatmul.mubr.f32.gmra.mxu0 %v3503
      %v3688 = vpop.f32.mrf.mxu0
      %v3689 = vadd.f32 0.0, %v3688
      %v3690 = vpop.f32.mrf.mxu0
      %3691 = vmatprep.mubr.f32.mxu0 0.0
      %3692 = vmatmul.mubr.f32.gmra.mxu0 %v3506
      %v3693 = vpop.f32.mrf.mxu0
      %v3694 = vadd.f32 0.0, %v3693
      %v3695 = vpop.f32.mrf.mxu0
      %3696 = vmatprep.mubr.f32.mxu0 0.0
      %3697 = vmatmul.mubr.f32.gmra.mxu0 %v3509
      %v3698 = vpop.f32.mrf.mxu0
      %v3699 = vadd.f32 0.0, %v3698
      %v3700 = vpop.f32.mrf.mxu0
      %3701 = vmatprep.mubr.f32.mxu0 0.0
      %3702 = vmatmul.mubr.f32.gmra.mxu0 %v3512
      %v3703 = vpop.f32.mrf.mxu0
      %v3704 = vadd.f32 0.0, %v3703
      %v3705 = vpop.f32.mrf.mxu0
      %3706 = vmatprep.mubr.f32.mxu0 0.0
      %3707 = vmatmul.mubr.f32.gmra.mxu0 %v3515
      %v3708 = vpop.f32.mrf.mxu0
      %v3709 = vadd.f32 0.0, %v3708
      %v3710 = vpop.f32.mrf.mxu0
      %3711 = vmatprep.mubr.f32.mxu0 0.0
      %3712 = vmatmul.mubr.f32.gmra.mxu0 %v3518
      %v3713 = vpop.f32.mrf.mxu0
      %v3714 = vadd.f32 0.0, %v3713
      %v3715 = vpop.f32.mrf.mxu0
      %3716 = vmatprep.mubr.f32.mxu0 0.0
      %3717 = vmatmul.mubr.f32.gmra.mxu0 %v3521
      %v3718 = vpop.f32.mrf.mxu0
      %v3719 = vadd.f32 0.0, %v3718
      %v3720 = vpop.f32.mrf.mxu0
      %3721 = vmatprep.mubr.f32.mxu0 0.0
      %3722 = vmatmul.mubr.f32.gmra.mxu0 %v3524
      %v3723 = vpop.f32.mrf.mxu0
      %v3724 = vadd.f32 0.0, %v3723
      %v3725 = vpop.f32.mrf.mxu0
      %3726 = vmatprep.mubr.f32.mxu0 0.0
      %3727 = vmatmul.mubr.f32.gmra.mxu0 %v3527
      %v3728 = vpop.f32.mrf.mxu0
      %v3729 = vadd.f32 0.0, %v3728
      %v3730 = vpop.f32.mrf.mxu0
      %3731 = vmatprep.mubr.f32.mxu0 0.0
      %3732 = vmatmul.mubr.f32.gmra.mxu0 %v3530
      %v3733 = vpop.f32.mrf.mxu0
      %v3734 = vadd.f32 0.0, %v3733
      %v3735 = vpop.f32.mrf.mxu0
      %3736 = vmatprep.mubr.f32.mxu0 0.0
      %3737 = vmatmul.mubr.f32.gmra.mxu0 %v3533
      %v3738 = vpop.f32.mrf.mxu0
      %v3739 = vadd.f32 0.0, %v3738
      %v3740 = vpop.f32.mrf.mxu0
      %3741 = vmatprep.mubr.f32.mxu0 0.0
      %3742 = vmatmul.mubr.f32.gmra.mxu0 %v3536
      %v3743 = vpop.f32.mrf.mxu0
      %v3744 = vadd.f32 0.0, %v3743
      %v3745 = vpop.f32.mrf.mxu0
      %3746 = vmatprep.mubr.f32.mxu0 0.0
      %3747 = vmatmul.mubr.f32.gmra.mxu0 %v3539
      %v3748 = vpop.f32.mrf.mxu0
      %v3749 = vadd.f32 0.0, %v3748
      %v3750 = vpop.f32.mrf.mxu0
      %3751 = vmatprep.mubr.f32.mxu0 0.0
      %3752 = vmatmul.mubr.f32.gmra.mxu0 %v3542
      %v3753 = vpop.f32.mrf.mxu0
      %v3754 = vadd.f32 0.0, %v3753
      %v3755 = vpop.f32.mrf.mxu0
      %3756 = vmatprep.mubr.f32.mxu0 0.0
      %3757 = vmatmul.mubr.f32.gmra.mxu0 %v3545
      %v3758 = vpop.f32.mrf.mxu0
      %v3759 = vadd.f32 0.0, %v3758
      %v3760 = vpop.f32.mrf.mxu0
      %3761 = vmatprep.mubr.f32.mxu0 0.0
      %3762 = vmatmul.mubr.f32.gmra.mxu0 %v3548
      %v3763 = vpop.f32.mrf.mxu0
      %v3764 = vadd.f32 0.0, %v3763
      %v3765 = vpop.f32.mrf.mxu0
      %3766 = vmatprep.mubr.f32.mxu0 0.0
      %3767 = vmatmul.mubr.f32.gmra.mxu0 %v3551
      %v3768 = vpop.f32.mrf.mxu0
      %v3769 = vadd.f32 0.0, %v3768
      %v3770 = vpop.f32.mrf.mxu0
      %3771 = vmatprep.mubr.f32.mxu0 0.0
      %3772 = vmatmul.mubr.f32.gmra.mxu0 %v3554
      %v3773 = vpop.f32.mrf.mxu0
      %v3774 = vadd.f32 0.0, %v3773
      %v3775 = vpop.f32.mrf.mxu0
      %3776 = vmatprep.mubr.f32.mxu0 0.0
      %3777 = vmatmul.mubr.f32.gmra.mxu0 %v3557
      %v3778 = vpop.f32.mrf.mxu0
      %v3779 = vadd.f32 0.0, %v3778
      %v3780 = vpop.f32.mrf.mxu0
      %3781 = vmatprep.mubr.f32.mxu0 0.0
      %3782 = vmatmul.mubr.f32.gmra.mxu0 %v3560
      %v3783 = vpop.f32.mrf.mxu0
      %v3784 = vadd.f32 0.0, %v3783
      %v3785 = vpop.f32.mrf.mxu0
      %3786 = vdwg.mxu0
      %v3787 = vadd.f32 %v3399, %v3629
      %v3788 = vadd.f32 %v3400, %v3634
      %v3789 = vadd.f32 %v3401, %v3639
      %v3790 = vadd.f32 %v3402, %v3644
      %v3791 = vadd.f32 %v3403, %v3649
      %v3792 = vadd.f32 %v3404, %v3654
      %v3793 = vadd.f32 %v3405, %v3659
      %v3794 = vadd.f32 %v3406, %v3664
      %v3795 = vadd.f32 %v3407, %v3669
      %v3796 = vadd.f32 %v3408, %v3674
      %v3797 = vadd.f32 %v3409, %v3679
      %v3798 = vadd.f32 %v3410, %v3684
      %v3799 = vadd.f32 %v3411, %v3689
      %v3800 = vadd.f32 %v3412, %v3694
      %v3801 = vadd.f32 %v3413, %v3699
      %v3802 = vadd.f32 %v3414, %v3704
      %v3803 = vadd.f32 %v3415, %v3709
      %v3804 = vadd.f32 %v3416, %v3714
      %v3805 = vadd.f32 %v3417, %v3719
      %v3806 = vadd.f32 %v3418, %v3724
      %v3807 = vadd.f32 %v3419, %v3729
      %v3808 = vadd.f32 %v3420, %v3734
      %v3809 = vadd.f32 %v3421, %v3739
      %v3810 = vadd.f32 %v3422, %v3744
      %v3811 = vadd.f32 %v3423, %v3749
      %v3812 = vadd.f32 %v3424, %v3754
      %v3813 = vadd.f32 %v3425, %v3759
      %v3814 = vadd.f32 %v3426, %v3764
      %v3815 = vadd.f32 %v3427, %v3769
      %v3816 = vadd.f32 %v3428, %v3774
      %v3817 = vadd.f32 %v3429, %v3779
      %v3818 = vadd.f32 %v3430, %v3784
      %v3819 = vld [vmem:[%s3042 + $0x2] sm:$0xff]
      %v3820 = vld [vmem:[%s3042 + $0xa] sm:$0xff]
      %v3821 = vld [vmem:[%s3042 + $0x1a] sm:$0xff]
      %v3822 = vld [vmem:[%s3042 + $0x22] sm:$0xff]
      %v3823 = vld [vmem:[%s3042 + $0x32] sm:$0xff]
      %v3824 = vld [vmem:[%s3042 + $0x3a] sm:$0xff]
      %v3825 = vld [vmem:[%s3042 + $0x4a] sm:$0xff]
      %v3826 = vld [vmem:[%s3042 + $0x52] sm:$0xff]
      %v3827 = vld [vmem:[%s3042 + $0x62] sm:$0xff]
      %v3828 = vld [vmem:[%s3042 + $0x6a] sm:$0xff]
      %v3829 = vld [vmem:[%s3042 + $0x7a] sm:$0xff]
      %v3830 = vld [vmem:[%s3042 + $0x82] sm:$0xff]
      %v3831 = vld [vmem:[%s3042 + $0x92] sm:$0xff]
      %v3832 = vld [vmem:[%s3042 + $0x9a] sm:$0xff]
      %v3833 = vld [vmem:[%s3042 + $0xaa] sm:$0xff]
      %v3834 = vld [vmem:[%s3042 + $0xb2] sm:$0xff]
      %v3835 = vld [vmem:[%s3042 + $0xc2] sm:$0xff]
      %v3836 = vld [vmem:[%s3042 + $0xca] sm:$0xff]
      %v3837 = vld [vmem:[%s3042 + $0xda] sm:$0xff]
      %v3838 = vld [vmem:[%s3042 + $0xe2] sm:$0xff]
      %v3839 = vld [vmem:[%s3042 + $0xf2] sm:$0xff]
      %v3840 = vld [vmem:[%s3042 + $0xfa] sm:$0xff]
      %v3841 = vld [vmem:[%s3042 + $0x10a] sm:$0xff]
      %v3842 = vld [vmem:[%s3042 + $0x112] sm:$0xff]
      %v3843 = vld [vmem:[%s3042 + $0x122] sm:$0xff]
      %v3844 = vld [vmem:[%s3042 + $0x12a] sm:$0xff]
      %v3845 = vld [vmem:[%s3042 + $0x13a] sm:$0xff]
      %v3846 = vld [vmem:[%s3042 + $0x142] sm:$0xff]
      %v3847 = vld [vmem:[%s3042 + $0x152] sm:$0xff]
      %v3848 = vld [vmem:[%s3042 + $0x15a] sm:$0xff]
      %v3849 = vld [vmem:[%s3042 + $0x16a] sm:$0xff]
      %v3850 = vld [vmem:[%s3042 + $0x172] sm:$0xff]
      %s3851 = scalar_lea.vmem %s2, 128
      %v3852 = vld [vmem:[%s3851] sm:$0xff]
      %v3853 = vld [vmem:[%s3851 + $0x8] sm:$0xff]
      %v3855 = vsel %vm704, %v3819, 0
      %v3858 = vsel %vm704, %v3820, 0
      %v3861 = vsel %vm704, %v3821, 0
      %v3864 = vsel %vm704, %v3822, 0
      %v3867 = vsel %vm704, %v3823, 0
      %v3870 = vsel %vm704, %v3824, 0
      %v3873 = vsel %vm704, %v3825, 0
      %v3876 = vsel %vm704, %v3826, 0
      %v3879 = vsel %vm704, %v3827, 0
      %v3882 = vsel %vm704, %v3828, 0
      %v3885 = vsel %vm704, %v3829, 0
      %v3888 = vsel %vm704, %v3830, 0
      %v3891 = vsel %vm704, %v3831, 0
      %v3894 = vsel %vm704, %v3832, 0
      %v3897 = vsel %vm704, %v3833, 0
      %v3900 = vsel %vm704, %v3834, 0
      %v3903 = vsel %vm704, %v3835, 0
      %v3906 = vsel %vm704, %v3836, 0
      %v3909 = vsel %vm704, %v3837, 0
      %v3912 = vsel %vm704, %v3838, 0
      %v3915 = vsel %vm704, %v3839, 0
      %v3918 = vsel %vm704, %v3840, 0
      %v3921 = vsel %vm704, %v3841, 0
      %v3924 = vsel %vm704, %v3842, 0
      %v3927 = vsel %vm704, %v3843, 0
      %v3930 = vsel %vm704, %v3844, 0
      %v3933 = vsel %vm704, %v3845, 0
      %v3936 = vsel %vm704, %v3846, 0
      %v3939 = vsel %vm704, %v3847, 0
      %v3942 = vsel %vm704, %v3848, 0
      %v3945 = vsel %vm704, %v3849, 0
      %v3948 = vsel %vm704, %v3850, 0
      %3950 = vmatprep.subr.mxu0 0.0
      %3951 = vmatpush1.msra.mxu0 0.0
      %3952 = vmatprep.subr.mxu0 0.0
      %3953 = vmatpush1.msra.mxu0 0.0
      %3954 = vmatprep.subr.mxu0 0.0
      %3955 = vmatpush1.msra.mxu0 0.0
      %3956 = vmatprep.subr.mxu0 0.0
      %3957 = vmatpush1.msra.mxu0 0.0
      %3958 = vmatprep.subr.mxu0 0.0
      %3959 = vmatpush1.msra.mxu0 0.0
      %3960 = vmatprep.subr.mxu0 0.0
      %3961 = vmatpush1.msra.mxu0 0.0
      %3962 = vmatprep.subr.mxu0 0.0
      %3963 = vmatpush1.msra.mxu0 0.0
      %3964 = vmatprep.subr.mxu0 0.0
      %3965 = vmatpush1.msra.mxu0 0.0
      %3966 = vmatprep.subr.mxu0 0.0
      %3967 = vmatpush1.msra.mxu0 0.0
      %3968 = vmatprep.subr.mxu0 0.0
      %3969 = vmatpush1.msra.mxu0 0.0
      %3970 = vmatprep.subr.mxu0 0.0
      %3971 = vmatpush1.msra.mxu0 0.0
      %3972 = vmatprep.subr.mxu0 0.0
      %3973 = vmatpush1.msra.mxu0 0.0
      %3974 = vmatprep.subr.mxu0 0.0
      %3975 = vmatpush1.msra.mxu0 0.0
      %3976 = vmatprep.subr.mxu0 0.0
      %3977 = vmatpush1.msra.mxu0 0.0
      %3978 = vmatprep.subr.mxu0 0.0
      %3979 = vmatpush1.msra.mxu0 %v3853
      %3980 = vmatprep.subr.mxu0 0.0
      %3981 = vmatpush1.msra.mxu0 %v3852
      %3982 = vmatprep.subr.mxu0 0.0
      %3983 = vmatpush2.msra.mxu0 0.0
      %3984 = vmatprep.subr.mxu0 0.0
      %3985 = vmatpush2.msra.mxu0 0.0
      %3986 = vmatprep.subr.mxu0 0.0
      %3987 = vmatpush2.msra.mxu0 0.0
      %3988 = vmatprep.subr.mxu0 0.0
      %3989 = vmatpush2.msra.mxu0 0.0
      %3990 = vmatprep.subr.mxu0 0.0
      %3991 = vmatpush2.msra.mxu0 0.0
      %3992 = vmatprep.subr.mxu0 0.0
      %3993 = vmatpush2.msra.mxu0 0.0
      %3994 = vmatprep.subr.mxu0 0.0
      %3995 = vmatpush2.msra.mxu0 0.0
      %3996 = vmatprep.subr.mxu0 0.0
      %3997 = vmatpush2.msra.mxu0 0.0
      %3998 = vmatprep.subr.mxu0 0.0
      %3999 = vmatpush2.msra.mxu0 0.0
      %4000 = vmatprep.subr.mxu0 0.0
      %4001 = vmatpush2.msra.mxu0 0.0
      %4002 = vmatprep.subr.mxu0 0.0
      %4003 = vmatpush2.msra.mxu0 0.0
      %4004 = vmatprep.subr.mxu0 0.0
      %4005 = vmatpush2.msra.mxu0 0.0
      %4006 = vmatprep.subr.mxu0 0.0
      %4007 = vmatpush2.msra.mxu0 0.0
      %4008 = vmatprep.subr.mxu0 0.0
      %4009 = vmatpush2.msra.mxu0 0.0
      %4010 = vmatprep.subr.mxu0 0.0
      %4011 = vmatpush2.msra.mxu0 0.0
      %4012 = vmatprep.subr.mxu0 0.0
      %4013 = vmatpush2.msra.mxu0 0.0
      %4014 = vmatprep.mubr.f32.mxu0 0.0
      %4015 = vmatmul.mubr.f32.gmra.mxu0 %v3855
      %v4016 = vpop.f32.mrf.mxu0
      %v4017 = vadd.f32 0.0, %v4016
      %v4018 = vpop.f32.mrf.mxu0
      %4019 = vmatprep.mubr.f32.mxu0 0.0
      %4020 = vmatmul.mubr.f32.gmra.mxu0 %v3858
      %v4021 = vpop.f32.mrf.mxu0
      %v4022 = vadd.f32 0.0, %v4021
      %v4023 = vpop.f32.mrf.mxu0
      %4024 = vmatprep.mubr.f32.mxu0 0.0
      %4025 = vmatmul.mubr.f32.gmra.mxu0 %v3861
      %v4026 = vpop.f32.mrf.mxu0
      %v4027 = vadd.f32 0.0, %v4026
      %v4028 = vpop.f32.mrf.mxu0
      %4029 = vmatprep.mubr.f32.mxu0 0.0
      %4030 = vmatmul.mubr.f32.gmra.mxu0 %v3864
      %v4031 = vpop.f32.mrf.mxu0
      %v4032 = vadd.f32 0.0, %v4031
      %v4033 = vpop.f32.mrf.mxu0
      %4034 = vmatprep.mubr.f32.mxu0 0.0
      %4035 = vmatmul.mubr.f32.gmra.mxu0 %v3867
      %v4036 = vpop.f32.mrf.mxu0
      %v4037 = vadd.f32 0.0, %v4036
      %v4038 = vpop.f32.mrf.mxu0
      %4039 = vmatprep.mubr.f32.mxu0 0.0
      %4040 = vmatmul.mubr.f32.gmra.mxu0 %v3870
      %v4041 = vpop.f32.mrf.mxu0
      %v4042 = vadd.f32 0.0, %v4041
      %v4043 = vpop.f32.mrf.mxu0
      %4044 = vmatprep.mubr.f32.mxu0 0.0
      %4045 = vmatmul.mubr.f32.gmra.mxu0 %v3873
      %v4046 = vpop.f32.mrf.mxu0
      %v4047 = vadd.f32 0.0, %v4046
      %v4048 = vpop.f32.mrf.mxu0
      %4049 = vmatprep.mubr.f32.mxu0 0.0
      %4050 = vmatmul.mubr.f32.gmra.mxu0 %v3876
      %v4051 = vpop.f32.mrf.mxu0
      %v4052 = vadd.f32 0.0, %v4051
      %v4053 = vpop.f32.mrf.mxu0
      %4054 = vmatprep.mubr.f32.mxu0 0.0
      %4055 = vmatmul.mubr.f32.gmra.mxu0 %v3879
      %v4056 = vpop.f32.mrf.mxu0
      %v4057 = vadd.f32 0.0, %v4056
      %v4058 = vpop.f32.mrf.mxu0
      %4059 = vmatprep.mubr.f32.mxu0 0.0
      %4060 = vmatmul.mubr.f32.gmra.mxu0 %v3882
      %v4061 = vpop.f32.mrf.mxu0
      %v4062 = vadd.f32 0.0, %v4061
      %v4063 = vpop.f32.mrf.mxu0
      %4064 = vmatprep.mubr.f32.mxu0 0.0
      %4065 = vmatmul.mubr.f32.gmra.mxu0 %v3885
      %v4066 = vpop.f32.mrf.mxu0
      %v4067 = vadd.f32 0.0, %v4066
      %v4068 = vpop.f32.mrf.mxu0
      %4069 = vmatprep.mubr.f32.mxu0 0.0
      %4070 = vmatmul.mubr.f32.gmra.mxu0 %v3888
      %v4071 = vpop.f32.mrf.mxu0
      %v4072 = vadd.f32 0.0, %v4071
      %v4073 = vpop.f32.mrf.mxu0
      %4074 = vmatprep.mubr.f32.mxu0 0.0
      %4075 = vmatmul.mubr.f32.gmra.mxu0 %v3891
      %v4076 = vpop.f32.mrf.mxu0
      %v4077 = vadd.f32 0.0, %v4076
      %v4078 = vpop.f32.mrf.mxu0
      %4079 = vmatprep.mubr.f32.mxu0 0.0
      %4080 = vmatmul.mubr.f32.gmra.mxu0 %v3894
      %v4081 = vpop.f32.mrf.mxu0
      %v4082 = vadd.f32 0.0, %v4081
      %v4083 = vpop.f32.mrf.mxu0
      %4084 = vmatprep.mubr.f32.mxu0 0.0
      %4085 = vmatmul.mubr.f32.gmra.mxu0 %v3897
      %v4086 = vpop.f32.mrf.mxu0
      %v4087 = vadd.f32 0.0, %v4086
      %v4088 = vpop.f32.mrf.mxu0
      %4089 = vmatprep.mubr.f32.mxu0 0.0
      %4090 = vmatmul.mubr.f32.gmra.mxu0 %v3900
      %v4091 = vpop.f32.mrf.mxu0
      %v4092 = vadd.f32 0.0, %v4091
      %v4093 = vpop.f32.mrf.mxu0
      %4094 = vmatprep.mubr.f32.mxu0 0.0
      %4095 = vmatmul.mubr.f32.gmra.mxu0 %v3903
      %v4096 = vpop.f32.mrf.mxu0
      %v4097 = vadd.f32 0.0, %v4096
      %v4098 = vpop.f32.mrf.mxu0
      %4099 = vmatprep.mubr.f32.mxu0 0.0
      %4100 = vmatmul.mubr.f32.gmra.mxu0 %v3906
      %v4101 = vpop.f32.mrf.mxu0
      %v4102 = vadd.f32 0.0, %v4101
      %v4103 = vpop.f32.mrf.mxu0
      %4104 = vmatprep.mubr.f32.mxu0 0.0
      %4105 = vmatmul.mubr.f32.gmra.mxu0 %v3909
      %v4106 = vpop.f32.mrf.mxu0
      %v4107 = vadd.f32 0.0, %v4106
      %v4108 = vpop.f32.mrf.mxu0
      %4109 = vmatprep.mubr.f32.mxu0 0.0
      %4110 = vmatmul.mubr.f32.gmra.mxu0 %v3912
      %v4111 = vpop.f32.mrf.mxu0
      %v4112 = vadd.f32 0.0, %v4111
      %v4113 = vpop.f32.mrf.mxu0
      %4114 = vmatprep.mubr.f32.mxu0 0.0
      %4115 = vmatmul.mubr.f32.gmra.mxu0 %v3915
      %v4116 = vpop.f32.mrf.mxu0
      %v4117 = vadd.f32 0.0, %v4116
      %v4118 = vpop.f32.mrf.mxu0
      %4119 = vmatprep.mubr.f32.mxu0 0.0
      %4120 = vmatmul.mubr.f32.gmra.mxu0 %v3918
      %v4121 = vpop.f32.mrf.mxu0
      %v4122 = vadd.f32 0.0, %v4121
      %v4123 = vpop.f32.mrf.mxu0
      %4124 = vmatprep.mubr.f32.mxu0 0.0
      %4125 = vmatmul.mubr.f32.gmra.mxu0 %v3921
      %v4126 = vpop.f32.mrf.mxu0
      %v4127 = vadd.f32 0.0, %v4126
      %v4128 = vpop.f32.mrf.mxu0
      %4129 = vmatprep.mubr.f32.mxu0 0.0
      %4130 = vmatmul.mubr.f32.gmra.mxu0 %v3924
      %v4131 = vpop.f32.mrf.mxu0
      %v4132 = vadd.f32 0.0, %v4131
      %v4133 = vpop.f32.mrf.mxu0
      %4134 = vmatprep.mubr.f32.mxu0 0.0
      %4135 = vmatmul.mubr.f32.gmra.mxu0 %v3927
      %v4136 = vpop.f32.mrf.mxu0
      %v4137 = vadd.f32 0.0, %v4136
      %v4138 = vpop.f32.mrf.mxu0
      %4139 = vmatprep.mubr.f32.mxu0 0.0
      %4140 = vmatmul.mubr.f32.gmra.mxu0 %v3930
      %v4141 = vpop.f32.mrf.mxu0
      %v4142 = vadd.f32 0.0, %v4141
      %v4143 = vpop.f32.mrf.mxu0
      %4144 = vmatprep.mubr.f32.mxu0 0.0
      %4145 = vmatmul.mubr.f32.gmra.mxu0 %v3933
      %v4146 = vpop.f32.mrf.mxu0
      %v4147 = vadd.f32 0.0, %v4146
      %v4148 = vpop.f32.mrf.mxu0
      %4149 = vmatprep.mubr.f32.mxu0 0.0
      %4150 = vmatmul.mubr.f32.gmra.mxu0 %v3936
      %v4151 = vpop.f32.mrf.mxu0
      %v4152 = vadd.f32 0.0, %v4151
      %v4153 = vpop.f32.mrf.mxu0
      %4154 = vmatprep.mubr.f32.mxu0 0.0
      %4155 = vmatmul.mubr.f32.gmra.mxu0 %v3939
      %v4156 = vpop.f32.mrf.mxu0
      %v4157 = vadd.f32 0.0, %v4156
      %v4158 = vpop.f32.mrf.mxu0
      %4159 = vmatprep.mubr.f32.mxu0 0.0
      %4160 = vmatmul.mubr.f32.gmra.mxu0 %v3942
      %v4161 = vpop.f32.mrf.mxu0
      %v4162 = vadd.f32 0.0, %v4161
      %v4163 = vpop.f32.mrf.mxu0
      %4164 = vmatprep.mubr.f32.mxu0 0.0
      %4165 = vmatmul.mubr.f32.gmra.mxu0 %v3945
      %v4166 = vpop.f32.mrf.mxu0
      %v4167 = vadd.f32 0.0, %v4166
      %v4168 = vpop.f32.mrf.mxu0
      %4169 = vmatprep.mubr.f32.mxu0 0.0
      %4170 = vmatmul.mubr.f32.gmra.mxu0 %v3948
      %v4171 = vpop.f32.mrf.mxu0
      %v4172 = vadd.f32 0.0, %v4171
      %v4173 = vpop.f32.mrf.mxu0
      %4174 = vdwg.mxu0
      %v4175 = vadd.f32 %v3787, %v4017
      %v4176 = vadd.f32 %v3788, %v4022
      %v4177 = vadd.f32 %v3789, %v4027
      %v4178 = vadd.f32 %v3790, %v4032
      %v4179 = vadd.f32 %v3791, %v4037
      %v4180 = vadd.f32 %v3792, %v4042
      %v4181 = vadd.f32 %v3793, %v4047
      %v4182 = vadd.f32 %v3794, %v4052
      %v4183 = vadd.f32 %v3795, %v4057
      %v4184 = vadd.f32 %v3796, %v4062
      %v4185 = vadd.f32 %v3797, %v4067
      %v4186 = vadd.f32 %v3798, %v4072
      %v4187 = vadd.f32 %v3799, %v4077
      %v4188 = vadd.f32 %v3800, %v4082
      %v4189 = vadd.f32 %v3801, %v4087
      %v4190 = vadd.f32 %v3802, %v4092
      %v4191 = vadd.f32 %v3803, %v4097
      %v4192 = vadd.f32 %v3804, %v4102
      %v4193 = vadd.f32 %v3805, %v4107
      %v4194 = vadd.f32 %v3806, %v4112
      %v4195 = vadd.f32 %v3807, %v4117
      %v4196 = vadd.f32 %v3808, %v4122
      %v4197 = vadd.f32 %v3809, %v4127
      %v4198 = vadd.f32 %v3810, %v4132
      %v4199 = vadd.f32 %v3811, %v4137
      %v4200 = vadd.f32 %v3812, %v4142
      %v4201 = vadd.f32 %v3813, %v4147
      %v4202 = vadd.f32 %v3814, %v4152
      %v4203 = vadd.f32 %v3815, %v4157
      %v4204 = vadd.f32 %v3816, %v4162
      %v4205 = vadd.f32 %v3817, %v4167
      %v4206 = vadd.f32 %v3818, %v4172
      %v4207 = vld [vmem:[%s6] sm:$0x1]
      %v4209 = vlaneseq
      %v4210 = vshrl.u32 %v4209, 7
      %v4211 = vsub.s32 0, %v4210
      %v4212 = vrot.slane %v4207, %v4211
      %v4214 = vadd.f32 %v4175, %v4212
      %v4215 = vadd.f32 %v4176, %v4212
      %v4216 = vadd.f32 %v4177, %v4212
      %v4217 = vadd.f32 %v4178, %v4212
      %v4218 = vadd.f32 %v4179, %v4212
      %v4219 = vadd.f32 %v4180, %v4212
      %v4220 = vadd.f32 %v4181, %v4212
      %v4221 = vadd.f32 %v4182, %v4212
      %v4222 = vadd.f32 %v4183, %v4212
      %v4223 = vadd.f32 %v4184, %v4212
      %v4224 = vadd.f32 %v4185, %v4212
      %v4225 = vadd.f32 %v4186, %v4212
      %v4226 = vadd.f32 %v4187, %v4212
      %v4227 = vadd.f32 %v4188, %v4212
      %v4228 = vadd.f32 %v4189, %v4212
      %v4229 = vadd.f32 %v4190, %v4212
      %v4230 = vadd.f32 %v4191, %v4212
      %v4231 = vadd.f32 %v4192, %v4212
      %v4232 = vadd.f32 %v4193, %v4212
      %v4233 = vadd.f32 %v4194, %v4212
      %v4234 = vadd.f32 %v4195, %v4212
      %v4235 = vadd.f32 %v4196, %v4212
      %v4236 = vadd.f32 %v4197, %v4212
      %v4237 = vadd.f32 %v4198, %v4212
      %v4238 = vadd.f32 %v4199, %v4212
      %v4239 = vadd.f32 %v4200, %v4212
      %v4240 = vadd.f32 %v4201, %v4212
      %v4241 = vadd.f32 %v4202, %v4212
      %v4242 = vadd.f32 %v4203, %v4212
      %v4243 = vadd.f32 %v4204, %v4212
      %v4244 = vadd.f32 %v4205, %v4212
      %v4245 = vadd.f32 %v4206, %v4212
      %v4246 = vmax.f32 %v4214, 0.0
      %v4247 = vmax.f32 %v4215, 0.0
      %v4248 = vmax.f32 %v4216, 0.0
      %v4249 = vmax.f32 %v4217, 0.0
      %v4250 = vmax.f32 %v4218, 0.0
      %v4251 = vmax.f32 %v4219, 0.0
      %v4252 = vmax.f32 %v4220, 0.0
      %v4253 = vmax.f32 %v4221, 0.0
      %v4254 = vmax.f32 %v4222, 0.0
      %v4255 = vmax.f32 %v4223, 0.0
      %v4256 = vmax.f32 %v4224, 0.0
      %v4257 = vmax.f32 %v4225, 0.0
      %v4258 = vmax.f32 %v4226, 0.0
      %v4259 = vmax.f32 %v4227, 0.0
      %v4260 = vmax.f32 %v4228, 0.0
      %v4261 = vmax.f32 %v4229, 0.0
      %v4262 = vmax.f32 %v4230, 0.0
      %v4263 = vmax.f32 %v4231, 0.0
      %v4264 = vmax.f32 %v4232, 0.0
      %v4265 = vmax.f32 %v4233, 0.0
      %v4266 = vmax.f32 %v4234, 0.0
      %v4267 = vmax.f32 %v4235, 0.0
      %v4268 = vmax.f32 %v4236, 0.0
      %v4269 = vmax.f32 %v4237, 0.0
      %v4270 = vmax.f32 %v4238, 0.0
      %v4271 = vmax.f32 %v4239, 0.0
      %v4272 = vmax.f32 %v4240, 0.0
      %v4273 = vmax.f32 %v4241, 0.0
      %v4274 = vmax.f32 %v4242, 0.0
      %v4275 = vmax.f32 %v4243, 0.0
      %v4276 = vmax.f32 %v4244, 0.0
      %v4277 = vmax.f32 %v4245, 0.0
      %v4278 = vld [vmem:[%s3] sm:$0xff]
      %v4279 = vld [vmem:[%s3 + $0x8] sm:$0xff]
      %v4280 = vld [vmem:[%s7] sm:$0x1]
      %v4282 = vlaneseq
      %v4283 = vshrl.u32 %v4282, 7
      %v4284 = vsub.s32 0, %v4283
      %v4285 = vrot.slane %v4280, %v4284
      %v4288 = vsel %vm704, %v4246, 0
      %v4291 = vsel %vm704, %v4247, 0
      %v4294 = vsel %vm704, %v4248, 0
      %v4297 = vsel %vm704, %v4249, 0
      %v4300 = vsel %vm704, %v4250, 0
      %v4303 = vsel %vm704, %v4251, 0
      %v4306 = vsel %vm704, %v4252, 0
      %v4309 = vsel %vm704, %v4253, 0
      %v4312 = vsel %vm704, %v4254, 0
      %v4315 = vsel %vm704, %v4255, 0
      %v4318 = vsel %vm704, %v4256, 0
      %v4321 = vsel %vm704, %v4257, 0
      %v4324 = vsel %vm704, %v4258, 0
      %v4327 = vsel %vm704, %v4259, 0
      %v4330 = vsel %vm704, %v4260, 0
      %v4333 = vsel %vm704, %v4261, 0
      %v4336 = vsel %vm704, %v4262, 0
      %v4339 = vsel %vm704, %v4263, 0
      %v4342 = vsel %vm704, %v4264, 0
      %v4345 = vsel %vm704, %v4265, 0
      %v4348 = vsel %vm704, %v4266, 0
      %v4351 = vsel %vm704, %v4267, 0
      %v4354 = vsel %vm704, %v4268, 0
      %v4357 = vsel %vm704, %v4269, 0
      %v4360 = vsel %vm704, %v4270, 0
      %v4363 = vsel %vm704, %v4271, 0
      %v4366 = vsel %vm704, %v4272, 0
      %v4369 = vsel %vm704, %v4273, 0
      %v4372 = vsel %vm704, %v4274, 0
      %v4375 = vsel %vm704, %v4275, 0
      %v4378 = vsel %vm704, %v4276, 0
      %v4381 = vsel %vm704, %v4277, 0
      %4383 = vmatprep.subr.mxu0 0.0
      %4384 = vmatpush1.msra.mxu0 0.0
      %4385 = vmatprep.subr.mxu0 0.0
      %4386 = vmatpush1.msra.mxu0 0.0
      %4387 = vmatprep.subr.mxu0 0.0
      %4388 = vmatpush1.msra.mxu0 0.0
      %4389 = vmatprep.subr.mxu0 0.0
      %4390 = vmatpush1.msra.mxu0 0.0
      %4391 = vmatprep.subr.mxu0 0.0
      %4392 = vmatpush1.msra.mxu0 0.0
      %4393 = vmatprep.subr.mxu0 0.0
      %4394 = vmatpush1.msra.mxu0 0.0
      %4395 = vmatprep.subr.mxu0 0.0
      %4396 = vmatpush1.msra.mxu0 0.0
      %4397 = vmatprep.subr.mxu0 0.0
      %4398 = vmatpush1.msra.mxu0 0.0
      %4399 = vmatprep.subr.mxu0 0.0
      %4400 = vmatpush1.msra.mxu0 0.0
      %4401 = vmatprep.subr.mxu0 0.0
      %4402 = vmatpush1.msra.mxu0 0.0
      %4403 = vmatprep.subr.mxu0 0.0
      %4404 = vmatpush1.msra.mxu0 0.0
      %4405 = vmatprep.subr.mxu0 0.0
      %4406 = vmatpush1.msra.mxu0 0.0
      %4407 = vmatprep.subr.mxu0 0.0
      %4408 = vmatpush1.msra.mxu0 0.0
      %4409 = vmatprep.subr.mxu0 0.0
      %4410 = vmatpush1.msra.mxu0 0.0
      %4411 = vmatprep.subr.mxu0 0.0
      %4412 = vmatpush1.msra.mxu0 %v4279
      %4413 = vmatprep.subr.mxu0 0.0
      %4414 = vmatpush1.msra.mxu0 %v4278
      %4415 = vmatprep.subr.mxu0 0.0
      %4416 = vmatpush2.msra.mxu0 0.0
      %4417 = vmatprep.subr.mxu0 0.0
      %4418 = vmatpush2.msra.mxu0 0.0
      %4419 = vmatprep.subr.mxu0 0.0
      %4420 = vmatpush2.msra.mxu0 0.0
      %4421 = vmatprep.subr.mxu0 0.0
      %4422 = vmatpush2.msra.mxu0 0.0
      %4423 = vmatprep.subr.mxu0 0.0
      %4424 = vmatpush2.msra.mxu0 0.0
      %4425 = vmatprep.subr.mxu0 0.0
      %4426 = vmatpush2.msra.mxu0 0.0
      %4427 = vmatprep.subr.mxu0 0.0
      %4428 = vmatpush2.msra.mxu0 0.0
      %4429 = vmatprep.subr.mxu0 0.0
      %4430 = vmatpush2.msra.mxu0 0.0
      %4431 = vmatprep.subr.mxu0 0.0
      %4432 = vmatpush2.msra.mxu0 0.0
      %4433 = vmatprep.subr.mxu0 0.0
      %4434 = vmatpush2.msra.mxu0 0.0
      %4435 = vmatprep.subr.mxu0 0.0
      %4436 = vmatpush2.msra.mxu0 0.0
      %4437 = vmatprep.subr.mxu0 0.0
      %4438 = vmatpush2.msra.mxu0 0.0
      %4439 = vmatprep.subr.mxu0 0.0
      %4440 = vmatpush2.msra.mxu0 0.0
      %4441 = vmatprep.subr.mxu0 0.0
      %4442 = vmatpush2.msra.mxu0 0.0
      %4443 = vmatprep.subr.mxu0 0.0
      %4444 = vmatpush2.msra.mxu0 0.0
      %4445 = vmatprep.subr.mxu0 0.0
      %4446 = vmatpush2.msra.mxu0 0.0
      %4447 = vmatprep.mubr.f32.mxu0 0.0
      %4448 = vmatmul.mubr.f32.gmra.mxu0 %v4288
      %v4449 = vpop.f32.mrf.mxu0
      %v4450 = vadd.f32 %v4285, %v4449
      %v4451 = vpop.f32.mrf.mxu0
      %4452 = vmatprep.mubr.f32.mxu0 0.0
      %4453 = vmatmul.mubr.f32.gmra.mxu0 %v4291
      %v4454 = vpop.f32.mrf.mxu0
      %v4455 = vadd.f32 %v4285, %v4454
      %v4456 = vpop.f32.mrf.mxu0
      %4457 = vmatprep.mubr.f32.mxu0 0.0
      %4458 = vmatmul.mubr.f32.gmra.mxu0 %v4294
      %v4459 = vpop.f32.mrf.mxu0
      %v4460 = vadd.f32 %v4285, %v4459
      %v4461 = vpop.f32.mrf.mxu0
      %4462 = vmatprep.mubr.f32.mxu0 0.0
      %4463 = vmatmul.mubr.f32.gmra.mxu0 %v4297
      %v4464 = vpop.f32.mrf.mxu0
      %v4465 = vadd.f32 %v4285, %v4464
      %v4466 = vpop.f32.mrf.mxu0
      %4467 = vmatprep.mubr.f32.mxu0 0.0
      %4468 = vmatmul.mubr.f32.gmra.mxu0 %v4300
      %v4469 = vpop.f32.mrf.mxu0
      %v4470 = vadd.f32 %v4285, %v4469
      %v4471 = vpop.f32.mrf.mxu0
      %4472 = vmatprep.mubr.f32.mxu0 0.0
      %4473 = vmatmul.mubr.f32.gmra.mxu0 %v4303
      %v4474 = vpop.f32.mrf.mxu0
      %v4475 = vadd.f32 %v4285, %v4474
      %v4476 = vpop.f32.mrf.mxu0
      %4477 = vmatprep.mubr.f32.mxu0 0.0
      %4478 = vmatmul.mubr.f32.gmra.mxu0 %v4306
      %v4479 = vpop.f32.mrf.mxu0
      %v4480 = vadd.f32 %v4285, %v4479
      %v4481 = vpop.f32.mrf.mxu0
      %4482 = vmatprep.mubr.f32.mxu0 0.0
      %4483 = vmatmul.mubr.f32.gmra.mxu0 %v4309
      %v4484 = vpop.f32.mrf.mxu0
      %v4485 = vadd.f32 %v4285, %v4484
      %v4486 = vpop.f32.mrf.mxu0
      %4487 = vmatprep.mubr.f32.mxu0 0.0
      %4488 = vmatmul.mubr.f32.gmra.mxu0 %v4312
      %v4489 = vpop.f32.mrf.mxu0
      %v4490 = vadd.f32 %v4285, %v4489
      %v4491 = vpop.f32.mrf.mxu0
      %4492 = vmatprep.mubr.f32.mxu0 0.0
      %4493 = vmatmul.mubr.f32.gmra.mxu0 %v4315
      %v4494 = vpop.f32.mrf.mxu0
      %v4495 = vadd.f32 %v4285, %v4494
      %v4496 = vpop.f32.mrf.mxu0
      %4497 = vmatprep.mubr.f32.mxu0 0.0
      %4498 = vmatmul.mubr.f32.gmra.mxu0 %v4318
      %v4499 = vpop.f32.mrf.mxu0
      %v4500 = vadd.f32 %v4285, %v4499
      %v4501 = vpop.f32.mrf.mxu0
      %4502 = vmatprep.mubr.f32.mxu0 0.0
      %4503 = vmatmul.mubr.f32.gmra.mxu0 %v4321
      %v4504 = vpop.f32.mrf.mxu0
      %v4505 = vadd.f32 %v4285, %v4504
      %v4506 = vpop.f32.mrf.mxu0
      %4507 = vmatprep.mubr.f32.mxu0 0.0
      %4508 = vmatmul.mubr.f32.gmra.mxu0 %v4324
      %v4509 = vpop.f32.mrf.mxu0
      %v4510 = vadd.f32 %v4285, %v4509
      %v4511 = vpop.f32.mrf.mxu0
      %4512 = vmatprep.mubr.f32.mxu0 0.0
      %4513 = vmatmul.mubr.f32.gmra.mxu0 %v4327
      %v4514 = vpop.f32.mrf.mxu0
      %v4515 = vadd.f32 %v4285, %v4514
      %v4516 = vpop.f32.mrf.mxu0
      %4517 = vmatprep.mubr.f32.mxu0 0.0
      %4518 = vmatmul.mubr.f32.gmra.mxu0 %v4330
      %v4519 = vpop.f32.mrf.mxu0
      %v4520 = vadd.f32 %v4285, %v4519
      %v4521 = vpop.f32.mrf.mxu0
      %4522 = vmatprep.mubr.f32.mxu0 0.0
      %4523 = vmatmul.mubr.f32.gmra.mxu0 %v4333
      %v4524 = vpop.f32.mrf.mxu0
      %v4525 = vadd.f32 %v4285, %v4524
      %v4526 = vpop.f32.mrf.mxu0
      %4527 = vmatprep.mubr.f32.mxu0 0.0
      %4528 = vmatmul.mubr.f32.gmra.mxu0 %v4336
      %v4529 = vpop.f32.mrf.mxu0
      %v4530 = vadd.f32 %v4285, %v4529
      %v4531 = vpop.f32.mrf.mxu0
      %4532 = vmatprep.mubr.f32.mxu0 0.0
      %4533 = vmatmul.mubr.f32.gmra.mxu0 %v4339
      %v4534 = vpop.f32.mrf.mxu0
      %v4535 = vadd.f32 %v4285, %v4534
      %v4536 = vpop.f32.mrf.mxu0
      %4537 = vmatprep.mubr.f32.mxu0 0.0
      %4538 = vmatmul.mubr.f32.gmra.mxu0 %v4342
      %v4539 = vpop.f32.mrf.mxu0
      %v4540 = vadd.f32 %v4285, %v4539
      %v4541 = vpop.f32.mrf.mxu0
      %4542 = vmatprep.mubr.f32.mxu0 0.0
      %4543 = vmatmul.mubr.f32.gmra.mxu0 %v4345
      %v4544 = vpop.f32.mrf.mxu0
      %v4545 = vadd.f32 %v4285, %v4544
      %v4546 = vpop.f32.mrf.mxu0
      %4547 = vmatprep.mubr.f32.mxu0 0.0
      %4548 = vmatmul.mubr.f32.gmra.mxu0 %v4348
      %v4549 = vpop.f32.mrf.mxu0
      %v4550 = vadd.f32 %v4285, %v4549
      %v4551 = vpop.f32.mrf.mxu0
      %4552 = vmatprep.mubr.f32.mxu0 0.0
      %4553 = vmatmul.mubr.f32.gmra.mxu0 %v4351
      %v4554 = vpop.f32.mrf.mxu0
      %v4555 = vadd.f32 %v4285, %v4554
      %v4556 = vpop.f32.mrf.mxu0
      %4557 = vmatprep.mubr.f32.mxu0 0.0
      %4558 = vmatmul.mubr.f32.gmra.mxu0 %v4354
      %v4559 = vpop.f32.mrf.mxu0
      %v4560 = vadd.f32 %v4285, %v4559
      %v4561 = vpop.f32.mrf.mxu0
      %4562 = vmatprep.mubr.f32.mxu0 0.0
      %4563 = vmatmul.mubr.f32.gmra.mxu0 %v4357
      %v4564 = vpop.f32.mrf.mxu0
      %v4565 = vadd.f32 %v4285, %v4564
      %v4566 = vpop.f32.mrf.mxu0
      %4567 = vmatprep.mubr.f32.mxu0 0.0
      %4568 = vmatmul.mubr.f32.gmra.mxu0 %v4360
      %v4569 = vpop.f32.mrf.mxu0
      %v4570 = vadd.f32 %v4285, %v4569
      %v4571 = vpop.f32.mrf.mxu0
      %4572 = vmatprep.mubr.f32.mxu0 0.0
      %4573 = vmatmul.mubr.f32.gmra.mxu0 %v4363
      %v4574 = vpop.f32.mrf.mxu0
      %v4575 = vadd.f32 %v4285, %v4574
      %v4576 = vpop.f32.mrf.mxu0
      %4577 = vmatprep.mubr.f32.mxu0 0.0
      %4578 = vmatmul.mubr.f32.gmra.mxu0 %v4366
      %v4579 = vpop.f32.mrf.mxu0
      %v4580 = vadd.f32 %v4285, %v4579
      %v4581 = vpop.f32.mrf.mxu0
      %4582 = vmatprep.mubr.f32.mxu0 0.0
      %4583 = vmatmul.mubr.f32.gmra.mxu0 %v4369
      %v4584 = vpop.f32.mrf.mxu0
      %v4585 = vadd.f32 %v4285, %v4584
      %v4586 = vpop.f32.mrf.mxu0
      %4587 = vmatprep.mubr.f32.mxu0 0.0
      %4588 = vmatmul.mubr.f32.gmra.mxu0 %v4372
      %v4589 = vpop.f32.mrf.mxu0
      %v4590 = vadd.f32 %v4285, %v4589
      %v4591 = vpop.f32.mrf.mxu0
      %4592 = vmatprep.mubr.f32.mxu0 0.0
      %4593 = vmatmul.mubr.f32.gmra.mxu0 %v4375
      %v4594 = vpop.f32.mrf.mxu0
      %v4595 = vadd.f32 %v4285, %v4594
      %v4596 = vpop.f32.mrf.mxu0
      %4597 = vmatprep.mubr.f32.mxu0 0.0
      %4598 = vmatmul.mubr.f32.gmra.mxu0 %v4378
      %v4599 = vpop.f32.mrf.mxu0
      %v4600 = vadd.f32 %v4285, %v4599
      %v4601 = vpop.f32.mrf.mxu0
      %4602 = vmatprep.mubr.f32.mxu0 0.0
      %4603 = vmatmul.mubr.f32.gmra.mxu0 %v4381
      %v4604 = vpop.f32.mrf.mxu0
      %v4605 = vadd.f32 %v4285, %v4604
      %v4606 = vpop.f32.mrf.mxu0
      %4607 = vdwg.mxu0
      %v4608 = vld [vmem:[%s4] sm:$0xf]
      %v4610 = vsel %vm443, %v4608, 0
      %4612 = vmatprep.subr.mxu0 0.0
      %4613 = vmatpush1.msra.mxu0 0.0
      %4614 = vmatprep.subr.mxu0 0.0
      %4615 = vmatpush1.msra.mxu0 0.0
      %4616 = vmatprep.subr.mxu0 0.0
      %4617 = vmatpush1.msra.mxu0 0.0
      %4618 = vmatprep.subr.mxu0 0.0
      %4619 = vmatpush1.msra.mxu0 0.0
      %4620 = vmatprep.subr.mxu0 0.0
      %4621 = vmatpush1.msra.mxu0 0.0
      %4622 = vmatprep.subr.mxu0 0.0
      %4623 = vmatpush1.msra.mxu0 0.0
      %4624 = vmatprep.subr.mxu0 0.0
      %4625 = vmatpush1.msra.mxu0 0.0
      %4626 = vmatprep.subr.mxu0 0.0
      %4627 = vmatpush1.msra.mxu0 0.0
      %4628 = vmatprep.subr.mxu0 0.0
      %4629 = vmatpush1.msra.mxu0 0.0
      %4630 = vmatprep.subr.mxu0 0.0
      %4631 = vmatpush1.msra.mxu0 0.0
      %4632 = vmatprep.subr.mxu0 0.0
      %4633 = vmatpush1.msra.mxu0 0.0
      %4634 = vmatprep.subr.mxu0 0.0
      %4635 = vmatpush1.msra.mxu0 0.0
      %4636 = vmatprep.subr.mxu0 0.0
      %4637 = vmatpush1.msra.mxu0 0.0
      %4638 = vmatprep.subr.mxu0 0.0
      %4639 = vmatpush1.msra.mxu0 0.0
      %4640 = vmatprep.subr.mxu0 0.0
      %4641 = vmatpush1.msra.mxu0 0.0
      %4642 = vmatprep.subr.mxu0 0.0
      %4643 = vmatpush1.msra.mxu0 %v4610
      %4644 = vmatprep.subr.mxu0 0.0
      %4645 = vmatpush2.msra.mxu0 0.0
      %4646 = vmatprep.subr.mxu0 0.0
      %4647 = vmatpush2.msra.mxu0 0.0
      %4648 = vmatprep.subr.mxu0 0.0
      %4649 = vmatpush2.msra.mxu0 0.0
      %4650 = vmatprep.subr.mxu0 0.0
      %4651 = vmatpush2.msra.mxu0 0.0
      %4652 = vmatprep.subr.mxu0 0.0
      %4653 = vmatpush2.msra.mxu0 0.0
      %4654 = vmatprep.subr.mxu0 0.0
      %4655 = vmatpush2.msra.mxu0 0.0
      %4656 = vmatprep.subr.mxu0 0.0
      %4657 = vmatpush2.msra.mxu0 0.0
      %4658 = vmatprep.subr.mxu0 0.0
      %4659 = vmatpush2.msra.mxu0 0.0
      %4660 = vmatprep.subr.mxu0 0.0
      %4661 = vmatpush2.msra.mxu0 0.0
      %4662 = vmatprep.subr.mxu0 0.0
      %4663 = vmatpush2.msra.mxu0 0.0
      %4664 = vmatprep.subr.mxu0 0.0
      %4665 = vmatpush2.msra.mxu0 0.0
      %4666 = vmatprep.subr.mxu0 0.0
      %4667 = vmatpush2.msra.mxu0 0.0
      %4668 = vmatprep.subr.mxu0 0.0
      %4669 = vmatpush2.msra.mxu0 0.0
      %4670 = vmatprep.subr.mxu0 0.0
      %4671 = vmatpush2.msra.mxu0 0.0
      %4672 = vmatprep.subr.mxu0 0.0
      %4673 = vmatpush2.msra.mxu0 0.0
      %4674 = vmatprep.subr.mxu0 0.0
      %4675 = vmatpush2.msra.mxu0 0.0
      %4676 = vmatprep.mubr.f32.mxu0 0.0
      %4677 = vmatmul.mubr.f32.gmra.mxu0 %v348
      %v4678 = vpop.f32.mrf.mxu0
      %v4679 = vadd.f32 0.0, %v4678
      %v4680 = vpop.f32.mrf.mxu0
      %4681 = vmatprep.mubr.f32.mxu0 0.0
      %4682 = vmatmul.mubr.f32.gmra.mxu0 %v351
      %v4683 = vpop.f32.mrf.mxu0
      %v4684 = vadd.f32 0.0, %v4683
      %v4685 = vpop.f32.mrf.mxu0
      %4686 = vmatprep.mubr.f32.mxu0 0.0
      %4687 = vmatmul.mubr.f32.gmra.mxu0 %v354
      %v4688 = vpop.f32.mrf.mxu0
      %v4689 = vadd.f32 0.0, %v4688
      %v4690 = vpop.f32.mrf.mxu0
      %4691 = vmatprep.mubr.f32.mxu0 0.0
      %4692 = vmatmul.mubr.f32.gmra.mxu0 %v357
      %v4693 = vpop.f32.mrf.mxu0
      %v4694 = vadd.f32 0.0, %v4693
      %v4695 = vpop.f32.mrf.mxu0
      %4696 = vmatprep.mubr.f32.mxu0 0.0
      %4697 = vmatmul.mubr.f32.gmra.mxu0 %v360
      %v4698 = vpop.f32.mrf.mxu0
      %v4699 = vadd.f32 0.0, %v4698
      %v4700 = vpop.f32.mrf.mxu0
      %4701 = vmatprep.mubr.f32.mxu0 0.0
      %4702 = vmatmul.mubr.f32.gmra.mxu0 %v363
      %v4703 = vpop.f32.mrf.mxu0
      %v4704 = vadd.f32 0.0, %v4703
      %v4705 = vpop.f32.mrf.mxu0
      %4706 = vmatprep.mubr.f32.mxu0 0.0
      %4707 = vmatmul.mubr.f32.gmra.mxu0 %v366
      %v4708 = vpop.f32.mrf.mxu0
      %v4709 = vadd.f32 0.0, %v4708
      %v4710 = vpop.f32.mrf.mxu0
      %4711 = vmatprep.mubr.f32.mxu0 0.0
      %4712 = vmatmul.mubr.f32.gmra.mxu0 %v369
      %v4713 = vpop.f32.mrf.mxu0
      %v4714 = vadd.f32 0.0, %v4713
      %v4715 = vpop.f32.mrf.mxu0
      %4716 = vmatprep.mubr.f32.mxu0 0.0
      %4717 = vmatmul.mubr.f32.gmra.mxu0 %v372
      %v4718 = vpop.f32.mrf.mxu0
      %v4719 = vadd.f32 0.0, %v4718
      %v4720 = vpop.f32.mrf.mxu0
      %4721 = vmatprep.mubr.f32.mxu0 0.0
      %4722 = vmatmul.mubr.f32.gmra.mxu0 %v375
      %v4723 = vpop.f32.mrf.mxu0
      %v4724 = vadd.f32 0.0, %v4723
      %v4725 = vpop.f32.mrf.mxu0
      %4726 = vmatprep.mubr.f32.mxu0 0.0
      %4727 = vmatmul.mubr.f32.gmra.mxu0 %v378
      %v4728 = vpop.f32.mrf.mxu0
      %v4729 = vadd.f32 0.0, %v4728
      %v4730 = vpop.f32.mrf.mxu0
      %4731 = vmatprep.mubr.f32.mxu0 0.0
      %4732 = vmatmul.mubr.f32.gmra.mxu0 %v381
      %v4733 = vpop.f32.mrf.mxu0
      %v4734 = vadd.f32 0.0, %v4733
      %v4735 = vpop.f32.mrf.mxu0
      %4736 = vmatprep.mubr.f32.mxu0 0.0
      %4737 = vmatmul.mubr.f32.gmra.mxu0 %v384
      %v4738 = vpop.f32.mrf.mxu0
      %v4739 = vadd.f32 0.0, %v4738
      %v4740 = vpop.f32.mrf.mxu0
      %4741 = vmatprep.mubr.f32.mxu0 0.0
      %4742 = vmatmul.mubr.f32.gmra.mxu0 %v387
      %v4743 = vpop.f32.mrf.mxu0
      %v4744 = vadd.f32 0.0, %v4743
      %v4745 = vpop.f32.mrf.mxu0
      %4746 = vmatprep.mubr.f32.mxu0 0.0
      %4747 = vmatmul.mubr.f32.gmra.mxu0 %v390
      %v4748 = vpop.f32.mrf.mxu0
      %v4749 = vadd.f32 0.0, %v4748
      %v4750 = vpop.f32.mrf.mxu0
      %4751 = vmatprep.mubr.f32.mxu0 0.0
      %4752 = vmatmul.mubr.f32.gmra.mxu0 %v393
      %v4753 = vpop.f32.mrf.mxu0
      %v4754 = vadd.f32 0.0, %v4753
      %v4755 = vpop.f32.mrf.mxu0
      %4756 = vmatprep.mubr.f32.mxu0 0.0
      %4757 = vmatmul.mubr.f32.gmra.mxu0 %v396
      %v4758 = vpop.f32.mrf.mxu0
      %v4759 = vadd.f32 0.0, %v4758
      %v4760 = vpop.f32.mrf.mxu0
      %4761 = vmatprep.mubr.f32.mxu0 0.0
      %4762 = vmatmul.mubr.f32.gmra.mxu0 %v399
      %v4763 = vpop.f32.mrf.mxu0
      %v4764 = vadd.f32 0.0, %v4763
      %v4765 = vpop.f32.mrf.mxu0
      %4766 = vmatprep.mubr.f32.mxu0 0.0
      %4767 = vmatmul.mubr.f32.gmra.mxu0 %v402
      %v4768 = vpop.f32.mrf.mxu0
      %v4769 = vadd.f32 0.0, %v4768
      %v4770 = vpop.f32.mrf.mxu0
      %4771 = vmatprep.mubr.f32.mxu0 0.0
      %4772 = vmatmul.mubr.f32.gmra.mxu0 %v405
      %v4773 = vpop.f32.mrf.mxu0
      %v4774 = vadd.f32 0.0, %v4773
      %v4775 = vpop.f32.mrf.mxu0
      %4776 = vmatprep.mubr.f32.mxu0 0.0
      %4777 = vmatmul.mubr.f32.gmra.mxu0 %v408
      %v4778 = vpop.f32.mrf.mxu0
      %v4779 = vadd.f32 0.0, %v4778
      %v4780 = vpop.f32.mrf.mxu0
      %4781 = vmatprep.mubr.f32.mxu0 0.0
      %4782 = vmatmul.mubr.f32.gmra.mxu0 %v411
      %v4783 = vpop.f32.mrf.mxu0
      %v4784 = vadd.f32 0.0, %v4783
      %v4785 = vpop.f32.mrf.mxu0
      %4786 = vmatprep.mubr.f32.mxu0 0.0
      %4787 = vmatmul.mubr.f32.gmra.mxu0 %v414
      %v4788 = vpop.f32.mrf.mxu0
      %v4789 = vadd.f32 0.0, %v4788
      %v4790 = vpop.f32.mrf.mxu0
      %4791 = vmatprep.mubr.f32.mxu0 0.0
      %4792 = vmatmul.mubr.f32.gmra.mxu0 %v417
      %v4793 = vpop.f32.mrf.mxu0
      %v4794 = vadd.f32 0.0, %v4793
      %v4795 = vpop.f32.mrf.mxu0
      %4796 = vmatprep.mubr.f32.mxu0 0.0
      %4797 = vmatmul.mubr.f32.gmra.mxu0 %v420
      %v4798 = vpop.f32.mrf.mxu0
      %v4799 = vadd.f32 0.0, %v4798
      %v4800 = vpop.f32.mrf.mxu0
      %4801 = vmatprep.mubr.f32.mxu0 0.0
      %4802 = vmatmul.mubr.f32.gmra.mxu0 %v423
      %v4803 = vpop.f32.mrf.mxu0
      %v4804 = vadd.f32 0.0, %v4803
      %v4805 = vpop.f32.mrf.mxu0
      %4806 = vmatprep.mubr.f32.mxu0 0.0
      %4807 = vmatmul.mubr.f32.gmra.mxu0 %v426
      %v4808 = vpop.f32.mrf.mxu0
      %v4809 = vadd.f32 0.0, %v4808
      %v4810 = vpop.f32.mrf.mxu0
      %4811 = vmatprep.mubr.f32.mxu0 0.0
      %4812 = vmatmul.mubr.f32.gmra.mxu0 %v429
      %v4813 = vpop.f32.mrf.mxu0
      %v4814 = vadd.f32 0.0, %v4813
      %v4815 = vpop.f32.mrf.mxu0
      %4816 = vmatprep.mubr.f32.mxu0 0.0
      %4817 = vmatmul.mubr.f32.gmra.mxu0 %v432
      %v4818 = vpop.f32.mrf.mxu0
      %v4819 = vadd.f32 0.0, %v4818
      %v4820 = vpop.f32.mrf.mxu0
      %4821 = vmatprep.mubr.f32.mxu0 0.0
      %4822 = vmatmul.mubr.f32.gmra.mxu0 %v435
      %v4823 = vpop.f32.mrf.mxu0
      %v4824 = vadd.f32 0.0, %v4823
      %v4825 = vpop.f32.mrf.mxu0
      %4826 = vmatprep.mubr.f32.mxu0 0.0
      %4827 = vmatmul.mubr.f32.gmra.mxu0 %v438
      %v4828 = vpop.f32.mrf.mxu0
      %v4829 = vadd.f32 0.0, %v4828
      %v4830 = vpop.f32.mrf.mxu0
      %4831 = vmatprep.mubr.f32.mxu0 0.0
      %4832 = vmatmul.mubr.f32.gmra.mxu0 %v441
      %v4833 = vpop.f32.mrf.mxu0
      %v4834 = vadd.f32 0.0, %v4833
      %v4835 = vpop.f32.mrf.mxu0
      %4836 = vdwg.mxu0
      %v4837 = vadd.f32 %v4450, %v4679
      %v4838 = vadd.f32 %v4455, %v4684
      %v4839 = vadd.f32 %v4460, %v4689
      %v4840 = vadd.f32 %v4465, %v4694
      %v4841 = vadd.f32 %v4470, %v4699
      %v4842 = vadd.f32 %v4475, %v4704
      %v4843 = vadd.f32 %v4480, %v4709
      %v4844 = vadd.f32 %v4485, %v4714
      %v4845 = vadd.f32 %v4490, %v4719
      %v4846 = vadd.f32 %v4495, %v4724
      %v4847 = vadd.f32 %v4500, %v4729
      %v4848 = vadd.f32 %v4505, %v4734
      %v4849 = vadd.f32 %v4510, %v4739
      %v4850 = vadd.f32 %v4515, %v4744
      %v4851 = vadd.f32 %v4520, %v4749
      %v4852 = vadd.f32 %v4525, %v4754
      %v4853 = vadd.f32 %v4530, %v4759
      %v4854 = vadd.f32 %v4535, %v4764
      %v4855 = vadd.f32 %v4540, %v4769
      %v4856 = vadd.f32 %v4545, %v4774
      %v4857 = vadd.f32 %v4550, %v4779
      %v4858 = vadd.f32 %v4555, %v4784
      %v4859 = vadd.f32 %v4560, %v4789
      %v4860 = vadd.f32 %v4565, %v4794
      %v4861 = vadd.f32 %v4570, %v4799
      %v4862 = vadd.f32 %v4575, %v4804
      %v4863 = vadd.f32 %v4580, %v4809
      %v4864 = vadd.f32 %v4585, %v4814
      %v4865 = vadd.f32 %v4590, %v4819
      %v4866 = vadd.f32 %v4595, %v4824
      %v4867 = vadd.f32 %v4600, %v4829
      %v4868 = vadd.f32 %v4605, %v4834
      %v4869 = vmax.f32 %v4837, 0.0
      %v4870 = vmax.f32 %v4838, 0.0
      %v4871 = vmax.f32 %v4839, 0.0
      %v4872 = vmax.f32 %v4840, 0.0
      %v4873 = vmax.f32 %v4841, 0.0
      %v4874 = vmax.f32 %v4842, 0.0
      %v4875 = vmax.f32 %v4843, 0.0
      %v4876 = vmax.f32 %v4844, 0.0
      %v4877 = vmax.f32 %v4845, 0.0
      %v4878 = vmax.f32 %v4846, 0.0
      %v4879 = vmax.f32 %v4847, 0.0
      %v4880 = vmax.f32 %v4848, 0.0
      %v4881 = vmax.f32 %v4849, 0.0
      %v4882 = vmax.f32 %v4850, 0.0
      %v4883 = vmax.f32 %v4851, 0.0
      %v4884 = vmax.f32 %v4852, 0.0
      %v4885 = vmax.f32 %v4853, 0.0
      %v4886 = vmax.f32 %v4854, 0.0
      %v4887 = vmax.f32 %v4855, 0.0
      %v4888 = vmax.f32 %v4856, 0.0
      %v4889 = vmax.f32 %v4857, 0.0
      %v4890 = vmax.f32 %v4858, 0.0
      %v4891 = vmax.f32 %v4859, 0.0
      %v4892 = vmax.f32 %v4860, 0.0
      %v4893 = vmax.f32 %v4861, 0.0
      %v4894 = vmax.f32 %v4862, 0.0
      %v4895 = vmax.f32 %v4863, 0.0
      %v4896 = vmax.f32 %v4864, 0.0
      %v4897 = vmax.f32 %v4865, 0.0
      %v4898 = vmax.f32 %v4866, 0.0
      %v4899 = vmax.f32 %v4867, 0.0
      %v4900 = vmax.f32 %v4868, 0.0
      %vm4901 = vcmask 64512
      %4902 = vst.msk [vmem:[%s305] sm:$0xff] %vm4901, %v4869
      %4903 = vst.msk [vmem:[%s305 + $0x8] sm:$0xff] %vm4901, %v4870
      %4904 = vst.msk [vmem:[%s305 + $0x10] sm:$0xff] %vm4901, %v4871
      %4905 = vst.msk [vmem:[%s305 + $0x18] sm:$0xff] %vm4901, %v4872
      %4906 = vst.msk [vmem:[%s305 + $0x20] sm:$0xff] %vm4901, %v4873
      %4907 = vst.msk [vmem:[%s305 + $0x28] sm:$0xff] %vm4901, %v4874
      %4908 = vst.msk [vmem:[%s305 + $0x30] sm:$0xff] %vm4901, %v4875
      %4909 = vst.msk [vmem:[%s305 + $0x38] sm:$0xff] %vm4901, %v4876
      %4910 = vst.msk [vmem:[%s305 + $0x40] sm:$0xff] %vm4901, %v4877
      %4911 = vst.msk [vmem:[%s305 + $0x48] sm:$0xff] %vm4901, %v4878
      %4912 = vst.msk [vmem:[%s305 + $0x50] sm:$0xff] %vm4901, %v4879
      %4913 = vst.msk [vmem:[%s305 + $0x58] sm:$0xff] %vm4901, %v4880
      %4914 = vst.msk [vmem:[%s305 + $0x60] sm:$0xff] %vm4901, %v4881
      %4915 = vst.msk [vmem:[%s305 + $0x68] sm:$0xff] %vm4901, %v4882
      %4916 = vst.msk [vmem:[%s305 + $0x70] sm:$0xff] %vm4901, %v4883
      %4917 = vst.msk [vmem:[%s305 + $0x78] sm:$0xff] %vm4901, %v4884
      %4918 = vst.msk [vmem:[%s305 + $0x80] sm:$0xff] %vm4901, %v4885
      %4919 = vst.msk [vmem:[%s305 + $0x88] sm:$0xff] %vm4901, %v4886
      %4920 = vst.msk [vmem:[%s305 + $0x90] sm:$0xff] %vm4901, %v4887
      %4921 = vst.msk [vmem:[%s305 + $0x98] sm:$0xff] %vm4901, %v4888
      %4922 = vst.msk [vmem:[%s305 + $0xa0] sm:$0xff] %vm4901, %v4889
      %4923 = vst.msk [vmem:[%s305 + $0xa8] sm:$0xff] %vm4901, %v4890
      %4924 = vst.msk [vmem:[%s305 + $0xb0] sm:$0xff] %vm4901, %v4891
      %4925 = vst.msk [vmem:[%s305 + $0xb8] sm:$0xff] %vm4901, %v4892
      %4926 = vst.msk [vmem:[%s305 + $0xc0] sm:$0xff] %vm4901, %v4893
      %4927 = vst.msk [vmem:[%s305 + $0xc8] sm:$0xff] %vm4901, %v4894
      %4928 = vst.msk [vmem:[%s305 + $0xd0] sm:$0xff] %vm4901, %v4895
      %4929 = vst.msk [vmem:[%s305 + $0xd8] sm:$0xff] %vm4901, %v4896
      %4930 = vst.msk [vmem:[%s305 + $0xe0] sm:$0xff] %vm4901, %v4897
      %4931 = vst.msk [vmem:[%s305 + $0xe8] sm:$0xff] %vm4901, %v4898
      %4932 = vst.msk [vmem:[%s305 + $0xf0] sm:$0xff] %vm4901, %v4899
      %4933 = vst.msk [vmem:[%s305 + $0xf8] sm:$0xff] %vm4901, %v4900
      %p4934 = scmp.lt.s32.totalorder %s19, 1
      %s4935 = scalar_select %p4934, %s19, 1
      %s4936 = smul.addr %s4935, 32
      %s4937 = smul.addr %s4936, 8
      %s4938 = scalar_lea.vmem %s8, %s4937
      // Predicated region
      $region53: #{tpu_custom_call.1} parent=51 // pred_check
        %p4939 = pneg %p210
      $region54: #{tpu_custom_call.1} parent=51 // pred_check_branch
        %4941 = sbr.rel (%p4939) target = $region56
      $region55: #{tpu_custom_call.1} parent=51 // pred_region
        _
      $region56: #{tpu_custom_call.1} parent=51 // pred_fallthru
        _
    $region52: #{tpu_custom_call.1} parent=5 // pred_fallthru
      _
    %p4942 = scmp.le.s32.totalorder 2, %s14
    // Predicated region
    $region57: #{tpu_custom_call.1} parent=5 // pred_check
      %p4943 = pneg %p4942
    $region58: #{tpu_custom_call.1} parent=5 // pred_check_branch
      %4945 = sbr.rel (%p4943) target = $region60
    $region59: #{tpu_custom_call.1} parent=5 // pred_region
      %s4946 = ssub.s32 %s14, 2
      // Predicated region
      $region61: #{tpu_custom_call.1} parent=59 // pred_check
        %p4947 = pneg %p216
      $region62: #{tpu_custom_call.1} parent=59 // pred_check_branch
        %4949 = sbr.rel (%p4947) target = $region64
      $region63: #{tpu_custom_call.1} parent=59 // pred_region
        %p4950 = scmp.lt.s32.totalorder %s20, 1
        %s4951 = scalar_select %p4950, %s20, 1
        %s4952 = smul.addr %s4951, 32
        %s4953 = smul.addr %s4952, 8
        %s4954 = scalar_lea.vmem %s8, %s4953
      $region64: #{tpu_custom_call.1} parent=59 // pred_fallthru
        _
    $region60: #{tpu_custom_call.1} parent=5 // pred_fallthru
      _
  $region6: #{tpu_custom_call.1} parent=0 // loop_footer
    %s18 = sadd.s32 1, %s14
  $region7: #{tpu_custom_call.1} parent=0 // loop_footer_branch
    %13 = sbr.rel target = $region3
  $region8: #{tpu_custom_call.1} parent=0 // loop_exit
    _

</llo_original>
